<compile_context>
chip_gen: v7x
topology: tpu7x:2x2x1
jax: 0.10.0
libtpu: 0.0.40
codegen_flags: <defaults>
</compile_context>

<pallas_src>
import functools

import jax
import jax.numpy as jnp
import numpy as np
from jax.experimental import pallas as pl
from jax.experimental.pallas import tpu as pltpu


def _ffn_kernel(x_ref, m_ref, w1_ref, b1_ref, w2_ref, b2_ref, o_ref, *,
                kernel_size, activation, compute_dtype, precision):
    """Fused FFN for a block of `BB` batch elements (channel-major, T on lanes).

    x_ref : (BB, C_in, T)       input
    m_ref : (BB, 1, T)          mask
    w1_ref: (C_h, K*C_in)       conv_1 weights, taps folded into contraction
    b1_ref: (C_h, 1)
    w2_ref: (K, C_out, C_h)     conv_2 weights, tap-major
    b2_ref: (C_out, 1)
    o_ref : (BB, C_out, T)
    """
    K = kernel_size
    pad = K // 2
    BB = x_ref.shape[0]
    T = x_ref.shape[-1]
    C_out = o_ref.shape[1]

    # Column index; zeroes the cyclically wrapped columns after a lane roll so the
    # shift behaves exactly like Conv1d zero padding at the sequence boundaries.
    t_idx = jax.lax.broadcasted_iota(jnp.int32, (1, T), 1)

    def shift_cols(a, d):
        # returns s with s[:, t] = a[:, t + d], zero where t + d is outside [0, T)
        if d == 0:
            return a
        rolled = pltpu.roll(a, shift=(-d) % T, axis=1)
        valid = jnp.logical_and(t_idx + d >= 0, t_idx + d < T)
        return jnp.where(valid, rolled, jnp.zeros_like(rolled))

    # Hoist weight / bias loads out of the batch loop.
    w1f = w1_ref[...].astype(compute_dtype)                    # (C_h, K*C_in)
    w2_taps = [w2_ref[k].astype(compute_dtype) for k in range(K)]   # K x (C_out, C_h)
    b1 = b1_ref[...].astype(jnp.float32)                       # (C_h, 1)
    b2 = b2_ref[...].astype(jnp.float32)                       # (C_out, 1)

    for bb in range(BB):
        x = x_ref[bb]                                           # (C_in, T)
        m = m_ref[bb]                                           # (1, T)
        xm = (x * m).astype(compute_dtype)

        # ---- conv_1(x * mask): im2col (taps -> contraction), one MXU matmul ----
        stack = jnp.concatenate([shift_cols(xm, k - pad) for k in range(K)], axis=0)
        h = jnp.dot(w1f, stack, preferred_element_type=jnp.float32,
                    precision=precision) + b1                  # f32 (C_h, T)

        # ---- activation (dropout = identity) ----
        if activation == "gelu":
            h = h * jax.nn.sigmoid(1.702 * h)
        else:
            h = jnp.maximum(h, 0.0)
        h = (h * m.astype(jnp.float32)).astype(compute_dtype)  # re-mask

        # ---- conv_2(h * mask): K matmuls, shift the small (C_out, T) results ----
        y = jnp.zeros((C_out, T), jnp.float32)
        for k in range(K):
            q = jnp.dot(w2_taps[k], h, preferred_element_type=jnp.float32,
                        precision=precision)                   # (C_out, T)
            y = y + shift_cols(q, k - pad)
        y = y + b2

        o_ref[bb] = y.astype(o_ref.dtype)                       # lane-dense store along T


def _pick_vmem_limit():
    """Per-generation VMEM budget: ~70% of physical, capped for safety."""
    cap = 64 * 1024 * 1024                                      # conservative default (v7x)
    try:
        info = pltpu.get_tpu_info()
        cap = int(getattr(info, "vmem_capacity_bytes", cap))
    except Exception:
        pass
    return min(int(cap * 0.7), 100 * 1024 * 1024)


def _auto_batch_block(B, C_in, C_h, C_out, T, K, itemsize, vmem_limit):
    """Largest divisor of B (<= 8) whose per-step footprint fits half the VMEM budget."""
    per_b = (C_in * T + C_out * T + T) * itemsize * 2           # double-buffered I/O blocks
    per_b += (K * C_in * T + 2 * C_h * T + 2 * C_out * T) * 4   # in-kernel f32 temporaries
    bb = max(1, min(B, 8, (vmem_limit // 2) // max(per_b, 1)))
    while B % bb:
        bb -= 1
    return bb


def ffn_forward(x, x_mask, w1, b1, w2, b2, *, kernel_size, activation=None,
                batch_block=None):
    """FFN forward.

    x      : (B, C_in, T)      -- PyTorch (N, C, T) layout, consumed as-is
    x_mask : (B, 1, T)
    w1     : (C_h, C_in, K)    -- PyTorch Conv1d weight layout (O, I, K)
    b1     : (C_h,)
    w2     : (C_out, C_h, K)
    b2     : (C_out,)
    returns: (B, C_out, T)
    """
    assert kernel_size % 2 == 1, "padding = kernel_size // 2 assumes odd kernel_size"
    B, C_in, T = x.shape
    C_h = w1.shape[0]
    C_out = w2.shape[0]
    K = kernel_size
    assert w1.shape == (C_h, C_in, K) and w2.shape == (C_out, C_h, K)

    compute_dtype = x.dtype
    precision = (jax.lax.Precision.HIGHEST
                 if jnp.dtype(compute_dtype) == jnp.float32 else None)

    vmem_limit = _pick_vmem_limit()
    if batch_block is None:
        batch_block = _auto_batch_block(B, C_in, C_h, C_out, T, K,
                                        jnp.dtype(x.dtype).itemsize, vmem_limit)
    while B % batch_block:
        batch_block -= 1
    BB = max(1, batch_block)

    # Tiny, weight-only layout plumbing (activations are NOT copied in HBM):
    #   conv_1 taps folded into the contraction dim; conv_2 taps made leading.
    w1f = jnp.transpose(w1, (0, 2, 1)).reshape(C_h, K * C_in)   # (C_h, K*C_in)
    w2t = jnp.transpose(w2, (2, 0, 1))                          # (K, C_out, C_h)
    b1c = b1.reshape(C_h, 1)
    b2c = b2.reshape(C_out, 1)
    mt = x_mask.astype(x.dtype)                                 # (B, 1, T)

    kernel = functools.partial(_ffn_kernel, kernel_size=K, activation=activation,
                               compute_dtype=compute_dtype, precision=precision)

    y = pl.pallas_call(
        kernel,
        out_shape=jax.ShapeDtypeStruct((B, C_out, T), x.dtype),
        grid_spec=pltpu.PrefetchScalarGridSpec(
            num_scalar_prefetch=0,
            grid=(B // BB,),
            in_specs=[
                pl.BlockSpec((BB, C_in, T), lambda b: (b, 0, 0)),
                pl.BlockSpec((BB, 1, T), lambda b: (b, 0, 0)),
                pl.BlockSpec((C_h, K * C_in), lambda b: (0, 0)),
                pl.BlockSpec((C_h, 1), lambda b: (0, 0)),
                pl.BlockSpec((K, C_out, C_h), lambda b: (0, 0, 0)),
                pl.BlockSpec((C_out, 1), lambda b: (0, 0)),
            ],
            out_specs=pl.BlockSpec((BB, C_out, T), lambda b: (b, 0, 0)),
        ),
        compiler_params=pltpu.CompilerParams(
            dimension_semantics=("parallel",),      # batch steps are independent
            vmem_limit_bytes=vmem_limit,            # per-generation budget
        ),
    )(x, mt, w1f, b1c, w2t, b2c)

    return y                                          # already (B, C_out, T)


def _reference_ffn(x, x_mask, w1, b1, w2, b2, *, kernel_size, activation=None):
    pad = kernel_size // 2

    def conv1d(a, w, b):
        y = jax.lax.conv_general_dilated(
            a, w, window_strides=(1,), padding=[(pad, pad)],
            dimension_numbers=("NCH", "OIH", "NCH"),
            precision=jax.lax.Precision.HIGHEST)
        return y + b[None, :, None]

    h = conv1d(x * x_mask, w1, b1)
    if activation == "gelu":
        h = h * jax.nn.sigmoid(1.702 * h)
    else:
        h = jnp.maximum(h, 0.0)
    return conv1d(h * x_mask, w2, b2)


if __name__ == "__main__":
    key = jax.random.PRNGKey(0)
    kx, kw1, kb1, kw2, kb2 = jax.random.split(key, 5)

    B, C_IN, C_OUT, C_FILTER, T, K = 2, 4, 4, 32, 16, 3

    x = jax.random.normal(kx, (B, C_IN, T), dtype=jnp.float32)
    w1 = 0.3 * jax.random.normal(kw1, (C_FILTER, C_IN, K), dtype=jnp.float32)
    b1 = 0.1 * jax.random.normal(kb1, (C_FILTER,), dtype=jnp.float32)
    w2 = 0.3 * jax.random.normal(kw2, (C_OUT, C_FILTER, K), dtype=jnp.float32)
    b2 = 0.1 * jax.random.normal(kb2, (C_OUT,), dtype=jnp.float32)

    # variable-length mask: batch 0 -> full T valid, batch 1 -> only 11 valid frames
    lengths = jnp.array([T, 11])
    x_mask = (jnp.arange(T)[None, None, :] < lengths[:, None, None]).astype(x.dtype)

    for act in (None, "gelu"):
        y = ffn_forward(x, x_mask, w1, b1, w2, b2, kernel_size=K, activation=act)
        jax.block_until_ready(y)
        y_ref = _reference_ffn(x, x_mask, w1, b1, w2, b2, kernel_size=K,
                               activation=act)
        np.testing.assert_allclose(np.asarray(y), np.asarray(y_ref),
                                   rtol=1e-5, atol=1e-5)

    print("KERNEL_OK")
</pallas_src>

<mosaic_0001>
module attributes {stable_mosaic.version = 11 : i64} {
  func.func @_ffn_kernel(%arg0: i32, %arg1: memref<2x4x16xf32, #tpu.memory_space<vmem>>, %arg2: memref<2x1x16xf32, #tpu.memory_space<vmem>>, %arg3: memref<32x12xf32, #tpu.memory_space<vmem>>, %arg4: memref<32x1xf32, #tpu.memory_space<vmem>>, %arg5: memref<3x4x32xf32, #tpu.memory_space<vmem>>, %arg6: memref<4x1xf32, #tpu.memory_space<vmem>>, %arg7: memref<2x4x16xf32, #tpu.memory_space<vmem>>) attributes {dimension_semantics = [#tpu.dimension_semantics<parallel>], iteration_bounds = array<i64: 1>, scalar_prefetch = 0 : i64, scratch_operands = 0 : i64, tpu.core_type = #tpu.core_type<tc>, window_params = [{transform_indices = @transform_0, window_bounds = array<i64: 2, 4, 16>}, {transform_indices = @transform_1, window_bounds = array<i64: 2, 1, 16>}, {pipeline_mode = #tpu.pipeline_mode<synchronous>, transform_indices = @transform_2, window_bounds = array<i64: 32, 12>}, {pipeline_mode = #tpu.pipeline_mode<synchronous>, transform_indices = @transform_3, window_bounds = array<i64: 32, 1>}, {pipeline_mode = #tpu.pipeline_mode<synchronous>, transform_indices = @transform_4, window_bounds = array<i64: 3, 4, 32>}, {pipeline_mode = #tpu.pipeline_mode<synchronous>, transform_indices = @transform_5, window_bounds = array<i64: 4, 1>}, {transform_indices = @transform_6, window_bounds = array<i64: 2, 4, 16>}]} {
    %0 = tpu.iota {dimensions = array<i32: 1>} : vector<1x16xi32>
    %c0 = arith.constant 0 : index
    %c0_0 = arith.constant 0 : index
    %1 = vector.load %arg3[%c0, %c0_0] : memref<32x12xf32, #tpu.memory_space<vmem>>, vector<32x12xf32>
    %c0_1 = arith.constant 0 : index
    %c0_2 = arith.constant 0 : index
    %c0_3 = arith.constant 0 : index
    %2 = vector.load %arg5[%c0_1, %c0_2, %c0_3] : memref<3x4x32xf32, #tpu.memory_space<vmem>>, vector<1x4x32xf32>
    %3 = vector.shape_cast %2 : vector<1x4x32xf32> to vector<4x32xf32>
    %c1 = arith.constant 1 : index
    %c0_4 = arith.constant 0 : index
    %c0_5 = arith.constant 0 : index
    %4 = vector.load %arg5[%c1, %c0_4, %c0_5] : memref<3x4x32xf32, #tpu.memory_space<vmem>>, vector<1x4x32xf32>
    %5 = vector.shape_cast %4 : vector<1x4x32xf32> to vector<4x32xf32>
    %c2 = arith.constant 2 : index
    %c0_6 = arith.constant 0 : index
    %c0_7 = arith.constant 0 : index
    %6 = vector.load %arg5[%c2, %c0_6, %c0_7] : memref<3x4x32xf32, #tpu.memory_space<vmem>>, vector<1x4x32xf32>
    %7 = vector.shape_cast %6 : vector<1x4x32xf32> to vector<4x32xf32>
    %c0_8 = arith.constant 0 : index
    %c0_9 = arith.constant 0 : index
    %8 = vector.load %arg4[%c0_8, %c0_9] : memref<32x1xf32, #tpu.memory_space<vmem>>, vector<32x1xf32>
    %c0_10 = arith.constant 0 : index
    %c0_11 = arith.constant 0 : index
    %9 = vector.load %arg6[%c0_10, %c0_11] : memref<4x1xf32, #tpu.memory_space<vmem>>, vector<4x1xf32>
    %c0_12 = arith.constant 0 : index
    %c0_13 = arith.constant 0 : index
    %c0_14 = arith.constant 0 : index
    %10 = vector.load %arg1[%c0_12, %c0_13, %c0_14] : memref<2x4x16xf32, #tpu.memory_space<vmem>>, vector<1x4x16xf32>
    %11 = vector.shape_cast %10 : vector<1x4x16xf32> to vector<4x16xf32>
    %c0_15 = arith.constant 0 : index
    %c0_16 = arith.constant 0 : index
    %c0_17 = arith.constant 0 : index
    %12 = vector.load %arg2[%c0_15, %c0_16, %c0_17] : memref<2x1x16xf32, #tpu.memory_space<vmem>>, vector<1x1x16xf32>
    %13 = vector.shape_cast %12 : vector<1x1x16xf32> to vector<1x16xf32>
    %14 = vector.broadcast %13 : vector<1x16xf32> to vector<4x16xf32>
    %15 = arith.mulf %11, %14 : vector<4x16xf32>
    %c1_i32 = arith.constant 1 : i32
    %16 = tpu.dynamic_rotate %15 by %c1_i32 dim 1 : vector<4x16xf32>, i32 -> vector<4x16xf32>
    %c-1_i32 = arith.constant -1 : i32
    %17 = vector.broadcast %c-1_i32 : i32 to vector<1x16xi32>
    %18 = arith.addi %0, %17 : vector<1x16xi32>
    %c0_i32 = arith.constant 0 : i32
    %19 = vector.broadcast %c0_i32 : i32 to vector<1x16xi32>
    %20 = arith.cmpi sge, %18, %19 : vector<1x16xi32>
    %c-1_i32_18 = arith.constant -1 : i32
    %21 = vector.broadcast %c-1_i32_18 : i32 to vector<1x16xi32>
    %22 = arith.addi %0, %21 : vector<1x16xi32>
    %c16_i32 = arith.constant 16 : i32
    %23 = vector.broadcast %c16_i32 : i32 to vector<1x16xi32>
    %24 = arith.cmpi slt, %22, %23 : vector<1x16xi32>
    %25 = arith.andi %20, %24 : vector<1x16xi1>
    %cst = arith.constant 0.000000e+00 : f32
    %26 = vector.broadcast %cst : f32 to vector<4x16xf32>
    %27 = vector.shape_cast %25 : vector<1x16xi1> to vector<1x16xi1>
    %28 = vector.broadcast %27 : vector<1x16xi1> to vector<4x16xi1>
    %29 = arith.select %28, %16, %26 : vector<4x16xi1>, vector<4x16xf32>
    %c15_i32 = arith.constant 15 : i32
    %30 = tpu.dynamic_rotate %15 by %c15_i32 dim 1 : vector<4x16xf32>, i32 -> vector<4x16xf32>
    %c1_i32_19 = arith.constant 1 : i32
    %31 = vector.broadcast %c1_i32_19 : i32 to vector<1x16xi32>
    %32 = arith.addi %0, %31 : vector<1x16xi32>
    %c0_i32_20 = arith.constant 0 : i32
    %33 = vector.broadcast %c0_i32_20 : i32 to vector<1x16xi32>
    %34 = arith.cmpi sge, %32, %33 : vector<1x16xi32>
    %c1_i32_21 = arith.constant 1 : i32
    %35 = vector.broadcast %c1_i32_21 : i32 to vector<1x16xi32>
    %36 = arith.addi %0, %35 : vector<1x16xi32>
    %c16_i32_22 = arith.constant 16 : i32
    %37 = vector.broadcast %c16_i32_22 : i32 to vector<1x16xi32>
    %38 = arith.cmpi slt, %36, %37 : vector<1x16xi32>
    %39 = arith.andi %34, %38 : vector<1x16xi1>
    %cst_23 = arith.constant 0.000000e+00 : f32
    %40 = vector.broadcast %cst_23 : f32 to vector<4x16xf32>
    %41 = vector.shape_cast %39 : vector<1x16xi1> to vector<1x16xi1>
    %42 = vector.broadcast %41 : vector<1x16xi1> to vector<4x16xi1>
    %43 = arith.select %42, %30, %40 : vector<4x16xi1>, vector<4x16xf32>
    %44 = tpu.concatenate %29, %15, %43 in 0 : vector<4x16xf32>, vector<4x16xf32>, vector<4x16xf32> -> vector<12x16xf32>
    %cst_24 = arith.constant dense<0.000000e+00> : vector<32x16xf32>
    %45 = tpu.matmul %1, %44, %cst_24 {dimension_numbers = #tpu.dot_dimension_numbers<[1], [0], [0], [1], [0, 0, 1, 1], [], []>, precision = #tpu.contract_precision<fp32>} : vector<32x12xf32>, vector<12x16xf32>, vector<32x16xf32> -> vector<32x16xf32>
    %46 = vector.broadcast %8 : vector<32x1xf32> to vector<32x16xf32>
    %47 = arith.addf %45, %46 : vector<32x16xf32>
    %cst_25 = arith.constant 0.000000e+00 : f32
    %48 = vector.broadcast %cst_25 : f32 to vector<32x16xf32>
    %49 = arith.maximumf %47, %48 : vector<32x16xf32>
    %50 = vector.broadcast %13 : vector<1x16xf32> to vector<32x16xf32>
    %51 = arith.mulf %49, %50 : vector<32x16xf32>
    %cst_26 = arith.constant 0.000000e+00 : f32
    %52 = vector.broadcast %cst_26 : f32 to vector<4x16xf32>
    %cst_27 = arith.constant dense<0.000000e+00> : vector<4x16xf32>
    %53 = tpu.matmul %3, %51, %cst_27 {dimension_numbers = #tpu.dot_dimension_numbers<[1], [0], [0], [1], [0, 0, 1, 1], [], []>, precision = #tpu.contract_precision<fp32>} : vector<4x32xf32>, vector<32x16xf32>, vector<4x16xf32> -> vector<4x16xf32>
    %c1_i32_28 = arith.constant 1 : i32
    %54 = tpu.dynamic_rotate %53 by %c1_i32_28 dim 1 : vector<4x16xf32>, i32 -> vector<4x16xf32>
    %c-1_i32_29 = arith.constant -1 : i32
    %55 = vector.broadcast %c-1_i32_29 : i32 to vector<1x16xi32>
    %56 = arith.addi %0, %55 : vector<1x16xi32>
    %c0_i32_30 = arith.constant 0 : i32
    %57 = vector.broadcast %c0_i32_30 : i32 to vector<1x16xi32>
    %58 = arith.cmpi sge, %56, %57 : vector<1x16xi32>
    %c-1_i32_31 = arith.constant -1 : i32
    %59 = vector.broadcast %c-1_i32_31 : i32 to vector<1x16xi32>
    %60 = arith.addi %0, %59 : vector<1x16xi32>
    %c16_i32_32 = arith.constant 16 : i32
    %61 = vector.broadcast %c16_i32_32 : i32 to vector<1x16xi32>
    %62 = arith.cmpi slt, %60, %61 : vector<1x16xi32>
    %63 = arith.andi %58, %62 : vector<1x16xi1>
    %cst_33 = arith.constant 0.000000e+00 : f32
    %64 = vector.broadcast %cst_33 : f32 to vector<4x16xf32>
    %65 = vector.shape_cast %63 : vector<1x16xi1> to vector<1x16xi1>
    %66 = vector.broadcast %65 : vector<1x16xi1> to vector<4x16xi1>
    %67 = arith.select %66, %54, %64 : vector<4x16xi1>, vector<4x16xf32>
    %68 = arith.addf %52, %67 : vector<4x16xf32>
    %cst_34 = arith.constant dense<0.000000e+00> : vector<4x16xf32>
    %69 = tpu.matmul %5, %51, %cst_34 {dimension_numbers = #tpu.dot_dimension_numbers<[1], [0], [0], [1], [0, 0, 1, 1], [], []>, precision = #tpu.contract_precision<fp32>} : vector<4x32xf32>, vector<32x16xf32>, vector<4x16xf32> -> vector<4x16xf32>
    %70 = arith.addf %68, %69 : vector<4x16xf32>
    %cst_35 = arith.constant dense<0.000000e+00> : vector<4x16xf32>
    %71 = tpu.matmul %7, %51, %cst_35 {dimension_numbers = #tpu.dot_dimension_numbers<[1], [0], [0], [1], [0, 0, 1, 1], [], []>, precision = #tpu.contract_precision<fp32>} : vector<4x32xf32>, vector<32x16xf32>, vector<4x16xf32> -> vector<4x16xf32>
    %c15_i32_36 = arith.constant 15 : i32
    %72 = tpu.dynamic_rotate %71 by %c15_i32_36 dim 1 : vector<4x16xf32>, i32 -> vector<4x16xf32>
    %c1_i32_37 = arith.constant 1 : i32
    %73 = vector.broadcast %c1_i32_37 : i32 to vector<1x16xi32>
    %74 = arith.addi %0, %73 : vector<1x16xi32>
    %c0_i32_38 = arith.constant 0 : i32
    %75 = vector.broadcast %c0_i32_38 : i32 to vector<1x16xi32>
    %76 = arith.cmpi sge, %74, %75 : vector<1x16xi32>
    %c1_i32_39 = arith.constant 1 : i32
    %77 = vector.broadcast %c1_i32_39 : i32 to vector<1x16xi32>
    %78 = arith.addi %0, %77 : vector<1x16xi32>
    %c16_i32_40 = arith.constant 16 : i32
    %79 = vector.broadcast %c16_i32_40 : i32 to vector<1x16xi32>
    %80 = arith.cmpi slt, %78, %79 : vector<1x16xi32>
    %81 = arith.andi %76, %80 : vector<1x16xi1>
    %cst_41 = arith.constant 0.000000e+00 : f32
    %82 = vector.broadcast %cst_41 : f32 to vector<4x16xf32>
    %83 = vector.shape_cast %81 : vector<1x16xi1> to vector<1x16xi1>
    %84 = vector.broadcast %83 : vector<1x16xi1> to vector<4x16xi1>
    %85 = arith.select %84, %72, %82 : vector<4x16xi1>, vector<4x16xf32>
    %86 = arith.addf %70, %85 : vector<4x16xf32>
    %87 = vector.broadcast %9 : vector<4x1xf32> to vector<4x16xf32>
    %88 = arith.addf %86, %87 : vector<4x16xf32>
    %c0_42 = arith.constant 0 : index
    %c0_43 = arith.constant 0 : index
    %c0_44 = arith.constant 0 : index
    %89 = vector.load %arg7[%c0_42, %c0_43, %c0_44] : memref<2x4x16xf32, #tpu.memory_space<vmem>>, vector<1x4x16xf32>
    %90 = vector.shape_cast %89 : vector<1x4x16xf32> to vector<4x16xf32>
    %91 = vector.shape_cast %88 : vector<4x16xf32> to vector<1x4x16xf32>
    tpu.vector_store %arg7[%c0_42, %c0_43, %c0_44], %91 {strides = array<i32>} : memref<2x4x16xf32, #tpu.memory_space<vmem>>, vector<1x4x16xf32>,
    %c1_45 = arith.constant 1 : index
    %c0_46 = arith.constant 0 : index
    %c0_47 = arith.constant 0 : index
    %92 = vector.load %arg1[%c1_45, %c0_46, %c0_47] : memref<2x4x16xf32, #tpu.memory_space<vmem>>, vector<1x4x16xf32>
    %93 = vector.shape_cast %92 : vector<1x4x16xf32> to vector<4x16xf32>
    %c1_48 = arith.constant 1 : index
    %c0_49 = arith.constant 0 : index
    %c0_50 = arith.constant 0 : index
    %94 = vector.load %arg2[%c1_48, %c0_49, %c0_50] : memref<2x1x16xf32, #tpu.memory_space<vmem>>, vector<1x1x16xf32>
    %95 = vector.shape_cast %94 : vector<1x1x16xf32> to vector<1x16xf32>
    %96 = vector.broadcast %95 : vector<1x16xf32> to vector<4x16xf32>
    %97 = arith.mulf %93, %96 : vector<4x16xf32>
    %c1_i32_51 = arith.constant 1 : i32
    %98 = tpu.dynamic_rotate %97 by %c1_i32_51 dim 1 : vector<4x16xf32>, i32 -> vector<4x16xf32>
    %c-1_i32_52 = arith.constant -1 : i32
    %99 = vector.broadcast %c-1_i32_52 : i32 to vector<1x16xi32>
    %100 = arith.addi %0, %99 : vector<1x16xi32>
    %c0_i32_53 = arith.constant 0 : i32
    %101 = vector.broadcast %c0_i32_53 : i32 to vector<1x16xi32>
    %102 = arith.cmpi sge, %100, %101 : vector<1x16xi32>
    %c-1_i32_54 = arith.constant -1 : i32
    %103 = vector.broadcast %c-1_i32_54 : i32 to vector<1x16xi32>
    %104 = arith.addi %0, %103 : vector<1x16xi32>
    %c16_i32_55 = arith.constant 16 : i32
    %105 = vector.broadcast %c16_i32_55 : i32 to vector<1x16xi32>
    %106 = arith.cmpi slt, %104, %105 : vector<1x16xi32>
    %107 = arith.andi %102, %106 : vector<1x16xi1>
    %cst_56 = arith.constant 0.000000e+00 : f32
    %108 = vector.broadcast %cst_56 : f32 to vector<4x16xf32>
    %109 = vector.shape_cast %107 : vector<1x16xi1> to vector<1x16xi1>
    %110 = vector.broadcast %109 : vector<1x16xi1> to vector<4x16xi1>
    %111 = arith.select %110, %98, %108 : vector<4x16xi1>, vector<4x16xf32>
    %c15_i32_57 = arith.constant 15 : i32
    %112 = tpu.dynamic_rotate %97 by %c15_i32_57 dim 1 : vector<4x16xf32>, i32 -> vector<4x16xf32>
    %c1_i32_58 = arith.constant 1 : i32
    %113 = vector.broadcast %c1_i32_58 : i32 to vector<1x16xi32>
    %114 = arith.addi %0, %113 : vector<1x16xi32>
    %c0_i32_59 = arith.constant 0 : i32
    %115 = vector.broadcast %c0_i32_59 : i32 to vector<1x16xi32>
    %116 = arith.cmpi sge, %114, %115 : vector<1x16xi32>
    %c1_i32_60 = arith.constant 1 : i32
    %117 = vector.broadcast %c1_i32_60 : i32 to vector<1x16xi32>
    %118 = arith.addi %0, %117 : vector<1x16xi32>
    %c16_i32_61 = arith.constant 16 : i32
    %119 = vector.broadcast %c16_i32_61 : i32 to vector<1x16xi32>
    %120 = arith.cmpi slt, %118, %119 : vector<1x16xi32>
    %121 = arith.andi %116, %120 : vector<1x16xi1>
    %cst_62 = arith.constant 0.000000e+00 : f32
    %122 = vector.broadcast %cst_62 : f32 to vector<4x16xf32>
    %123 = vector.shape_cast %121 : vector<1x16xi1> to vector<1x16xi1>
    %124 = vector.broadcast %123 : vector<1x16xi1> to vector<4x16xi1>
    %125 = arith.select %124, %112, %122 : vector<4x16xi1>, vector<4x16xf32>
    %126 = tpu.concatenate %111, %97, %125 in 0 : vector<4x16xf32>, vector<4x16xf32>, vector<4x16xf32> -> vector<12x16xf32>
    %cst_63 = arith.constant dense<0.000000e+00> : vector<32x16xf32>
    %127 = tpu.matmul %1, %126, %cst_63 {dimension_numbers = #tpu.dot_dimension_numbers<[1], [0], [0], [1], [0, 0, 1, 1], [], []>, precision = #tpu.contract_precision<fp32>} : vector<32x12xf32>, vector<12x16xf32>, vector<32x16xf32> -> vector<32x16xf32>
    %128 = vector.broadcast %8 : vector<32x1xf32> to vector<32x16xf32>
    %129 = arith.addf %127, %128 : vector<32x16xf32>
    %cst_64 = arith.constant 0.000000e+00 : f32
    %130 = vector.broadcast %cst_64 : f32 to vector<32x16xf32>
    %131 = arith.maximumf %129, %130 : vector<32x16xf32>
    %132 = vector.broadcast %95 : vector<1x16xf32> to vector<32x16xf32>
    %133 = arith.mulf %131, %132 : vector<32x16xf32>
    %cst_65 = arith.constant 0.000000e+00 : f32
    %134 = vector.broadcast %cst_65 : f32 to vector<4x16xf32>
    %cst_66 = arith.constant dense<0.000000e+00> : vector<4x16xf32>
    %135 = tpu.matmul %3, %133, %cst_66 {dimension_numbers = #tpu.dot_dimension_numbers<[1], [0], [0], [1], [0, 0, 1, 1], [], []>, precision = #tpu.contract_precision<fp32>} : vector<4x32xf32>, vector<32x16xf32>, vector<4x16xf32> -> vector<4x16xf32>
    %c1_i32_67 = arith.constant 1 : i32
    %136 = tpu.dynamic_rotate %135 by %c1_i32_67 dim 1 : vector<4x16xf32>, i32 -> vector<4x16xf32>
    %c-1_i32_68 = arith.constant -1 : i32
    %137 = vector.broadcast %c-1_i32_68 : i32 to vector<1x16xi32>
    %138 = arith.addi %0, %137 : vector<1x16xi32>
    %c0_i32_69 = arith.constant 0 : i32
    %139 = vector.broadcast %c0_i32_69 : i32 to vector<1x16xi32>
    %140 = arith.cmpi sge, %138, %139 : vector<1x16xi32>
    %c-1_i32_70 = arith.constant -1 : i32
    %141 = vector.broadcast %c-1_i32_70 : i32 to vector<1x16xi32>
    %142 = arith.addi %0, %141 : vector<1x16xi32>
    %c16_i32_71 = arith.constant 16 : i32
    %143 = vector.broadcast %c16_i32_71 : i32 to vector<1x16xi32>
    %144 = arith.cmpi slt, %142, %143 : vector<1x16xi32>
    %145 = arith.andi %140, %144 : vector<1x16xi1>
    %cst_72 = arith.constant 0.000000e+00 : f32
    %146 = vector.broadcast %cst_72 : f32 to vector<4x16xf32>
    %147 = vector.shape_cast %145 : vector<1x16xi1> to vector<1x16xi1>
    %148 = vector.broadcast %147 : vector<1x16xi1> to vector<4x16xi1>
    %149 = arith.select %148, %136, %146 : vector<4x16xi1>, vector<4x16xf32>
    %150 = arith.addf %134, %149 : vector<4x16xf32>
    %cst_73 = arith.constant dense<0.000000e+00> : vector<4x16xf32>
    %151 = tpu.matmul %5, %133, %cst_73 {dimension_numbers = #tpu.dot_dimension_numbers<[1], [0], [0], [1], [0, 0, 1, 1], [], []>, precision = #tpu.contract_precision<fp32>} : vector<4x32xf32>, vector<32x16xf32>, vector<4x16xf32> -> vector<4x16xf32>
    %152 = arith.addf %150, %151 : vector<4x16xf32>
    %cst_74 = arith.constant dense<0.000000e+00> : vector<4x16xf32>
    %153 = tpu.matmul %7, %133, %cst_74 {dimension_numbers = #tpu.dot_dimension_numbers<[1], [0], [0], [1], [0, 0, 1, 1], [], []>, precision = #tpu.contract_precision<fp32>} : vector<4x32xf32>, vector<32x16xf32>, vector<4x16xf32> -> vector<4x16xf32>
    %c15_i32_75 = arith.constant 15 : i32
    %154 = tpu.dynamic_rotate %153 by %c15_i32_75 dim 1 : vector<4x16xf32>, i32 -> vector<4x16xf32>
    %c1_i32_76 = arith.constant 1 : i32
    %155 = vector.broadcast %c1_i32_76 : i32 to vector<1x16xi32>
    %156 = arith.addi %0, %155 : vector<1x16xi32>
    %c0_i32_77 = arith.constant 0 : i32
    %157 = vector.broadcast %c0_i32_77 : i32 to vector<1x16xi32>
    %158 = arith.cmpi sge, %156, %157 : vector<1x16xi32>
    %c1_i32_78 = arith.constant 1 : i32
    %159 = vector.broadcast %c1_i32_78 : i32 to vector<1x16xi32>
    %160 = arith.addi %0, %159 : vector<1x16xi32>
    %c16_i32_79 = arith.constant 16 : i32
    %161 = vector.broadcast %c16_i32_79 : i32 to vector<1x16xi32>
    %162 = arith.cmpi slt, %160, %161 : vector<1x16xi32>
    %163 = arith.andi %158, %162 : vector<1x16xi1>
    %cst_80 = arith.constant 0.000000e+00 : f32
    %164 = vector.broadcast %cst_80 : f32 to vector<4x16xf32>
    %165 = vector.shape_cast %163 : vector<1x16xi1> to vector<1x16xi1>
    %166 = vector.broadcast %165 : vector<1x16xi1> to vector<4x16xi1>
    %167 = arith.select %166, %154, %164 : vector<4x16xi1>, vector<4x16xf32>
    %168 = arith.addf %152, %167 : vector<4x16xf32>
    %169 = vector.broadcast %9 : vector<4x1xf32> to vector<4x16xf32>
    %170 = arith.addf %168, %169 : vector<4x16xf32>
    %c1_81 = arith.constant 1 : index
    %c0_82 = arith.constant 0 : index
    %c0_83 = arith.constant 0 : index
    %171 = vector.load %arg7[%c1_81, %c0_82, %c0_83] : memref<2x4x16xf32, #tpu.memory_space<vmem>>, vector<1x4x16xf32>
    %172 = vector.shape_cast %171 : vector<1x4x16xf32> to vector<4x16xf32>
    %173 = vector.shape_cast %170 : vector<4x16xf32> to vector<1x4x16xf32>
    tpu.vector_store %arg7[%c1_81, %c0_82, %c0_83], %173 {strides = array<i32>} : memref<2x4x16xf32, #tpu.memory_space<vmem>>, vector<1x4x16xf32>,
    return
  }
  func.func @transform_0(%arg0: i32) -> (i32, i32, i32) {
    %c0_i32 = arith.constant 0 : i32
    %c0_i32_0 = arith.constant 0 : i32
    %c0_i32_1 = arith.constant 0 : i32
    return %arg0, %c0_i32, %c0_i32_0 : i32, i32, i32
  }
  func.func @transform_1(%arg0: i32) -> (i32, i32, i32) {
    %c0_i32 = arith.constant 0 : i32
    %c0_i32_0 = arith.constant 0 : i32
    %c0_i32_1 = arith.constant 0 : i32
    return %arg0, %c0_i32, %c0_i32_0 : i32, i32, i32
  }
  func.func @transform_2(%arg0: i32) -> (i32, i32) {
    %c0_i32 = arith.constant 0 : i32
    %c0_i32_0 = arith.constant 0 : i32
    %c0_i32_1 = arith.constant 0 : i32
    return %c0_i32, %c0_i32_0 : i32, i32
  }
  func.func @transform_3(%arg0: i32) -> (i32, i32) {
    %c0_i32 = arith.constant 0 : i32
    %c0_i32_0 = arith.constant 0 : i32
    %c0_i32_1 = arith.constant 0 : i32
    return %c0_i32, %c0_i32_0 : i32, i32
  }
  func.func @transform_4(%arg0: i32) -> (i32, i32, i32) {
    %c0_i32 = arith.constant 0 : i32
    %c0_i32_0 = arith.constant 0 : i32
    %c0_i32_1 = arith.constant 0 : i32
    %c0_i32_2 = arith.constant 0 : i32
    return %c0_i32, %c0_i32_0, %c0_i32_1 : i32, i32, i32
  }
  func.func @transform_5(%arg0: i32) -> (i32, i32) {
    %c0_i32 = arith.constant 0 : i32
    %c0_i32_0 = arith.constant 0 : i32
    %c0_i32_1 = arith.constant 0 : i32
    return %c0_i32, %c0_i32_0 : i32, i32
  }
  func.func @transform_6(%arg0: i32) -> (i32, i32, i32) {
    %c0_i32 = arith.constant 0 : i32
    %c0_i32_0 = arith.constant 0 : i32
    %c0_i32_1 = arith.constant 0 : i32
    return %arg0, %c0_i32, %c0_i32_0 : i32, i32, i32
  }
}

</mosaic_0001>

<llo_original>
// kernel: tpu_custom_call.1
$region0: #{tpu_custom_call.1}
  #allocation0 [shape = 'u32[]', space=smem, size = 0x4, offset = 0x4, fixed_abs, tag = 'smem constant byte address 0x4 - core index']
  #allocation1 [shape = 'u32[144,128]{1,0:T(1,128)}', space=vmem, size = 0x12000, scoped, tag = 'internal scratch']
  %s0 = inlined_call_operand.vmem [shape: f32[2,4,16], index: 0, kind: input, shape index: {}]
  %s1 = inlined_call_operand.vmem [shape: f32[2,1,16], index: 1, kind: input, shape index: {}]
  %s2 = inlined_call_operand.vmem [shape: f32[32,12], index: 2, kind: input, shape index: {}]
  %s3 = inlined_call_operand.vmem [shape: f32[32,1], index: 3, kind: input, shape index: {}]
  %s4 = inlined_call_operand.vmem [shape: f32[3,4,32], index: 4, kind: input, shape index: {}]
  %s5 = inlined_call_operand.vmem [shape: f32[4,1], index: 5, kind: input, shape index: {}]
  %s6 = inlined_call_operand.hbm [shape: f32[2,4,16], index: 6, kind: output, shape index: {}]
  %s7 = sld [smem:[#allocation0]]
  $region34: #{tpu_custom_call.1} parent=0
    _
  %s9 = ssub.s32 1, %s7
  %s10 = scalar_select 0, %s9, %s7
  $region1: #{tpu_custom_call.1} parent=0
    #allocation2 [shape = 'u8[4096]{0}', space=vmem, size = 0x1000, scoped, tag = 'output window, operand 0, single buffered']
    #allocation3 [shape = 's32[1]{0}', space=sflag, size = 0x4, scoped, tag = 'scoped memory for tpu_custom_call.1']
    %11 = vsyncpa [#allocation3], 0
    // Predicated region
    $region2: #{tpu_custom_call.1} parent=1 // pred_check
      _
    $region3: #{tpu_custom_call.1} parent=1 // pred_check_branch
      %13 = sbr.rel (0) target = $region5
    $region4: #{tpu_custom_call.1} parent=1 // pred_region
      _
    $region5: #{tpu_custom_call.1} parent=1 // pred_fallthru
      _
    // Predicated region
    $region6: #{tpu_custom_call.1} parent=1 // pred_check
      _
    $region7: #{tpu_custom_call.1} parent=1 // pred_check_branch
      %15 = sbr.rel (0) target = $region9
    $region8: #{tpu_custom_call.1} parent=1 // pred_region
      _
    $region9: #{tpu_custom_call.1} parent=1 // pred_fallthru
      _
    // Predicated region
    $region10: #{tpu_custom_call.1} parent=1 // pred_check
      _
    $region11: #{tpu_custom_call.1} parent=1 // pred_check_branch
      %17 = sbr.rel (0) target = $region13
    $region12: #{tpu_custom_call.1} parent=1 // pred_region
      _
    $region13: #{tpu_custom_call.1} parent=1 // pred_fallthru
      _
    // Predicated region
    $region14: #{tpu_custom_call.1} parent=1 // pred_check
      _
    $region15: #{tpu_custom_call.1} parent=1 // pred_check_branch
      %19 = sbr.rel (0) target = $region17
    $region16: #{tpu_custom_call.1} parent=1 // pred_region
      _
    $region17: #{tpu_custom_call.1} parent=1 // pred_fallthru
      _
    // Predicated region
    $region18: #{tpu_custom_call.1} parent=1 // pred_check
      _
    $region19: #{tpu_custom_call.1} parent=1 // pred_check_branch
      %21 = sbr.rel (0) target = $region21
    $region20: #{tpu_custom_call.1} parent=1 // pred_region
      _
    $region21: #{tpu_custom_call.1} parent=1 // pred_fallthru
      _
    // Predicated region
    $region22: #{tpu_custom_call.1} parent=1 // pred_check
      _
    $region23: #{tpu_custom_call.1} parent=1 // pred_check_branch
      %23 = sbr.rel (0) target = $region25
    $region24: #{tpu_custom_call.1} parent=1 // pred_region
      _
    $region25: #{tpu_custom_call.1} parent=1 // pred_fallthru
      _
    %v24 = vlaneseq
    %v25 = vand.u32 %v24, 127
    %v26 = vld [vmem:[%s2] sm:$0xff]
    %v27 = vld [vmem:[%s2 + $0x8] sm:$0xff]
    %v28 = vld [vmem:[%s2 + $0x10] sm:$0xff]
    %v29 = vld [vmem:[%s2 + $0x18] sm:$0xff]
    %v30 = vld [vmem:[%s4] sm:$0xf]
    %s31 = scalar_lea.vmem %s4, 4
    %v32 = vld [vmem:[%s31] sm:$0xf]
    %s33 = scalar_lea.vmem %s4, 8
    %v34 = vld [vmem:[%s33] sm:$0xf]
    %v35 = vld [vmem:[%s3] sm:$0xff]
    %v36 = vld [vmem:[%s3 + $0x8] sm:$0xff]
    %v37 = vld [vmem:[%s3 + $0x10] sm:$0xff]
    %v38 = vld [vmem:[%s3 + $0x18] sm:$0xff]
    %v39 = vld [vmem:[%s5] sm:$0xf]
    %v40 = vld [vmem:[%s0] sm:$0xf]
    %v41 = vld [vmem:[%s1] sm:$0x1]
    %v43 = vlaneseq
    %v44 = vshrl.u32 %v43, 7
    %v45 = vsub.s32 0, %v44
    %v46 = vrot.slane %v41, %v45
    %v48 = vmul.f32 %v40, %v46
    %vm49 = vcmask 1047680
    %50 = vrot.lane.b32.xlu0 %v48, 16
    %v51 = vpop.permute.xlu0 %50
    %v52 = vsel %vm49, %v51, %v48
    %53 = vrot.lane.b32.xlu0 %v52, 16
    %v54 = vpop.permute.xlu0 %53
    %v55 = vsel %vm49, %v54, %v48
    %v56 = vadd.s32 %v25, 4294967295
    %vm57 = vcmp.ge.s32.totalorder %v56, 0
    %vm58 = vcmp.lt.s32.totalorder %v56, 16
    %vm59 = vmand %vm57, %vm58
    %v60 = vsel %vm59, 1, 0
    %vm61 = vcmp.eq.s32.totalorder %v60, 1
    %63 = vrot.lane.b32.xlu0 %v55, 113
    %v64 = vpop.permute.xlu0 %63
    %v66 = vsel %vm61, %v64, 0.0
    %v67 = vadd.s32 %v25, 1
    %vm68 = vcmp.ge.s32.totalorder %v67, 0
    %vm69 = vcmp.lt.s32.totalorder %v67, 16
    %vm70 = vmand %vm68, %vm69
    %v71 = vsel %vm70, 1, 0
    %vm72 = vcmp.eq.s32.totalorder %v71, 1
    %73 = vrot.lane.b32.xlu0 %v55, 127
    %v74 = vpop.permute.xlu0 %73
    %v76 = vsel %vm72, %v74, 0.0
    %v78 = vrot.slane %v48, 4
    %vm80 = vcmask 1043456
    %v81 = vsel %vm80, %v66, %v78
    %83 = vset.pattern.permute.xlu0 0
    %84 = vperm.xlu0 %83, %v35
    %v85 = vpop.permute.xlu0 %84
    %88 = vset.pattern.permute.xlu0 0
    %89 = vperm.xlu0 %88, %v36
    %v90 = vpop.permute.xlu0 %89
    %93 = vset.pattern.permute.xlu0 0
    %94 = vperm.xlu0 %93, %v37
    %v95 = vpop.permute.xlu0 %94
    %98 = vset.pattern.permute.xlu0 0
    %99 = vperm.xlu0 %98, %v38
    %v100 = vpop.permute.xlu0 %99
    %vm102 = vcmask 97280
    %v104 = vsel %vm102, %v26, 0
    %v107 = vsel %vm102, %v27, 0
    %v110 = vsel %vm102, %v28, 0
    %v113 = vsel %vm102, %v29, 0
    %v116 = vsel %vm80, %v76, 0
    %118 = vmatprep.subr.mxu0 0.0
    %v119 = vand.u32 %v81, 4294901760
    %120 = vmatpush1.msra.mxu0 %v119
    %121 = vmatprep.subr.mxu0 0.0
    %v122 = vand.u32 %v116, 4294901760
    %123 = vmatpush1.msra.mxu0 %v122
    %124 = vmatprep.subr.mxu0 0.0
    %125 = vmatpush1.msra.mxu0 0.0
    %126 = vmatprep.subr.mxu0 0.0
    %127 = vmatpush1.msra.mxu0 0.0
    %128 = vmatprep.subr.mxu0 0.0
    %129 = vmatpush1.msra.mxu0 0.0
    %130 = vmatprep.subr.mxu0 0.0
    %131 = vmatpush1.msra.mxu0 0.0
    %132 = vmatprep.subr.mxu0 0.0
    %133 = vmatpush1.msra.mxu0 0.0
    %134 = vmatprep.subr.mxu0 0.0
    %135 = vmatpush1.msra.mxu0 0.0
    %136 = vmatprep.subr.mxu0 0.0
    %137 = vmatpush1.msra.mxu0 0.0
    %138 = vmatprep.subr.mxu0 0.0
    %139 = vmatpush1.msra.mxu0 0.0
    %140 = vmatprep.subr.mxu0 0.0
    %141 = vmatpush1.msra.mxu0 0.0
    %142 = vmatprep.subr.mxu0 0.0
    %143 = vmatpush1.msra.mxu0 0.0
    %144 = vmatprep.subr.mxu0 0.0
    %145 = vmatpush1.msra.mxu0 0.0
    %146 = vmatprep.subr.mxu0 0.0
    %147 = vmatpush1.msra.mxu0 0.0
    %148 = vmatprep.subr.mxu0 0.0
    %149 = vmatpush1.msra.mxu0 0.0
    %150 = vmatprep.subr.mxu0 0.0
    %151 = vmatpush1.msra.mxu0 0.0
    %152 = vmatprep.subr.mxu0 0.0
    %153 = vmatpush1.msra.mxu0 0.0
    %154 = vmatprep.subr.mxu0 0.0
    %155 = vmatpush1.msra.mxu0 0.0
    %156 = vmatprep.subr.mxu0 0.0
    %157 = vmatpush1.msra.mxu0 0.0
    %158 = vmatprep.subr.mxu0 0.0
    %159 = vmatpush1.msra.mxu0 0.0
    %160 = vmatprep.subr.mxu0 0.0
    %161 = vmatpush1.msra.mxu0 0.0
    %162 = vmatprep.subr.mxu0 0.0
    %163 = vmatpush1.msra.mxu0 0.0
    %164 = vmatprep.subr.mxu0 0.0
    %165 = vmatpush1.msra.mxu0 0.0
    %166 = vmatprep.subr.mxu0 0.0
    %167 = vmatpush1.msra.mxu0 0.0
    %168 = vmatprep.subr.mxu0 0.0
    %169 = vmatpush1.msra.mxu0 0.0
    %170 = vmatprep.subr.mxu0 0.0
    %171 = vmatpush1.msra.mxu0 0.0
    %172 = vmatprep.subr.mxu0 0.0
    %173 = vmatpush1.msra.mxu0 0.0
    %174 = vmatprep.subr.mxu0 0.0
    %175 = vmatpush1.msra.mxu0 0.0
    %176 = vmatprep.subr.mxu0 0.0
    %177 = vmatpush1.msra.mxu0 0.0
    %178 = vmatprep.subr.mxu0 0.0
    %179 = vmatpush1.msra.mxu0 0.0
    %180 = vmatprep.subr.mxu0 0.0
    %181 = vmatpush1.msra.mxu0 0.0
    %182 = vmatprep.subr.mxu0 0.0
    %183 = vmatpush1.msra.mxu0 0.0
    %184 = vmatprep.mubr.f32.mxu0 0.0
    %v185 = vand.u32 %v104, 4294901760
    %v186 = vsub.f32 %v104, %v185
    %v187 = vand.u32 %v186, 4294901760
    %v188 = vsub.f32 %v186, %v187
    %v189 = vand.u32 %v188, 4294901760
    %190 = vmatmul.mubr.f32.gmra.mrb[0].mxu0 %v189
    %v191 = vpop.f32.mrb[0].mxu0
    %v192 = vadd.f32 %v85, %v191
    %v193 = vpop.f32.mrb[0].mxu0
    %194 = vmatprep.mubr.f32.mxu0 0.0
    %v195 = vand.u32 %v107, 4294901760
    %v196 = vsub.f32 %v107, %v195
    %v197 = vand.u32 %v196, 4294901760
    %v198 = vsub.f32 %v196, %v197
    %v199 = vand.u32 %v198, 4294901760
    %200 = vmatmul.mubr.f32.gmra.mrb[0].mxu0 %v199
    %v201 = vpop.f32.mrb[0].mxu0
    %v202 = vadd.f32 %v90, %v201
    %v203 = vpop.f32.mrb[0].mxu0
    %204 = vmatprep.mubr.f32.mxu0 0.0
    %v205 = vand.u32 %v110, 4294901760
    %v206 = vsub.f32 %v110, %v205
    %v207 = vand.u32 %v206, 4294901760
    %v208 = vsub.f32 %v206, %v207
    %v209 = vand.u32 %v208, 4294901760
    %210 = vmatmul.mubr.f32.gmra.mrb[0].mxu0 %v209
    %v211 = vpop.f32.mrb[0].mxu0
    %v212 = vadd.f32 %v95, %v211
    %v213 = vpop.f32.mrb[0].mxu0
    %214 = vmatprep.mubr.f32.mxu0 0.0
    %v215 = vand.u32 %v113, 4294901760
    %v216 = vsub.f32 %v113, %v215
    %v217 = vand.u32 %v216, 4294901760
    %v218 = vsub.f32 %v216, %v217
    %v219 = vand.u32 %v218, 4294901760
    %220 = vmatmul.mubr.f32.gmra.mrb[0].mxu0 %v219
    %v221 = vpop.f32.mrb[0].mxu0
    %v222 = vadd.f32 %v100, %v221
    %v223 = vpop.f32.mrb[0].mxu0
    %224 = vdwg.mxu0
    %225 = vmatprep.subr.mxu0 0.0
    %v226 = vand.u32 %v81, 4294901760
    %v227 = vsub.f32 %v81, %v226
    %v228 = vand.u32 %v227, 4294901760
    %v229 = vsub.f32 %v227, %v228
    %v230 = vand.u32 %v229, 4294901760
    %231 = vmatpush1.msra.mxu0 %v230
    %232 = vmatprep.subr.mxu0 0.0
    %v233 = vand.u32 %v116, 4294901760
    %v234 = vsub.f32 %v116, %v233
    %v235 = vand.u32 %v234, 4294901760
    %v236 = vsub.f32 %v234, %v235
    %v237 = vand.u32 %v236, 4294901760
    %238 = vmatpush1.msra.mxu0 %v237
    %239 = vmatprep.subr.mxu0 0.0
    %240 = vmatpush1.msra.mxu0 0.0
    %241 = vmatprep.subr.mxu0 0.0
    %242 = vmatpush1.msra.mxu0 0.0
    %243 = vmatprep.subr.mxu0 0.0
    %244 = vmatpush1.msra.mxu0 0.0
    %245 = vmatprep.subr.mxu0 0.0
    %246 = vmatpush1.msra.mxu0 0.0
    %247 = vmatprep.subr.mxu0 0.0
    %248 = vmatpush1.msra.mxu0 0.0
    %249 = vmatprep.subr.mxu0 0.0
    %250 = vmatpush1.msra.mxu0 0.0
    %251 = vmatprep.subr.mxu0 0.0
    %252 = vmatpush1.msra.mxu0 0.0
    %253 = vmatprep.subr.mxu0 0.0
    %254 = vmatpush1.msra.mxu0 0.0
    %255 = vmatprep.subr.mxu0 0.0
    %256 = vmatpush1.msra.mxu0 0.0
    %257 = vmatprep.subr.mxu0 0.0
    %258 = vmatpush1.msra.mxu0 0.0
    %259 = vmatprep.subr.mxu0 0.0
    %260 = vmatpush1.msra.mxu0 0.0
    %261 = vmatprep.subr.mxu0 0.0
    %262 = vmatpush1.msra.mxu0 0.0
    %263 = vmatprep.subr.mxu0 0.0
    %264 = vmatpush1.msra.mxu0 0.0
    %265 = vmatprep.subr.mxu0 0.0
    %266 = vmatpush1.msra.mxu0 0.0
    %267 = vmatprep.subr.mxu0 0.0
    %268 = vmatpush1.msra.mxu0 0.0
    %269 = vmatprep.subr.mxu0 0.0
    %270 = vmatpush1.msra.mxu0 0.0
    %271 = vmatprep.subr.mxu0 0.0
    %272 = vmatpush1.msra.mxu0 0.0
    %273 = vmatprep.subr.mxu0 0.0
    %274 = vmatpush1.msra.mxu0 0.0
    %275 = vmatprep.subr.mxu0 0.0
    %276 = vmatpush1.msra.mxu0 0.0
    %277 = vmatprep.subr.mxu0 0.0
    %278 = vmatpush1.msra.mxu0 0.0
    %279 = vmatprep.subr.mxu0 0.0
    %280 = vmatpush1.msra.mxu0 0.0
    %281 = vmatprep.subr.mxu0 0.0
    %282 = vmatpush1.msra.mxu0 0.0
    %283 = vmatprep.subr.mxu0 0.0
    %284 = vmatpush1.msra.mxu0 0.0
    %285 = vmatprep.subr.mxu0 0.0
    %286 = vmatpush1.msra.mxu0 0.0
    %287 = vmatprep.subr.mxu0 0.0
    %288 = vmatpush1.msra.mxu0 0.0
    %289 = vmatprep.subr.mxu0 0.0
    %290 = vmatpush1.msra.mxu0 0.0
    %291 = vmatprep.subr.mxu0 0.0
    %292 = vmatpush1.msra.mxu0 0.0
    %293 = vmatprep.subr.mxu0 0.0
    %294 = vmatpush1.msra.mxu0 0.0
    %295 = vmatprep.subr.mxu0 0.0
    %296 = vmatpush1.msra.mxu0 0.0
    %297 = vmatprep.subr.mxu0 0.0
    %298 = vmatpush1.msra.mxu0 0.0
    %299 = vmatprep.mubr.f32.mxu0 0.0
    %v300 = vand.u32 %v104, 4294901760
    %301 = vmatmul.mubr.f32.gmra.mrb[0].mxu0 %v300
    %v302 = vpop.f32.mrb[0].mxu0
    %v303 = vadd.f32 %v192, %v302
    %v304 = vpop.f32.mrb[0].mxu0
    %305 = vmatprep.mubr.f32.mxu0 0.0
    %v306 = vand.u32 %v107, 4294901760
    %307 = vmatmul.mubr.f32.gmra.mrb[0].mxu0 %v306
    %v308 = vpop.f32.mrb[0].mxu0
    %v309 = vadd.f32 %v202, %v308
    %v310 = vpop.f32.mrb[0].mxu0
    %311 = vmatprep.mubr.f32.mxu0 0.0
    %v312 = vand.u32 %v110, 4294901760
    %313 = vmatmul.mubr.f32.gmra.mrb[0].mxu0 %v312
    %v314 = vpop.f32.mrb[0].mxu0
    %v315 = vadd.f32 %v212, %v314
    %v316 = vpop.f32.mrb[0].mxu0
    %317 = vmatprep.mubr.f32.mxu0 0.0
    %v318 = vand.u32 %v113, 4294901760
    %319 = vmatmul.mubr.f32.gmra.mrb[0].mxu0 %v318
    %v320 = vpop.f32.mrb[0].mxu0
    %v321 = vadd.f32 %v222, %v320
    %v322 = vpop.f32.mrb[0].mxu0
    %323 = vdwg.mxu0
    %324 = vmatprep.subr.mxu0 0.0
    %v325 = vand.u32 %v81, 4294901760
    %v326 = vsub.f32 %v81, %v325
    %327 = vmatpush1.msra.mxu0 %v326
    %328 = vmatprep.subr.mxu0 0.0
    %v329 = vand.u32 %v116, 4294901760
    %v330 = vsub.f32 %v116, %v329
    %331 = vmatpush1.msra.mxu0 %v330
    %332 = vmatprep.subr.mxu0 0.0
    %333 = vmatpush1.msra.mxu0 0.0
    %334 = vmatprep.subr.mxu0 0.0
    %335 = vmatpush1.msra.mxu0 0.0
    %336 = vmatprep.subr.mxu0 0.0
    %337 = vmatpush1.msra.mxu0 0.0
    %338 = vmatprep.subr.mxu0 0.0
    %339 = vmatpush1.msra.mxu0 0.0
    %340 = vmatprep.subr.mxu0 0.0
    %341 = vmatpush1.msra.mxu0 0.0
    %342 = vmatprep.subr.mxu0 0.0
    %343 = vmatpush1.msra.mxu0 0.0
    %344 = vmatprep.subr.mxu0 0.0
    %345 = vmatpush1.msra.mxu0 0.0
    %346 = vmatprep.subr.mxu0 0.0
    %347 = vmatpush1.msra.mxu0 0.0
    %348 = vmatprep.subr.mxu0 0.0
    %349 = vmatpush1.msra.mxu0 0.0
    %350 = vmatprep.subr.mxu0 0.0
    %351 = vmatpush1.msra.mxu0 0.0
    %352 = vmatprep.subr.mxu0 0.0
    %353 = vmatpush1.msra.mxu0 0.0
    %354 = vmatprep.subr.mxu0 0.0
    %355 = vmatpush1.msra.mxu0 0.0
    %356 = vmatprep.subr.mxu0 0.0
    %357 = vmatpush1.msra.mxu0 0.0
    %358 = vmatprep.subr.mxu0 0.0
    %359 = vmatpush1.msra.mxu0 0.0
    %360 = vmatprep.subr.mxu0 0.0
    %361 = vmatpush1.msra.mxu0 0.0
    %362 = vmatprep.subr.mxu0 0.0
    %363 = vmatpush1.msra.mxu0 0.0
    %364 = vmatprep.subr.mxu0 0.0
    %365 = vmatpush1.msra.mxu0 0.0
    %366 = vmatprep.subr.mxu0 0.0
    %367 = vmatpush1.msra.mxu0 0.0
    %368 = vmatprep.subr.mxu0 0.0
    %369 = vmatpush1.msra.mxu0 0.0
    %370 = vmatprep.subr.mxu0 0.0
    %371 = vmatpush1.msra.mxu0 0.0
    %372 = vmatprep.subr.mxu0 0.0
    %373 = vmatpush1.msra.mxu0 0.0
    %374 = vmatprep.subr.mxu0 0.0
    %375 = vmatpush1.msra.mxu0 0.0
    %376 = vmatprep.subr.mxu0 0.0
    %377 = vmatpush1.msra.mxu0 0.0
    %378 = vmatprep.subr.mxu0 0.0
    %379 = vmatpush1.msra.mxu0 0.0
    %380 = vmatprep.subr.mxu0 0.0
    %381 = vmatpush1.msra.mxu0 0.0
    %382 = vmatprep.subr.mxu0 0.0
    %383 = vmatpush1.msra.mxu0 0.0
    %384 = vmatprep.subr.mxu0 0.0
    %385 = vmatpush1.msra.mxu0 0.0
    %386 = vmatprep.subr.mxu0 0.0
    %387 = vmatpush1.msra.mxu0 0.0
    %388 = vmatprep.subr.mxu0 0.0
    %389 = vmatpush1.msra.mxu0 0.0
    %390 = vmatprep.subr.mxu0 0.0
    %391 = vmatpush1.msra.mxu0 0.0
    %392 = vmatprep.mubr.f32.mxu0 0.0
    %v393 = vand.u32 %v104, 4294901760
    %v394 = vsub.f32 %v104, %v393
    %395 = vmatmul.mubr.f32.gmra.mrb[0].mxu0 %v394
    %v396 = vpop.f32.mrb[0].mxu0
    %v397 = vadd.f32 %v303, %v396
    %v398 = vpop.f32.mrb[0].mxu0
    %399 = vmatprep.mubr.f32.mxu0 0.0
    %v400 = vand.u32 %v107, 4294901760
    %v401 = vsub.f32 %v107, %v400
    %402 = vmatmul.mubr.f32.gmra.mrb[0].mxu0 %v401
    %v403 = vpop.f32.mrb[0].mxu0
    %v404 = vadd.f32 %v309, %v403
    %v405 = vpop.f32.mrb[0].mxu0
    %406 = vmatprep.mubr.f32.mxu0 0.0
    %v407 = vand.u32 %v110, 4294901760
    %v408 = vsub.f32 %v110, %v407
    %409 = vmatmul.mubr.f32.gmra.mrb[0].mxu0 %v408
    %v410 = vpop.f32.mrb[0].mxu0
    %v411 = vadd.f32 %v315, %v410
    %v412 = vpop.f32.mrb[0].mxu0
    %413 = vmatprep.mubr.f32.mxu0 0.0
    %v414 = vand.u32 %v113, 4294901760
    %v415 = vsub.f32 %v113, %v414
    %416 = vmatmul.mubr.f32.gmra.mrb[0].mxu0 %v415
    %v417 = vpop.f32.mrb[0].mxu0
    %v418 = vadd.f32 %v321, %v417
    %v419 = vpop.f32.mrb[0].mxu0
    %420 = vdwg.mxu0
    %421 = vmatprep.subr.mxu0 0.0
    %v422 = vand.u32 %v81, 4294901760
    %423 = vmatpush1.msra.mxu0 %v422
    %424 = vmatprep.subr.mxu0 0.0
    %v425 = vand.u32 %v116, 4294901760
    %426 = vmatpush1.msra.mxu0 %v425
    %427 = vmatprep.subr.mxu0 0.0
    %428 = vmatpush1.msra.mxu0 0.0
    %429 = vmatprep.subr.mxu0 0.0
    %430 = vmatpush1.msra.mxu0 0.0
    %431 = vmatprep.subr.mxu0 0.0
    %432 = vmatpush1.msra.mxu0 0.0
    %433 = vmatprep.subr.mxu0 0.0
    %434 = vmatpush1.msra.mxu0 0.0
    %435 = vmatprep.subr.mxu0 0.0
    %436 = vmatpush1.msra.mxu0 0.0
    %437 = vmatprep.subr.mxu0 0.0
    %438 = vmatpush1.msra.mxu0 0.0
    %439 = vmatprep.subr.mxu0 0.0
    %440 = vmatpush1.msra.mxu0 0.0
    %441 = vmatprep.subr.mxu0 0.0
    %442 = vmatpush1.msra.mxu0 0.0
    %443 = vmatprep.subr.mxu0 0.0
    %444 = vmatpush1.msra.mxu0 0.0
    %445 = vmatprep.subr.mxu0 0.0
    %446 = vmatpush1.msra.mxu0 0.0
    %447 = vmatprep.subr.mxu0 0.0
    %448 = vmatpush1.msra.mxu0 0.0
    %449 = vmatprep.subr.mxu0 0.0
    %450 = vmatpush1.msra.mxu0 0.0
    %451 = vmatprep.subr.mxu0 0.0
    %452 = vmatpush1.msra.mxu0 0.0
    %453 = vmatprep.subr.mxu0 0.0
    %454 = vmatpush1.msra.mxu0 0.0
    %455 = vmatprep.subr.mxu0 0.0
    %456 = vmatpush1.msra.mxu0 0.0
    %457 = vmatprep.subr.mxu0 0.0
    %458 = vmatpush1.msra.mxu0 0.0
    %459 = vmatprep.subr.mxu0 0.0
    %460 = vmatpush1.msra.mxu0 0.0
    %461 = vmatprep.subr.mxu0 0.0
    %462 = vmatpush1.msra.mxu0 0.0
    %463 = vmatprep.subr.mxu0 0.0
    %464 = vmatpush1.msra.mxu0 0.0
    %465 = vmatprep.subr.mxu0 0.0
    %466 = vmatpush1.msra.mxu0 0.0
    %467 = vmatprep.subr.mxu0 0.0
    %468 = vmatpush1.msra.mxu0 0.0
    %469 = vmatprep.subr.mxu0 0.0
    %470 = vmatpush1.msra.mxu0 0.0
    %471 = vmatprep.subr.mxu0 0.0
    %472 = vmatpush1.msra.mxu0 0.0
    %473 = vmatprep.subr.mxu0 0.0
    %474 = vmatpush1.msra.mxu0 0.0
    %475 = vmatprep.subr.mxu0 0.0
    %476 = vmatpush1.msra.mxu0 0.0
    %477 = vmatprep.subr.mxu0 0.0
    %478 = vmatpush1.msra.mxu0 0.0
    %479 = vmatprep.subr.mxu0 0.0
    %480 = vmatpush1.msra.mxu0 0.0
    %481 = vmatprep.subr.mxu0 0.0
    %482 = vmatpush1.msra.mxu0 0.0
    %483 = vmatprep.subr.mxu0 0.0
    %484 = vmatpush1.msra.mxu0 0.0
    %485 = vmatprep.subr.mxu0 0.0
    %486 = vmatpush1.msra.mxu0 0.0
    %487 = vmatprep.mubr.f32.mxu0 0.0
    %v488 = vand.u32 %v104, 4294901760
    %v489 = vsub.f32 %v104, %v488
    %v490 = vand.u32 %v489, 4294901760
    %491 = vmatmul.mubr.f32.gmra.mrb[0].mxu0 %v490
    %v492 = vpop.f32.mrb[0].mxu0
    %v493 = vadd.f32 %v397, %v492
    %v494 = vpop.f32.mrb[0].mxu0
    %495 = vmatprep.mubr.f32.mxu0 0.0
    %v496 = vand.u32 %v107, 4294901760
    %v497 = vsub.f32 %v107, %v496
    %v498 = vand.u32 %v497, 4294901760
    %499 = vmatmul.mubr.f32.gmra.mrb[0].mxu0 %v498
    %v500 = vpop.f32.mrb[0].mxu0
    %v501 = vadd.f32 %v404, %v500
    %v502 = vpop.f32.mrb[0].mxu0
    %503 = vmatprep.mubr.f32.mxu0 0.0
    %v504 = vand.u32 %v110, 4294901760
    %v505 = vsub.f32 %v110, %v504
    %v506 = vand.u32 %v505, 4294901760
    %507 = vmatmul.mubr.f32.gmra.mrb[0].mxu0 %v506
    %v508 = vpop.f32.mrb[0].mxu0
    %v509 = vadd.f32 %v411, %v508
    %v510 = vpop.f32.mrb[0].mxu0
    %511 = vmatprep.mubr.f32.mxu0 0.0
    %v512 = vand.u32 %v113, 4294901760
    %v513 = vsub.f32 %v113, %v512
    %v514 = vand.u32 %v513, 4294901760
    %515 = vmatmul.mubr.f32.gmra.mrb[0].mxu0 %v514
    %v516 = vpop.f32.mrb[0].mxu0
    %v517 = vadd.f32 %v418, %v516
    %v518 = vpop.f32.mrb[0].mxu0
    %519 = vdwg.mxu0
    %520 = vmatprep.subr.mxu0 0.0
    %v521 = vand.u32 %v81, 4294901760
    %v522 = vsub.f32 %v81, %v521
    %v523 = vand.u32 %v522, 4294901760
    %524 = vmatpush1.msra.mxu0 %v523
    %525 = vmatprep.subr.mxu0 0.0
    %v526 = vand.u32 %v116, 4294901760
    %v527 = vsub.f32 %v116, %v526
    %v528 = vand.u32 %v527, 4294901760
    %529 = vmatpush1.msra.mxu0 %v528
    %530 = vmatprep.subr.mxu0 0.0
    %531 = vmatpush1.msra.mxu0 0.0
    %532 = vmatprep.subr.mxu0 0.0
    %533 = vmatpush1.msra.mxu0 0.0
    %534 = vmatprep.subr.mxu0 0.0
    %535 = vmatpush1.msra.mxu0 0.0
    %536 = vmatprep.subr.mxu0 0.0
    %537 = vmatpush1.msra.mxu0 0.0
    %538 = vmatprep.subr.mxu0 0.0
    %539 = vmatpush1.msra.mxu0 0.0
    %540 = vmatprep.subr.mxu0 0.0
    %541 = vmatpush1.msra.mxu0 0.0
    %542 = vmatprep.subr.mxu0 0.0
    %543 = vmatpush1.msra.mxu0 0.0
    %544 = vmatprep.subr.mxu0 0.0
    %545 = vmatpush1.msra.mxu0 0.0
    %546 = vmatprep.subr.mxu0 0.0
    %547 = vmatpush1.msra.mxu0 0.0
    %548 = vmatprep.subr.mxu0 0.0
    %549 = vmatpush1.msra.mxu0 0.0
    %550 = vmatprep.subr.mxu0 0.0
    %551 = vmatpush1.msra.mxu0 0.0
    %552 = vmatprep.subr.mxu0 0.0
    %553 = vmatpush1.msra.mxu0 0.0
    %554 = vmatprep.subr.mxu0 0.0
    %555 = vmatpush1.msra.mxu0 0.0
    %556 = vmatprep.subr.mxu0 0.0
    %557 = vmatpush1.msra.mxu0 0.0
    %558 = vmatprep.subr.mxu0 0.0
    %559 = vmatpush1.msra.mxu0 0.0
    %560 = vmatprep.subr.mxu0 0.0
    %561 = vmatpush1.msra.mxu0 0.0
    %562 = vmatprep.subr.mxu0 0.0
    %563 = vmatpush1.msra.mxu0 0.0
    %564 = vmatprep.subr.mxu0 0.0
    %565 = vmatpush1.msra.mxu0 0.0
    %566 = vmatprep.subr.mxu0 0.0
    %567 = vmatpush1.msra.mxu0 0.0
    %568 = vmatprep.subr.mxu0 0.0
    %569 = vmatpush1.msra.mxu0 0.0
    %570 = vmatprep.subr.mxu0 0.0
    %571 = vmatpush1.msra.mxu0 0.0
    %572 = vmatprep.subr.mxu0 0.0
    %573 = vmatpush1.msra.mxu0 0.0
    %574 = vmatprep.subr.mxu0 0.0
    %575 = vmatpush1.msra.mxu0 0.0
    %576 = vmatprep.subr.mxu0 0.0
    %577 = vmatpush1.msra.mxu0 0.0
    %578 = vmatprep.subr.mxu0 0.0
    %579 = vmatpush1.msra.mxu0 0.0
    %580 = vmatprep.subr.mxu0 0.0
    %581 = vmatpush1.msra.mxu0 0.0
    %582 = vmatprep.subr.mxu0 0.0
    %583 = vmatpush1.msra.mxu0 0.0
    %584 = vmatprep.subr.mxu0 0.0
    %585 = vmatpush1.msra.mxu0 0.0
    %586 = vmatprep.subr.mxu0 0.0
    %587 = vmatpush1.msra.mxu0 0.0
    %588 = vmatprep.subr.mxu0 0.0
    %589 = vmatpush1.msra.mxu0 0.0
    %590 = vmatprep.mubr.f32.mxu0 0.0
    %v591 = vand.u32 %v104, 4294901760
    %592 = vmatmul.mubr.f32.gmra.mrb[0].mxu0 %v591
    %v593 = vpop.f32.mrb[0].mxu0
    %v594 = vadd.f32 %v493, %v593
    %v595 = vpop.f32.mrb[0].mxu0
    %596 = vmatprep.mubr.f32.mxu0 0.0
    %v597 = vand.u32 %v107, 4294901760
    %598 = vmatmul.mubr.f32.gmra.mrb[0].mxu0 %v597
    %v599 = vpop.f32.mrb[0].mxu0
    %v600 = vadd.f32 %v501, %v599
    %v601 = vpop.f32.mrb[0].mxu0
    %602 = vmatprep.mubr.f32.mxu0 0.0
    %v603 = vand.u32 %v110, 4294901760
    %604 = vmatmul.mubr.f32.gmra.mrb[0].mxu0 %v603
    %v605 = vpop.f32.mrb[0].mxu0
    %v606 = vadd.f32 %v509, %v605
    %v607 = vpop.f32.mrb[0].mxu0
    %608 = vmatprep.mubr.f32.mxu0 0.0
    %v609 = vand.u32 %v113, 4294901760
    %610 = vmatmul.mubr.f32.gmra.mrb[0].mxu0 %v609
    %v611 = vpop.f32.mrb[0].mxu0
    %v612 = vadd.f32 %v517, %v611
    %v613 = vpop.f32.mrb[0].mxu0
    %614 = vdwg.mxu0
    %615 = vmatprep.subr.mxu0 0.0
    %v616 = vand.u32 %v81, 4294901760
    %617 = vmatpush1.msra.mxu0 %v616
    %618 = vmatprep.subr.mxu0 0.0
    %v619 = vand.u32 %v116, 4294901760
    %620 = vmatpush1.msra.mxu0 %v619
    %621 = vmatprep.subr.mxu0 0.0
    %622 = vmatpush1.msra.mxu0 0.0
    %623 = vmatprep.subr.mxu0 0.0
    %624 = vmatpush1.msra.mxu0 0.0
    %625 = vmatprep.subr.mxu0 0.0
    %626 = vmatpush1.msra.mxu0 0.0
    %627 = vmatprep.subr.mxu0 0.0
    %628 = vmatpush1.msra.mxu0 0.0
    %629 = vmatprep.subr.mxu0 0.0
    %630 = vmatpush1.msra.mxu0 0.0
    %631 = vmatprep.subr.mxu0 0.0
    %632 = vmatpush1.msra.mxu0 0.0
    %633 = vmatprep.subr.mxu0 0.0
    %634 = vmatpush1.msra.mxu0 0.0
    %635 = vmatprep.subr.mxu0 0.0
    %636 = vmatpush1.msra.mxu0 0.0
    %637 = vmatprep.subr.mxu0 0.0
    %638 = vmatpush1.msra.mxu0 0.0
    %639 = vmatprep.subr.mxu0 0.0
    %640 = vmatpush1.msra.mxu0 0.0
    %641 = vmatprep.subr.mxu0 0.0
    %642 = vmatpush1.msra.mxu0 0.0
    %643 = vmatprep.subr.mxu0 0.0
    %644 = vmatpush1.msra.mxu0 0.0
    %645 = vmatprep.subr.mxu0 0.0
    %646 = vmatpush1.msra.mxu0 0.0
    %647 = vmatprep.subr.mxu0 0.0
    %648 = vmatpush1.msra.mxu0 0.0
    %649 = vmatprep.subr.mxu0 0.0
    %650 = vmatpush1.msra.mxu0 0.0
    %651 = vmatprep.subr.mxu0 0.0
    %652 = vmatpush1.msra.mxu0 0.0
    %653 = vmatprep.subr.mxu0 0.0
    %654 = vmatpush1.msra.mxu0 0.0
    %655 = vmatprep.subr.mxu0 0.0
    %656 = vmatpush1.msra.mxu0 0.0
    %657 = vmatprep.subr.mxu0 0.0
    %658 = vmatpush1.msra.mxu0 0.0
    %659 = vmatprep.subr.mxu0 0.0
    %660 = vmatpush1.msra.mxu0 0.0
    %661 = vmatprep.subr.mxu0 0.0
    %662 = vmatpush1.msra.mxu0 0.0
    %663 = vmatprep.subr.mxu0 0.0
    %664 = vmatpush1.msra.mxu0 0.0
    %665 = vmatprep.subr.mxu0 0.0
    %666 = vmatpush1.msra.mxu0 0.0
    %667 = vmatprep.subr.mxu0 0.0
    %668 = vmatpush1.msra.mxu0 0.0
    %669 = vmatprep.subr.mxu0 0.0
    %670 = vmatpush1.msra.mxu0 0.0
    %671 = vmatprep.subr.mxu0 0.0
    %672 = vmatpush1.msra.mxu0 0.0
    %673 = vmatprep.subr.mxu0 0.0
    %674 = vmatpush1.msra.mxu0 0.0
    %675 = vmatprep.subr.mxu0 0.0
    %676 = vmatpush1.msra.mxu0 0.0
    %677 = vmatprep.subr.mxu0 0.0
    %678 = vmatpush1.msra.mxu0 0.0
    %679 = vmatprep.subr.mxu0 0.0
    %680 = vmatpush1.msra.mxu0 0.0
    %681 = vmatprep.mubr.f32.mxu0 0.0
    %v682 = vand.u32 %v104, 4294901760
    %683 = vmatmul.mubr.f32.gmra.mrb[0].mxu0 %v682
    %v684 = vpop.f32.mrb[0].mxu0
    %v685 = vadd.f32 %v594, %v684
    %v686 = vpop.f32.mrb[0].mxu0
    %687 = vmatprep.mubr.f32.mxu0 0.0
    %v688 = vand.u32 %v107, 4294901760
    %689 = vmatmul.mubr.f32.gmra.mrb[0].mxu0 %v688
    %v690 = vpop.f32.mrb[0].mxu0
    %v691 = vadd.f32 %v600, %v690
    %v692 = vpop.f32.mrb[0].mxu0
    %693 = vmatprep.mubr.f32.mxu0 0.0
    %v694 = vand.u32 %v110, 4294901760
    %695 = vmatmul.mubr.f32.gmra.mrb[0].mxu0 %v694
    %v696 = vpop.f32.mrb[0].mxu0
    %v697 = vadd.f32 %v606, %v696
    %v698 = vpop.f32.mrb[0].mxu0
    %699 = vmatprep.mubr.f32.mxu0 0.0
    %v700 = vand.u32 %v113, 4294901760
    %701 = vmatmul.mubr.f32.gmra.mrb[0].mxu0 %v700
    %v702 = vpop.f32.mrb[0].mxu0
    %v703 = vadd.f32 %v612, %v702
    %v704 = vpop.f32.mrb[0].mxu0
    %705 = vdwg.mxu0
    %v706 = vmax.f32 %v685, 0.0
    %v707 = vmax.f32 %v691, 0.0
    %v708 = vmax.f32 %v697, 0.0
    %v709 = vmax.f32 %v703, 0.0
    %v710 = vmul.f32 %v706, %v46
    %v711 = vmul.f32 %v707, %v46
    %v712 = vmul.f32 %v708, %v46
    %v713 = vmul.f32 %v709, %v46
    %vm714 = vcmask 261120
    %v716 = vsel %vm714, %v30, 0
    %718 = vmatprep.subr.mxu0 0.0
    %v719 = vand.u32 %v710, 4294901760
    %720 = vmatpush1.msra.mxu0 %v719
    %721 = vmatprep.subr.mxu0 0.0
    %v722 = vand.u32 %v711, 4294901760
    %723 = vmatpush1.msra.mxu0 %v722
    %724 = vmatprep.subr.mxu0 0.0
    %v725 = vand.u32 %v712, 4294901760
    %726 = vmatpush1.msra.mxu0 %v725
    %727 = vmatprep.subr.mxu0 0.0
    %v728 = vand.u32 %v713, 4294901760
    %729 = vmatpush1.msra.mxu0 %v728
    %730 = vmatprep.subr.mxu0 0.0
    %731 = vmatpush1.msra.mxu0 0.0
    %732 = vmatprep.subr.mxu0 0.0
    %733 = vmatpush1.msra.mxu0 0.0
    %734 = vmatprep.subr.mxu0 0.0
    %735 = vmatpush1.msra.mxu0 0.0
    %736 = vmatprep.subr.mxu0 0.0
    %737 = vmatpush1.msra.mxu0 0.0
    %738 = vmatprep.subr.mxu0 0.0
    %739 = vmatpush1.msra.mxu0 0.0
    %740 = vmatprep.subr.mxu0 0.0
    %741 = vmatpush1.msra.mxu0 0.0
    %742 = vmatprep.subr.mxu0 0.0
    %743 = vmatpush1.msra.mxu0 0.0
    %744 = vmatprep.subr.mxu0 0.0
    %745 = vmatpush1.msra.mxu0 0.0
    %746 = vmatprep.subr.mxu0 0.0
    %747 = vmatpush1.msra.mxu0 0.0
    %748 = vmatprep.subr.mxu0 0.0
    %749 = vmatpush1.msra.mxu0 0.0
    %750 = vmatprep.subr.mxu0 0.0
    %751 = vmatpush1.msra.mxu0 0.0
    %752 = vmatprep.subr.mxu0 0.0
    %753 = vmatpush1.msra.mxu0 0.0
    %754 = vmatprep.subr.mxu0 0.0
    %755 = vmatpush1.msra.mxu0 0.0
    %756 = vmatprep.subr.mxu0 0.0
    %757 = vmatpush1.msra.mxu0 0.0
    %758 = vmatprep.subr.mxu0 0.0
    %759 = vmatpush1.msra.mxu0 0.0
    %760 = vmatprep.subr.mxu0 0.0
    %761 = vmatpush1.msra.mxu0 0.0
    %762 = vmatprep.subr.mxu0 0.0
    %763 = vmatpush1.msra.mxu0 0.0
    %764 = vmatprep.subr.mxu0 0.0
    %765 = vmatpush1.msra.mxu0 0.0
    %766 = vmatprep.subr.mxu0 0.0
    %767 = vmatpush1.msra.mxu0 0.0
    %768 = vmatprep.subr.mxu0 0.0
    %769 = vmatpush1.msra.mxu0 0.0
    %770 = vmatprep.subr.mxu0 0.0
    %771 = vmatpush1.msra.mxu0 0.0
    %772 = vmatprep.subr.mxu0 0.0
    %773 = vmatpush1.msra.mxu0 0.0
    %774 = vmatprep.subr.mxu0 0.0
    %775 = vmatpush1.msra.mxu0 0.0
    %776 = vmatprep.subr.mxu0 0.0
    %777 = vmatpush1.msra.mxu0 0.0
    %778 = vmatprep.subr.mxu0 0.0
    %779 = vmatpush1.msra.mxu0 0.0
    %780 = vmatprep.subr.mxu0 0.0
    %781 = vmatpush1.msra.mxu0 0.0
    %782 = vmatprep.subr.mxu0 0.0
    %783 = vmatpush1.msra.mxu0 0.0
    %784 = vmatprep.subr.mxu0 0.0
    %785 = vmatpush1.msra.mxu0 0.0
    %786 = vmatprep.mubr.f32.mxu0 0.0
    %v787 = vand.u32 %v716, 4294901760
    %v788 = vsub.f32 %v716, %v787
    %v789 = vand.u32 %v788, 4294901760
    %v790 = vsub.f32 %v788, %v789
    %v791 = vand.u32 %v790, 4294901760
    %792 = vmatmul.mubr.f32.gmra.mrb[0].mxu0 %v791
    %v793 = vpop.f32.mrb[0].mxu0
    %v794 = vadd.f32 0.0, %v793
    %v795 = vpop.f32.mrb[0].mxu0
    %796 = vdwg.mxu0
    %797 = vmatprep.subr.mxu0 0.0
    %v798 = vand.u32 %v710, 4294901760
    %v799 = vsub.f32 %v710, %v798
    %v800 = vand.u32 %v799, 4294901760
    %v801 = vsub.f32 %v799, %v800
    %v802 = vand.u32 %v801, 4294901760
    %803 = vmatpush1.msra.mxu0 %v802
    %804 = vmatprep.subr.mxu0 0.0
    %v805 = vand.u32 %v711, 4294901760
    %v806 = vsub.f32 %v711, %v805
    %v807 = vand.u32 %v806, 4294901760
    %v808 = vsub.f32 %v806, %v807
    %v809 = vand.u32 %v808, 4294901760
    %810 = vmatpush1.msra.mxu0 %v809
    %811 = vmatprep.subr.mxu0 0.0
    %v812 = vand.u32 %v712, 4294901760
    %v813 = vsub.f32 %v712, %v812
    %v814 = vand.u32 %v813, 4294901760
    %v815 = vsub.f32 %v813, %v814
    %v816 = vand.u32 %v815, 4294901760
    %817 = vmatpush1.msra.mxu0 %v816
    %818 = vmatprep.subr.mxu0 0.0
    %v819 = vand.u32 %v713, 4294901760
    %v820 = vsub.f32 %v713, %v819
    %v821 = vand.u32 %v820, 4294901760
    %v822 = vsub.f32 %v820, %v821
    %v823 = vand.u32 %v822, 4294901760
    %824 = vmatpush1.msra.mxu0 %v823
    %825 = vmatprep.subr.mxu0 0.0
    %826 = vmatpush1.msra.mxu0 0.0
    %827 = vmatprep.subr.mxu0 0.0
    %828 = vmatpush1.msra.mxu0 0.0
    %829 = vmatprep.subr.mxu0 0.0
    %830 = vmatpush1.msra.mxu0 0.0
    %831 = vmatprep.subr.mxu0 0.0
    %832 = vmatpush1.msra.mxu0 0.0
    %833 = vmatprep.subr.mxu0 0.0
    %834 = vmatpush1.msra.mxu0 0.0
    %835 = vmatprep.subr.mxu0 0.0
    %836 = vmatpush1.msra.mxu0 0.0
    %837 = vmatprep.subr.mxu0 0.0
    %838 = vmatpush1.msra.mxu0 0.0
    %839 = vmatprep.subr.mxu0 0.0
    %840 = vmatpush1.msra.mxu0 0.0
    %841 = vmatprep.subr.mxu0 0.0
    %842 = vmatpush1.msra.mxu0 0.0
    %843 = vmatprep.subr.mxu0 0.0
    %844 = vmatpush1.msra.mxu0 0.0
    %845 = vmatprep.subr.mxu0 0.0
    %846 = vmatpush1.msra.mxu0 0.0
    %847 = vmatprep.subr.mxu0 0.0
    %848 = vmatpush1.msra.mxu0 0.0
    %849 = vmatprep.subr.mxu0 0.0
    %850 = vmatpush1.msra.mxu0 0.0
    %851 = vmatprep.subr.mxu0 0.0
    %852 = vmatpush1.msra.mxu0 0.0
    %853 = vmatprep.subr.mxu0 0.0
    %854 = vmatpush1.msra.mxu0 0.0
    %855 = vmatprep.subr.mxu0 0.0
    %856 = vmatpush1.msra.mxu0 0.0
    %857 = vmatprep.subr.mxu0 0.0
    %858 = vmatpush1.msra.mxu0 0.0
    %859 = vmatprep.subr.mxu0 0.0
    %860 = vmatpush1.msra.mxu0 0.0
    %861 = vmatprep.subr.mxu0 0.0
    %862 = vmatpush1.msra.mxu0 0.0
    %863 = vmatprep.subr.mxu0 0.0
    %864 = vmatpush1.msra.mxu0 0.0
    %865 = vmatprep.subr.mxu0 0.0
    %866 = vmatpush1.msra.mxu0 0.0
    %867 = vmatprep.subr.mxu0 0.0
    %868 = vmatpush1.msra.mxu0 0.0
    %869 = vmatprep.subr.mxu0 0.0
    %870 = vmatpush1.msra.mxu0 0.0
    %871 = vmatprep.subr.mxu0 0.0
    %872 = vmatpush1.msra.mxu0 0.0
    %873 = vmatprep.subr.mxu0 0.0
    %874 = vmatpush1.msra.mxu0 0.0
    %875 = vmatprep.subr.mxu0 0.0
    %876 = vmatpush1.msra.mxu0 0.0
    %877 = vmatprep.subr.mxu0 0.0
    %878 = vmatpush1.msra.mxu0 0.0
    %879 = vmatprep.subr.mxu0 0.0
    %880 = vmatpush1.msra.mxu0 0.0
    %881 = vmatprep.mubr.f32.mxu0 0.0
    %v882 = vand.u32 %v716, 4294901760
    %883 = vmatmul.mubr.f32.gmra.mrb[0].mxu0 %v882
    %v884 = vpop.f32.mrb[0].mxu0
    %v885 = vadd.f32 %v794, %v884
    %v886 = vpop.f32.mrb[0].mxu0
    %887 = vdwg.mxu0
    %888 = vmatprep.subr.mxu0 0.0
    %v889 = vand.u32 %v710, 4294901760
    %v890 = vsub.f32 %v710, %v889
    %891 = vmatpush1.msra.mxu0 %v890
    %892 = vmatprep.subr.mxu0 0.0
    %v893 = vand.u32 %v711, 4294901760
    %v894 = vsub.f32 %v711, %v893
    %895 = vmatpush1.msra.mxu0 %v894
    %896 = vmatprep.subr.mxu0 0.0
    %v897 = vand.u32 %v712, 4294901760
    %v898 = vsub.f32 %v712, %v897
    %899 = vmatpush1.msra.mxu0 %v898
    %900 = vmatprep.subr.mxu0 0.0
    %v901 = vand.u32 %v713, 4294901760
    %v902 = vsub.f32 %v713, %v901
    %903 = vmatpush1.msra.mxu0 %v902
    %904 = vmatprep.subr.mxu0 0.0
    %905 = vmatpush1.msra.mxu0 0.0
    %906 = vmatprep.subr.mxu0 0.0
    %907 = vmatpush1.msra.mxu0 0.0
    %908 = vmatprep.subr.mxu0 0.0
    %909 = vmatpush1.msra.mxu0 0.0
    %910 = vmatprep.subr.mxu0 0.0
    %911 = vmatpush1.msra.mxu0 0.0
    %912 = vmatprep.subr.mxu0 0.0
    %913 = vmatpush1.msra.mxu0 0.0
    %914 = vmatprep.subr.mxu0 0.0
    %915 = vmatpush1.msra.mxu0 0.0
    %916 = vmatprep.subr.mxu0 0.0
    %917 = vmatpush1.msra.mxu0 0.0
    %918 = vmatprep.subr.mxu0 0.0
    %919 = vmatpush1.msra.mxu0 0.0
    %920 = vmatprep.subr.mxu0 0.0
    %921 = vmatpush1.msra.mxu0 0.0
    %922 = vmatprep.subr.mxu0 0.0
    %923 = vmatpush1.msra.mxu0 0.0
    %924 = vmatprep.subr.mxu0 0.0
    %925 = vmatpush1.msra.mxu0 0.0
    %926 = vmatprep.subr.mxu0 0.0
    %927 = vmatpush1.msra.mxu0 0.0
    %928 = vmatprep.subr.mxu0 0.0
    %929 = vmatpush1.msra.mxu0 0.0
    %930 = vmatprep.subr.mxu0 0.0
    %931 = vmatpush1.msra.mxu0 0.0
    %932 = vmatprep.subr.mxu0 0.0
    %933 = vmatpush1.msra.mxu0 0.0
    %934 = vmatprep.subr.mxu0 0.0
    %935 = vmatpush1.msra.mxu0 0.0
    %936 = vmatprep.subr.mxu0 0.0
    %937 = vmatpush1.msra.mxu0 0.0
    %938 = vmatprep.subr.mxu0 0.0
    %939 = vmatpush1.msra.mxu0 0.0
    %940 = vmatprep.subr.mxu0 0.0
    %941 = vmatpush1.msra.mxu0 0.0
    %942 = vmatprep.subr.mxu0 0.0
    %943 = vmatpush1.msra.mxu0 0.0
    %944 = vmatprep.subr.mxu0 0.0
    %945 = vmatpush1.msra.mxu0 0.0
    %946 = vmatprep.subr.mxu0 0.0
    %947 = vmatpush1.msra.mxu0 0.0
    %948 = vmatprep.subr.mxu0 0.0
    %949 = vmatpush1.msra.mxu0 0.0
    %950 = vmatprep.subr.mxu0 0.0
    %951 = vmatpush1.msra.mxu0 0.0
    %952 = vmatprep.subr.mxu0 0.0
    %953 = vmatpush1.msra.mxu0 0.0
    %954 = vmatprep.subr.mxu0 0.0
    %955 = vmatpush1.msra.mxu0 0.0
    %956 = vmatprep.subr.mxu0 0.0
    %957 = vmatpush1.msra.mxu0 0.0
    %958 = vmatprep.subr.mxu0 0.0
    %959 = vmatpush1.msra.mxu0 0.0
    %960 = vmatprep.mubr.f32.mxu0 0.0
    %v961 = vand.u32 %v716, 4294901760
    %v962 = vsub.f32 %v716, %v961
    %963 = vmatmul.mubr.f32.gmra.mrb[0].mxu0 %v962
    %v964 = vpop.f32.mrb[0].mxu0
    %v965 = vadd.f32 %v885, %v964
    %v966 = vpop.f32.mrb[0].mxu0
    %967 = vdwg.mxu0
    %968 = vmatprep.subr.mxu0 0.0
    %v969 = vand.u32 %v710, 4294901760
    %970 = vmatpush1.msra.mxu0 %v969
    %971 = vmatprep.subr.mxu0 0.0
    %v972 = vand.u32 %v711, 4294901760
    %973 = vmatpush1.msra.mxu0 %v972
    %974 = vmatprep.subr.mxu0 0.0
    %v975 = vand.u32 %v712, 4294901760
    %976 = vmatpush1.msra.mxu0 %v975
    %977 = vmatprep.subr.mxu0 0.0
    %v978 = vand.u32 %v713, 4294901760
    %979 = vmatpush1.msra.mxu0 %v978
    %980 = vmatprep.subr.mxu0 0.0
    %981 = vmatpush1.msra.mxu0 0.0
    %982 = vmatprep.subr.mxu0 0.0
    %983 = vmatpush1.msra.mxu0 0.0
    %984 = vmatprep.subr.mxu0 0.0
    %985 = vmatpush1.msra.mxu0 0.0
    %986 = vmatprep.subr.mxu0 0.0
    %987 = vmatpush1.msra.mxu0 0.0
    %988 = vmatprep.subr.mxu0 0.0
    %989 = vmatpush1.msra.mxu0 0.0
    %990 = vmatprep.subr.mxu0 0.0
    %991 = vmatpush1.msra.mxu0 0.0
    %992 = vmatprep.subr.mxu0 0.0
    %993 = vmatpush1.msra.mxu0 0.0
    %994 = vmatprep.subr.mxu0 0.0
    %995 = vmatpush1.msra.mxu0 0.0
    %996 = vmatprep.subr.mxu0 0.0
    %997 = vmatpush1.msra.mxu0 0.0
    %998 = vmatprep.subr.mxu0 0.0
    %999 = vmatpush1.msra.mxu0 0.0
    %1000 = vmatprep.subr.mxu0 0.0
    %1001 = vmatpush1.msra.mxu0 0.0
    %1002 = vmatprep.subr.mxu0 0.0
    %1003 = vmatpush1.msra.mxu0 0.0
    %1004 = vmatprep.subr.mxu0 0.0
    %1005 = vmatpush1.msra.mxu0 0.0
    %1006 = vmatprep.subr.mxu0 0.0
    %1007 = vmatpush1.msra.mxu0 0.0
    %1008 = vmatprep.subr.mxu0 0.0
    %1009 = vmatpush1.msra.mxu0 0.0
    %1010 = vmatprep.subr.mxu0 0.0
    %1011 = vmatpush1.msra.mxu0 0.0
    %1012 = vmatprep.subr.mxu0 0.0
    %1013 = vmatpush1.msra.mxu0 0.0
    %1014 = vmatprep.subr.mxu0 0.0
    %1015 = vmatpush1.msra.mxu0 0.0
    %1016 = vmatprep.subr.mxu0 0.0
    %1017 = vmatpush1.msra.mxu0 0.0
    %1018 = vmatprep.subr.mxu0 0.0
    %1019 = vmatpush1.msra.mxu0 0.0
    %1020 = vmatprep.subr.mxu0 0.0
    %1021 = vmatpush1.msra.mxu0 0.0
    %1022 = vmatprep.subr.mxu0 0.0
    %1023 = vmatpush1.msra.mxu0 0.0
    %1024 = vmatprep.subr.mxu0 0.0
    %1025 = vmatpush1.msra.mxu0 0.0
    %1026 = vmatprep.subr.mxu0 0.0
    %1027 = vmatpush1.msra.mxu0 0.0
    %1028 = vmatprep.subr.mxu0 0.0
    %1029 = vmatpush1.msra.mxu0 0.0
    %1030 = vmatprep.subr.mxu0 0.0
    %1031 = vmatpush1.msra.mxu0 0.0
    %1032 = vmatprep.subr.mxu0 0.0
    %1033 = vmatpush1.msra.mxu0 0.0
    %1034 = vmatprep.subr.mxu0 0.0
    %1035 = vmatpush1.msra.mxu0 0.0
    %1036 = vmatprep.mubr.f32.mxu0 0.0
    %v1037 = vand.u32 %v716, 4294901760
    %v1038 = vsub.f32 %v716, %v1037
    %v1039 = vand.u32 %v1038, 4294901760
    %1040 = vmatmul.mubr.f32.gmra.mrb[0].mxu0 %v1039
    %v1041 = vpop.f32.mrb[0].mxu0
    %v1042 = vadd.f32 %v965, %v1041
    %v1043 = vpop.f32.mrb[0].mxu0
    %1044 = vdwg.mxu0
    %1045 = vmatprep.subr.mxu0 0.0
    %v1046 = vand.u32 %v710, 4294901760
    %v1047 = vsub.f32 %v710, %v1046
    %v1048 = vand.u32 %v1047, 4294901760
    %1049 = vmatpush1.msra.mxu0 %v1048
    %1050 = vmatprep.subr.mxu0 0.0
    %v1051 = vand.u32 %v711, 4294901760
    %v1052 = vsub.f32 %v711, %v1051
    %v1053 = vand.u32 %v1052, 4294901760
    %1054 = vmatpush1.msra.mxu0 %v1053
    %1055 = vmatprep.subr.mxu0 0.0
    %v1056 = vand.u32 %v712, 4294901760
    %v1057 = vsub.f32 %v712, %v1056
    %v1058 = vand.u32 %v1057, 4294901760
    %1059 = vmatpush1.msra.mxu0 %v1058
    %1060 = vmatprep.subr.mxu0 0.0
    %v1061 = vand.u32 %v713, 4294901760
    %v1062 = vsub.f32 %v713, %v1061
    %v1063 = vand.u32 %v1062, 4294901760
    %1064 = vmatpush1.msra.mxu0 %v1063
    %1065 = vmatprep.subr.mxu0 0.0
    %1066 = vmatpush1.msra.mxu0 0.0
    %1067 = vmatprep.subr.mxu0 0.0
    %1068 = vmatpush1.msra.mxu0 0.0
    %1069 = vmatprep.subr.mxu0 0.0
    %1070 = vmatpush1.msra.mxu0 0.0
    %1071 = vmatprep.subr.mxu0 0.0
    %1072 = vmatpush1.msra.mxu0 0.0
    %1073 = vmatprep.subr.mxu0 0.0
    %1074 = vmatpush1.msra.mxu0 0.0
    %1075 = vmatprep.subr.mxu0 0.0
    %1076 = vmatpush1.msra.mxu0 0.0
    %1077 = vmatprep.subr.mxu0 0.0
    %1078 = vmatpush1.msra.mxu0 0.0
    %1079 = vmatprep.subr.mxu0 0.0
    %1080 = vmatpush1.msra.mxu0 0.0
    %1081 = vmatprep.subr.mxu0 0.0
    %1082 = vmatpush1.msra.mxu0 0.0
    %1083 = vmatprep.subr.mxu0 0.0
    %1084 = vmatpush1.msra.mxu0 0.0
    %1085 = vmatprep.subr.mxu0 0.0
    %1086 = vmatpush1.msra.mxu0 0.0
    %1087 = vmatprep.subr.mxu0 0.0
    %1088 = vmatpush1.msra.mxu0 0.0
    %1089 = vmatprep.subr.mxu0 0.0
    %1090 = vmatpush1.msra.mxu0 0.0
    %1091 = vmatprep.subr.mxu0 0.0
    %1092 = vmatpush1.msra.mxu0 0.0
    %1093 = vmatprep.subr.mxu0 0.0
    %1094 = vmatpush1.msra.mxu0 0.0
    %1095 = vmatprep.subr.mxu0 0.0
    %1096 = vmatpush1.msra.mxu0 0.0
    %1097 = vmatprep.subr.mxu0 0.0
    %1098 = vmatpush1.msra.mxu0 0.0
    %1099 = vmatprep.subr.mxu0 0.0
    %1100 = vmatpush1.msra.mxu0 0.0
    %1101 = vmatprep.subr.mxu0 0.0
    %1102 = vmatpush1.msra.mxu0 0.0
    %1103 = vmatprep.subr.mxu0 0.0
    %1104 = vmatpush1.msra.mxu0 0.0
    %1105 = vmatprep.subr.mxu0 0.0
    %1106 = vmatpush1.msra.mxu0 0.0
    %1107 = vmatprep.subr.mxu0 0.0
    %1108 = vmatpush1.msra.mxu0 0.0
    %1109 = vmatprep.subr.mxu0 0.0
    %1110 = vmatpush1.msra.mxu0 0.0
    %1111 = vmatprep.subr.mxu0 0.0
    %1112 = vmatpush1.msra.mxu0 0.0
    %1113 = vmatprep.subr.mxu0 0.0
    %1114 = vmatpush1.msra.mxu0 0.0
    %1115 = vmatprep.subr.mxu0 0.0
    %1116 = vmatpush1.msra.mxu0 0.0
    %1117 = vmatprep.subr.mxu0 0.0
    %1118 = vmatpush1.msra.mxu0 0.0
    %1119 = vmatprep.subr.mxu0 0.0
    %1120 = vmatpush1.msra.mxu0 0.0
    %1121 = vmatprep.mubr.f32.mxu0 0.0
    %v1122 = vand.u32 %v716, 4294901760
    %1123 = vmatmul.mubr.f32.gmra.mrb[0].mxu0 %v1122
    %v1124 = vpop.f32.mrb[0].mxu0
    %v1125 = vadd.f32 %v1042, %v1124
    %v1126 = vpop.f32.mrb[0].mxu0
    %1127 = vdwg.mxu0
    %1128 = vmatprep.subr.mxu0 0.0
    %v1129 = vand.u32 %v710, 4294901760
    %1130 = vmatpush1.msra.mxu0 %v1129
    %1131 = vmatprep.subr.mxu0 0.0
    %v1132 = vand.u32 %v711, 4294901760
    %1133 = vmatpush1.msra.mxu0 %v1132
    %1134 = vmatprep.subr.mxu0 0.0
    %v1135 = vand.u32 %v712, 4294901760
    %1136 = vmatpush1.msra.mxu0 %v1135
    %1137 = vmatprep.subr.mxu0 0.0
    %v1138 = vand.u32 %v713, 4294901760
    %1139 = vmatpush1.msra.mxu0 %v1138
    %1140 = vmatprep.subr.mxu0 0.0
    %1141 = vmatpush1.msra.mxu0 0.0
    %1142 = vmatprep.subr.mxu0 0.0
    %1143 = vmatpush1.msra.mxu0 0.0
    %1144 = vmatprep.subr.mxu0 0.0
    %1145 = vmatpush1.msra.mxu0 0.0
    %1146 = vmatprep.subr.mxu0 0.0
    %1147 = vmatpush1.msra.mxu0 0.0
    %1148 = vmatprep.subr.mxu0 0.0
    %1149 = vmatpush1.msra.mxu0 0.0
    %1150 = vmatprep.subr.mxu0 0.0
    %1151 = vmatpush1.msra.mxu0 0.0
    %1152 = vmatprep.subr.mxu0 0.0
    %1153 = vmatpush1.msra.mxu0 0.0
    %1154 = vmatprep.subr.mxu0 0.0
    %1155 = vmatpush1.msra.mxu0 0.0
    %1156 = vmatprep.subr.mxu0 0.0
    %1157 = vmatpush1.msra.mxu0 0.0
    %1158 = vmatprep.subr.mxu0 0.0
    %1159 = vmatpush1.msra.mxu0 0.0
    %1160 = vmatprep.subr.mxu0 0.0
    %1161 = vmatpush1.msra.mxu0 0.0
    %1162 = vmatprep.subr.mxu0 0.0
    %1163 = vmatpush1.msra.mxu0 0.0
    %1164 = vmatprep.subr.mxu0 0.0
    %1165 = vmatpush1.msra.mxu0 0.0
    %1166 = vmatprep.subr.mxu0 0.0
    %1167 = vmatpush1.msra.mxu0 0.0
    %1168 = vmatprep.subr.mxu0 0.0
    %1169 = vmatpush1.msra.mxu0 0.0
    %1170 = vmatprep.subr.mxu0 0.0
    %1171 = vmatpush1.msra.mxu0 0.0
    %1172 = vmatprep.subr.mxu0 0.0
    %1173 = vmatpush1.msra.mxu0 0.0
    %1174 = vmatprep.subr.mxu0 0.0
    %1175 = vmatpush1.msra.mxu0 0.0
    %1176 = vmatprep.subr.mxu0 0.0
    %1177 = vmatpush1.msra.mxu0 0.0
    %1178 = vmatprep.subr.mxu0 0.0
    %1179 = vmatpush1.msra.mxu0 0.0
    %1180 = vmatprep.subr.mxu0 0.0
    %1181 = vmatpush1.msra.mxu0 0.0
    %1182 = vmatprep.subr.mxu0 0.0
    %1183 = vmatpush1.msra.mxu0 0.0
    %1184 = vmatprep.subr.mxu0 0.0
    %1185 = vmatpush1.msra.mxu0 0.0
    %1186 = vmatprep.subr.mxu0 0.0
    %1187 = vmatpush1.msra.mxu0 0.0
    %1188 = vmatprep.subr.mxu0 0.0
    %1189 = vmatpush1.msra.mxu0 0.0
    %1190 = vmatprep.subr.mxu0 0.0
    %1191 = vmatpush1.msra.mxu0 0.0
    %1192 = vmatprep.subr.mxu0 0.0
    %1193 = vmatpush1.msra.mxu0 0.0
    %1194 = vmatprep.subr.mxu0 0.0
    %1195 = vmatpush1.msra.mxu0 0.0
    %1196 = vmatprep.mubr.f32.mxu0 0.0
    %v1197 = vand.u32 %v716, 4294901760
    %1198 = vmatmul.mubr.f32.gmra.mrb[0].mxu0 %v1197
    %v1199 = vpop.f32.mrb[0].mxu0
    %v1200 = vadd.f32 %v1125, %v1199
    %v1201 = vpop.f32.mrb[0].mxu0
    %1202 = vdwg.mxu0
    %1203 = vrot.lane.b32.xlu0 %v1200, 16
    %v1204 = vpop.permute.xlu0 %1203
    %v1205 = vsel %vm49, %v1204, %v1200
    %1206 = vrot.lane.b32.xlu0 %v1205, 16
    %v1207 = vpop.permute.xlu0 %1206
    %v1208 = vsel %vm49, %v1207, %v1200
    %1210 = vrot.lane.b32.xlu0 %v1208, 113
    %v1211 = vpop.permute.xlu0 %1210
    %v1213 = vsel %vm61, %v1211, 0.0
    %v1214 = vadd.f32 %v1213, 0.0
    %v1216 = vsel %vm714, %v32, 0
    %1218 = vmatprep.subr.mxu0 0.0
    %v1219 = vand.u32 %v710, 4294901760
    %1220 = vmatpush1.msra.mxu0 %v1219
    %1221 = vmatprep.subr.mxu0 0.0
    %v1222 = vand.u32 %v711, 4294901760
    %1223 = vmatpush1.msra.mxu0 %v1222
    %1224 = vmatprep.subr.mxu0 0.0
    %v1225 = vand.u32 %v712, 4294901760
    %1226 = vmatpush1.msra.mxu0 %v1225
    %1227 = vmatprep.subr.mxu0 0.0
    %v1228 = vand.u32 %v713, 4294901760
    %1229 = vmatpush1.msra.mxu0 %v1228
    %1230 = vmatprep.subr.mxu0 0.0
    %1231 = vmatpush1.msra.mxu0 0.0
    %1232 = vmatprep.subr.mxu0 0.0
    %1233 = vmatpush1.msra.mxu0 0.0
    %1234 = vmatprep.subr.mxu0 0.0
    %1235 = vmatpush1.msra.mxu0 0.0
    %1236 = vmatprep.subr.mxu0 0.0
    %1237 = vmatpush1.msra.mxu0 0.0
    %1238 = vmatprep.subr.mxu0 0.0
    %1239 = vmatpush1.msra.mxu0 0.0
    %1240 = vmatprep.subr.mxu0 0.0
    %1241 = vmatpush1.msra.mxu0 0.0
    %1242 = vmatprep.subr.mxu0 0.0
    %1243 = vmatpush1.msra.mxu0 0.0
    %1244 = vmatprep.subr.mxu0 0.0
    %1245 = vmatpush1.msra.mxu0 0.0
    %1246 = vmatprep.subr.mxu0 0.0
    %1247 = vmatpush1.msra.mxu0 0.0
    %1248 = vmatprep.subr.mxu0 0.0
    %1249 = vmatpush1.msra.mxu0 0.0
    %1250 = vmatprep.subr.mxu0 0.0
    %1251 = vmatpush1.msra.mxu0 0.0
    %1252 = vmatprep.subr.mxu0 0.0
    %1253 = vmatpush1.msra.mxu0 0.0
    %1254 = vmatprep.subr.mxu0 0.0
    %1255 = vmatpush1.msra.mxu0 0.0
    %1256 = vmatprep.subr.mxu0 0.0
    %1257 = vmatpush1.msra.mxu0 0.0
    %1258 = vmatprep.subr.mxu0 0.0
    %1259 = vmatpush1.msra.mxu0 0.0
    %1260 = vmatprep.subr.mxu0 0.0
    %1261 = vmatpush1.msra.mxu0 0.0
    %1262 = vmatprep.subr.mxu0 0.0
    %1263 = vmatpush1.msra.mxu0 0.0
    %1264 = vmatprep.subr.mxu0 0.0
    %1265 = vmatpush1.msra.mxu0 0.0
    %1266 = vmatprep.subr.mxu0 0.0
    %1267 = vmatpush1.msra.mxu0 0.0
    %1268 = vmatprep.subr.mxu0 0.0
    %1269 = vmatpush1.msra.mxu0 0.0
    %1270 = vmatprep.subr.mxu0 0.0
    %1271 = vmatpush1.msra.mxu0 0.0
    %1272 = vmatprep.subr.mxu0 0.0
    %1273 = vmatpush1.msra.mxu0 0.0
    %1274 = vmatprep.subr.mxu0 0.0
    %1275 = vmatpush1.msra.mxu0 0.0
    %1276 = vmatprep.subr.mxu0 0.0
    %1277 = vmatpush1.msra.mxu0 0.0
    %1278 = vmatprep.subr.mxu0 0.0
    %1279 = vmatpush1.msra.mxu0 0.0
    %1280 = vmatprep.subr.mxu0 0.0
    %1281 = vmatpush1.msra.mxu0 0.0
    %1282 = vmatprep.subr.mxu0 0.0
    %1283 = vmatpush1.msra.mxu0 0.0
    %1284 = vmatprep.subr.mxu0 0.0
    %1285 = vmatpush1.msra.mxu0 0.0
    %1286 = vmatprep.mubr.f32.mxu0 0.0
    %v1287 = vand.u32 %v1216, 4294901760
    %v1288 = vsub.f32 %v1216, %v1287
    %v1289 = vand.u32 %v1288, 4294901760
    %v1290 = vsub.f32 %v1288, %v1289
    %v1291 = vand.u32 %v1290, 4294901760
    %1292 = vmatmul.mubr.f32.gmra.mrb[0].mxu0 %v1291
    %v1293 = vpop.f32.mrb[0].mxu0
    %v1294 = vadd.f32 0.0, %v1293
    %v1295 = vpop.f32.mrb[0].mxu0
    %1296 = vdwg.mxu0
    %1297 = vmatprep.subr.mxu0 0.0
    %v1298 = vand.u32 %v710, 4294901760
    %v1299 = vsub.f32 %v710, %v1298
    %v1300 = vand.u32 %v1299, 4294901760
    %v1301 = vsub.f32 %v1299, %v1300
    %v1302 = vand.u32 %v1301, 4294901760
    %1303 = vmatpush1.msra.mxu0 %v1302
    %1304 = vmatprep.subr.mxu0 0.0
    %v1305 = vand.u32 %v711, 4294901760
    %v1306 = vsub.f32 %v711, %v1305
    %v1307 = vand.u32 %v1306, 4294901760
    %v1308 = vsub.f32 %v1306, %v1307
    %v1309 = vand.u32 %v1308, 4294901760
    %1310 = vmatpush1.msra.mxu0 %v1309
    %1311 = vmatprep.subr.mxu0 0.0
    %v1312 = vand.u32 %v712, 4294901760
    %v1313 = vsub.f32 %v712, %v1312
    %v1314 = vand.u32 %v1313, 4294901760
    %v1315 = vsub.f32 %v1313, %v1314
    %v1316 = vand.u32 %v1315, 4294901760
    %1317 = vmatpush1.msra.mxu0 %v1316
    %1318 = vmatprep.subr.mxu0 0.0
    %v1319 = vand.u32 %v713, 4294901760
    %v1320 = vsub.f32 %v713, %v1319
    %v1321 = vand.u32 %v1320, 4294901760
    %v1322 = vsub.f32 %v1320, %v1321
    %v1323 = vand.u32 %v1322, 4294901760
    %1324 = vmatpush1.msra.mxu0 %v1323
    %1325 = vmatprep.subr.mxu0 0.0
    %1326 = vmatpush1.msra.mxu0 0.0
    %1327 = vmatprep.subr.mxu0 0.0
    %1328 = vmatpush1.msra.mxu0 0.0
    %1329 = vmatprep.subr.mxu0 0.0
    %1330 = vmatpush1.msra.mxu0 0.0
    %1331 = vmatprep.subr.mxu0 0.0
    %1332 = vmatpush1.msra.mxu0 0.0
    %1333 = vmatprep.subr.mxu0 0.0
    %1334 = vmatpush1.msra.mxu0 0.0
    %1335 = vmatprep.subr.mxu0 0.0
    %1336 = vmatpush1.msra.mxu0 0.0
    %1337 = vmatprep.subr.mxu0 0.0
    %1338 = vmatpush1.msra.mxu0 0.0
    %1339 = vmatprep.subr.mxu0 0.0
    %1340 = vmatpush1.msra.mxu0 0.0
    %1341 = vmatprep.subr.mxu0 0.0
    %1342 = vmatpush1.msra.mxu0 0.0
    %1343 = vmatprep.subr.mxu0 0.0
    %1344 = vmatpush1.msra.mxu0 0.0
    %1345 = vmatprep.subr.mxu0 0.0
    %1346 = vmatpush1.msra.mxu0 0.0
    %1347 = vmatprep.subr.mxu0 0.0
    %1348 = vmatpush1.msra.mxu0 0.0
    %1349 = vmatprep.subr.mxu0 0.0
    %1350 = vmatpush1.msra.mxu0 0.0
    %1351 = vmatprep.subr.mxu0 0.0
    %1352 = vmatpush1.msra.mxu0 0.0
    %1353 = vmatprep.subr.mxu0 0.0
    %1354 = vmatpush1.msra.mxu0 0.0
    %1355 = vmatprep.subr.mxu0 0.0
    %1356 = vmatpush1.msra.mxu0 0.0
    %1357 = vmatprep.subr.mxu0 0.0
    %1358 = vmatpush1.msra.mxu0 0.0
    %1359 = vmatprep.subr.mxu0 0.0
    %1360 = vmatpush1.msra.mxu0 0.0
    %1361 = vmatprep.subr.mxu0 0.0
    %1362 = vmatpush1.msra.mxu0 0.0
    %1363 = vmatprep.subr.mxu0 0.0
    %1364 = vmatpush1.msra.mxu0 0.0
    %1365 = vmatprep.subr.mxu0 0.0
    %1366 = vmatpush1.msra.mxu0 0.0
    %1367 = vmatprep.subr.mxu0 0.0
    %1368 = vmatpush1.msra.mxu0 0.0
    %1369 = vmatprep.subr.mxu0 0.0
    %1370 = vmatpush1.msra.mxu0 0.0
    %1371 = vmatprep.subr.mxu0 0.0
    %1372 = vmatpush1.msra.mxu0 0.0
    %1373 = vmatprep.subr.mxu0 0.0
    %1374 = vmatpush1.msra.mxu0 0.0
    %1375 = vmatprep.subr.mxu0 0.0
    %1376 = vmatpush1.msra.mxu0 0.0
    %1377 = vmatprep.subr.mxu0 0.0
    %1378 = vmatpush1.msra.mxu0 0.0
    %1379 = vmatprep.subr.mxu0 0.0
    %1380 = vmatpush1.msra.mxu0 0.0
    %1381 = vmatprep.mubr.f32.mxu0 0.0
    %v1382 = vand.u32 %v1216, 4294901760
    %1383 = vmatmul.mubr.f32.gmra.mrb[0].mxu0 %v1382
    %v1384 = vpop.f32.mrb[0].mxu0
    %v1385 = vadd.f32 %v1294, %v1384
    %v1386 = vpop.f32.mrb[0].mxu0
    %1387 = vdwg.mxu0
    %1388 = vmatprep.subr.mxu0 0.0
    %v1389 = vand.u32 %v710, 4294901760
    %v1390 = vsub.f32 %v710, %v1389
    %1391 = vmatpush1.msra.mxu0 %v1390
    %1392 = vmatprep.subr.mxu0 0.0
    %v1393 = vand.u32 %v711, 4294901760
    %v1394 = vsub.f32 %v711, %v1393
    %1395 = vmatpush1.msra.mxu0 %v1394
    %1396 = vmatprep.subr.mxu0 0.0
    %v1397 = vand.u32 %v712, 4294901760
    %v1398 = vsub.f32 %v712, %v1397
    %1399 = vmatpush1.msra.mxu0 %v1398
    %1400 = vmatprep.subr.mxu0 0.0
    %v1401 = vand.u32 %v713, 4294901760
    %v1402 = vsub.f32 %v713, %v1401
    %1403 = vmatpush1.msra.mxu0 %v1402
    %1404 = vmatprep.subr.mxu0 0.0
    %1405 = vmatpush1.msra.mxu0 0.0
    %1406 = vmatprep.subr.mxu0 0.0
    %1407 = vmatpush1.msra.mxu0 0.0
    %1408 = vmatprep.subr.mxu0 0.0
    %1409 = vmatpush1.msra.mxu0 0.0
    %1410 = vmatprep.subr.mxu0 0.0
    %1411 = vmatpush1.msra.mxu0 0.0
    %1412 = vmatprep.subr.mxu0 0.0
    %1413 = vmatpush1.msra.mxu0 0.0
    %1414 = vmatprep.subr.mxu0 0.0
    %1415 = vmatpush1.msra.mxu0 0.0
    %1416 = vmatprep.subr.mxu0 0.0
    %1417 = vmatpush1.msra.mxu0 0.0
    %1418 = vmatprep.subr.mxu0 0.0
    %1419 = vmatpush1.msra.mxu0 0.0
    %1420 = vmatprep.subr.mxu0 0.0
    %1421 = vmatpush1.msra.mxu0 0.0
    %1422 = vmatprep.subr.mxu0 0.0
    %1423 = vmatpush1.msra.mxu0 0.0
    %1424 = vmatprep.subr.mxu0 0.0
    %1425 = vmatpush1.msra.mxu0 0.0
    %1426 = vmatprep.subr.mxu0 0.0
    %1427 = vmatpush1.msra.mxu0 0.0
    %1428 = vmatprep.subr.mxu0 0.0
    %1429 = vmatpush1.msra.mxu0 0.0
    %1430 = vmatprep.subr.mxu0 0.0
    %1431 = vmatpush1.msra.mxu0 0.0
    %1432 = vmatprep.subr.mxu0 0.0
    %1433 = vmatpush1.msra.mxu0 0.0
    %1434 = vmatprep.subr.mxu0 0.0
    %1435 = vmatpush1.msra.mxu0 0.0
    %1436 = vmatprep.subr.mxu0 0.0
    %1437 = vmatpush1.msra.mxu0 0.0
    %1438 = vmatprep.subr.mxu0 0.0
    %1439 = vmatpush1.msra.mxu0 0.0
    %1440 = vmatprep.subr.mxu0 0.0
    %1441 = vmatpush1.msra.mxu0 0.0
    %1442 = vmatprep.subr.mxu0 0.0
    %1443 = vmatpush1.msra.mxu0 0.0
    %1444 = vmatprep.subr.mxu0 0.0
    %1445 = vmatpush1.msra.mxu0 0.0
    %1446 = vmatprep.subr.mxu0 0.0
    %1447 = vmatpush1.msra.mxu0 0.0
    %1448 = vmatprep.subr.mxu0 0.0
    %1449 = vmatpush1.msra.mxu0 0.0
    %1450 = vmatprep.subr.mxu0 0.0
    %1451 = vmatpush1.msra.mxu0 0.0
    %1452 = vmatprep.subr.mxu0 0.0
    %1453 = vmatpush1.msra.mxu0 0.0
    %1454 = vmatprep.subr.mxu0 0.0
    %1455 = vmatpush1.msra.mxu0 0.0
    %1456 = vmatprep.subr.mxu0 0.0
    %1457 = vmatpush1.msra.mxu0 0.0
    %1458 = vmatprep.subr.mxu0 0.0
    %1459 = vmatpush1.msra.mxu0 0.0
    %1460 = vmatprep.mubr.f32.mxu0 0.0
    %v1461 = vand.u32 %v1216, 4294901760
    %v1462 = vsub.f32 %v1216, %v1461
    %1463 = vmatmul.mubr.f32.gmra.mrb[0].mxu0 %v1462
    %v1464 = vpop.f32.mrb[0].mxu0
    %v1465 = vadd.f32 %v1385, %v1464
    %v1466 = vpop.f32.mrb[0].mxu0
    %1467 = vdwg.mxu0
    %1468 = vmatprep.subr.mxu0 0.0
    %v1469 = vand.u32 %v710, 4294901760
    %1470 = vmatpush1.msra.mxu0 %v1469
    %1471 = vmatprep.subr.mxu0 0.0
    %v1472 = vand.u32 %v711, 4294901760
    %1473 = vmatpush1.msra.mxu0 %v1472
    %1474 = vmatprep.subr.mxu0 0.0
    %v1475 = vand.u32 %v712, 4294901760
    %1476 = vmatpush1.msra.mxu0 %v1475
    %1477 = vmatprep.subr.mxu0 0.0
    %v1478 = vand.u32 %v713, 4294901760
    %1479 = vmatpush1.msra.mxu0 %v1478
    %1480 = vmatprep.subr.mxu0 0.0
    %1481 = vmatpush1.msra.mxu0 0.0
    %1482 = vmatprep.subr.mxu0 0.0
    %1483 = vmatpush1.msra.mxu0 0.0
    %1484 = vmatprep.subr.mxu0 0.0
    %1485 = vmatpush1.msra.mxu0 0.0
    %1486 = vmatprep.subr.mxu0 0.0
    %1487 = vmatpush1.msra.mxu0 0.0
    %1488 = vmatprep.subr.mxu0 0.0
    %1489 = vmatpush1.msra.mxu0 0.0
    %1490 = vmatprep.subr.mxu0 0.0
    %1491 = vmatpush1.msra.mxu0 0.0
    %1492 = vmatprep.subr.mxu0 0.0
    %1493 = vmatpush1.msra.mxu0 0.0
    %1494 = vmatprep.subr.mxu0 0.0
    %1495 = vmatpush1.msra.mxu0 0.0
    %1496 = vmatprep.subr.mxu0 0.0
    %1497 = vmatpush1.msra.mxu0 0.0
    %1498 = vmatprep.subr.mxu0 0.0
    %1499 = vmatpush1.msra.mxu0 0.0
    %1500 = vmatprep.subr.mxu0 0.0
    %1501 = vmatpush1.msra.mxu0 0.0
    %1502 = vmatprep.subr.mxu0 0.0
    %1503 = vmatpush1.msra.mxu0 0.0
    %1504 = vmatprep.subr.mxu0 0.0
    %1505 = vmatpush1.msra.mxu0 0.0
    %1506 = vmatprep.subr.mxu0 0.0
    %1507 = vmatpush1.msra.mxu0 0.0
    %1508 = vmatprep.subr.mxu0 0.0
    %1509 = vmatpush1.msra.mxu0 0.0
    %1510 = vmatprep.subr.mxu0 0.0
    %1511 = vmatpush1.msra.mxu0 0.0
    %1512 = vmatprep.subr.mxu0 0.0
    %1513 = vmatpush1.msra.mxu0 0.0
    %1514 = vmatprep.subr.mxu0 0.0
    %1515 = vmatpush1.msra.mxu0 0.0
    %1516 = vmatprep.subr.mxu0 0.0
    %1517 = vmatpush1.msra.mxu0 0.0
    %1518 = vmatprep.subr.mxu0 0.0
    %1519 = vmatpush1.msra.mxu0 0.0
    %1520 = vmatprep.subr.mxu0 0.0
    %1521 = vmatpush1.msra.mxu0 0.0
    %1522 = vmatprep.subr.mxu0 0.0
    %1523 = vmatpush1.msra.mxu0 0.0
    %1524 = vmatprep.subr.mxu0 0.0
    %1525 = vmatpush1.msra.mxu0 0.0
    %1526 = vmatprep.subr.mxu0 0.0
    %1527 = vmatpush1.msra.mxu0 0.0
    %1528 = vmatprep.subr.mxu0 0.0
    %1529 = vmatpush1.msra.mxu0 0.0
    %1530 = vmatprep.subr.mxu0 0.0
    %1531 = vmatpush1.msra.mxu0 0.0
    %1532 = vmatprep.subr.mxu0 0.0
    %1533 = vmatpush1.msra.mxu0 0.0
    %1534 = vmatprep.subr.mxu0 0.0
    %1535 = vmatpush1.msra.mxu0 0.0
    %1536 = vmatprep.mubr.f32.mxu0 0.0
    %v1537 = vand.u32 %v1216, 4294901760
    %v1538 = vsub.f32 %v1216, %v1537
    %v1539 = vand.u32 %v1538, 4294901760
    %1540 = vmatmul.mubr.f32.gmra.mrb[0].mxu0 %v1539
    %v1541 = vpop.f32.mrb[0].mxu0
    %v1542 = vadd.f32 %v1465, %v1541
    %v1543 = vpop.f32.mrb[0].mxu0
    %1544 = vdwg.mxu0
    %1545 = vmatprep.subr.mxu0 0.0
    %v1546 = vand.u32 %v710, 4294901760
    %v1547 = vsub.f32 %v710, %v1546
    %v1548 = vand.u32 %v1547, 4294901760
    %1549 = vmatpush1.msra.mxu0 %v1548
    %1550 = vmatprep.subr.mxu0 0.0
    %v1551 = vand.u32 %v711, 4294901760
    %v1552 = vsub.f32 %v711, %v1551
    %v1553 = vand.u32 %v1552, 4294901760
    %1554 = vmatpush1.msra.mxu0 %v1553
    %1555 = vmatprep.subr.mxu0 0.0
    %v1556 = vand.u32 %v712, 4294901760
    %v1557 = vsub.f32 %v712, %v1556
    %v1558 = vand.u32 %v1557, 4294901760
    %1559 = vmatpush1.msra.mxu0 %v1558
    %1560 = vmatprep.subr.mxu0 0.0
    %v1561 = vand.u32 %v713, 4294901760
    %v1562 = vsub.f32 %v713, %v1561
    %v1563 = vand.u32 %v1562, 4294901760
    %1564 = vmatpush1.msra.mxu0 %v1563
    %1565 = vmatprep.subr.mxu0 0.0
    %1566 = vmatpush1.msra.mxu0 0.0
    %1567 = vmatprep.subr.mxu0 0.0
    %1568 = vmatpush1.msra.mxu0 0.0
    %1569 = vmatprep.subr.mxu0 0.0
    %1570 = vmatpush1.msra.mxu0 0.0
    %1571 = vmatprep.subr.mxu0 0.0
    %1572 = vmatpush1.msra.mxu0 0.0
    %1573 = vmatprep.subr.mxu0 0.0
    %1574 = vmatpush1.msra.mxu0 0.0
    %1575 = vmatprep.subr.mxu0 0.0
    %1576 = vmatpush1.msra.mxu0 0.0
    %1577 = vmatprep.subr.mxu0 0.0
    %1578 = vmatpush1.msra.mxu0 0.0
    %1579 = vmatprep.subr.mxu0 0.0
    %1580 = vmatpush1.msra.mxu0 0.0
    %1581 = vmatprep.subr.mxu0 0.0
    %1582 = vmatpush1.msra.mxu0 0.0
    %1583 = vmatprep.subr.mxu0 0.0
    %1584 = vmatpush1.msra.mxu0 0.0
    %1585 = vmatprep.subr.mxu0 0.0
    %1586 = vmatpush1.msra.mxu0 0.0
    %1587 = vmatprep.subr.mxu0 0.0
    %1588 = vmatpush1.msra.mxu0 0.0
    %1589 = vmatprep.subr.mxu0 0.0
    %1590 = vmatpush1.msra.mxu0 0.0
    %1591 = vmatprep.subr.mxu0 0.0
    %1592 = vmatpush1.msra.mxu0 0.0
    %1593 = vmatprep.subr.mxu0 0.0
    %1594 = vmatpush1.msra.mxu0 0.0
    %1595 = vmatprep.subr.mxu0 0.0
    %1596 = vmatpush1.msra.mxu0 0.0
    %1597 = vmatprep.subr.mxu0 0.0
    %1598 = vmatpush1.msra.mxu0 0.0
    %1599 = vmatprep.subr.mxu0 0.0
    %1600 = vmatpush1.msra.mxu0 0.0
    %1601 = vmatprep.subr.mxu0 0.0
    %1602 = vmatpush1.msra.mxu0 0.0
    %1603 = vmatprep.subr.mxu0 0.0
    %1604 = vmatpush1.msra.mxu0 0.0
    %1605 = vmatprep.subr.mxu0 0.0
    %1606 = vmatpush1.msra.mxu0 0.0
    %1607 = vmatprep.subr.mxu0 0.0
    %1608 = vmatpush1.msra.mxu0 0.0
    %1609 = vmatprep.subr.mxu0 0.0
    %1610 = vmatpush1.msra.mxu0 0.0
    %1611 = vmatprep.subr.mxu0 0.0
    %1612 = vmatpush1.msra.mxu0 0.0
    %1613 = vmatprep.subr.mxu0 0.0
    %1614 = vmatpush1.msra.mxu0 0.0
    %1615 = vmatprep.subr.mxu0 0.0
    %1616 = vmatpush1.msra.mxu0 0.0
    %1617 = vmatprep.subr.mxu0 0.0
    %1618 = vmatpush1.msra.mxu0 0.0
    %1619 = vmatprep.subr.mxu0 0.0
    %1620 = vmatpush1.msra.mxu0 0.0
    %1621 = vmatprep.mubr.f32.mxu0 0.0
    %v1622 = vand.u32 %v1216, 4294901760
    %1623 = vmatmul.mubr.f32.gmra.mrb[0].mxu0 %v1622
    %v1624 = vpop.f32.mrb[0].mxu0
    %v1625 = vadd.f32 %v1542, %v1624
    %v1626 = vpop.f32.mrb[0].mxu0
    %1627 = vdwg.mxu0
    %1628 = vmatprep.subr.mxu0 0.0
    %v1629 = vand.u32 %v710, 4294901760
    %1630 = vmatpush1.msra.mxu0 %v1629
    %1631 = vmatprep.subr.mxu0 0.0
    %v1632 = vand.u32 %v711, 4294901760
    %1633 = vmatpush1.msra.mxu0 %v1632
    %1634 = vmatprep.subr.mxu0 0.0
    %v1635 = vand.u32 %v712, 4294901760
    %1636 = vmatpush1.msra.mxu0 %v1635
    %1637 = vmatprep.subr.mxu0 0.0
    %v1638 = vand.u32 %v713, 4294901760
    %1639 = vmatpush1.msra.mxu0 %v1638
    %1640 = vmatprep.subr.mxu0 0.0
    %1641 = vmatpush1.msra.mxu0 0.0
    %1642 = vmatprep.subr.mxu0 0.0
    %1643 = vmatpush1.msra.mxu0 0.0
    %1644 = vmatprep.subr.mxu0 0.0
    %1645 = vmatpush1.msra.mxu0 0.0
    %1646 = vmatprep.subr.mxu0 0.0
    %1647 = vmatpush1.msra.mxu0 0.0
    %1648 = vmatprep.subr.mxu0 0.0
    %1649 = vmatpush1.msra.mxu0 0.0
    %1650 = vmatprep.subr.mxu0 0.0
    %1651 = vmatpush1.msra.mxu0 0.0
    %1652 = vmatprep.subr.mxu0 0.0
    %1653 = vmatpush1.msra.mxu0 0.0
    %1654 = vmatprep.subr.mxu0 0.0
    %1655 = vmatpush1.msra.mxu0 0.0
    %1656 = vmatprep.subr.mxu0 0.0
    %1657 = vmatpush1.msra.mxu0 0.0
    %1658 = vmatprep.subr.mxu0 0.0
    %1659 = vmatpush1.msra.mxu0 0.0
    %1660 = vmatprep.subr.mxu0 0.0
    %1661 = vmatpush1.msra.mxu0 0.0
    %1662 = vmatprep.subr.mxu0 0.0
    %1663 = vmatpush1.msra.mxu0 0.0
    %1664 = vmatprep.subr.mxu0 0.0
    %1665 = vmatpush1.msra.mxu0 0.0
    %1666 = vmatprep.subr.mxu0 0.0
    %1667 = vmatpush1.msra.mxu0 0.0
    %1668 = vmatprep.subr.mxu0 0.0
    %1669 = vmatpush1.msra.mxu0 0.0
    %1670 = vmatprep.subr.mxu0 0.0
    %1671 = vmatpush1.msra.mxu0 0.0
    %1672 = vmatprep.subr.mxu0 0.0
    %1673 = vmatpush1.msra.mxu0 0.0
    %1674 = vmatprep.subr.mxu0 0.0
    %1675 = vmatpush1.msra.mxu0 0.0
    %1676 = vmatprep.subr.mxu0 0.0
    %1677 = vmatpush1.msra.mxu0 0.0
    %1678 = vmatprep.subr.mxu0 0.0
    %1679 = vmatpush1.msra.mxu0 0.0
    %1680 = vmatprep.subr.mxu0 0.0
    %1681 = vmatpush1.msra.mxu0 0.0
    %1682 = vmatprep.subr.mxu0 0.0
    %1683 = vmatpush1.msra.mxu0 0.0
    %1684 = vmatprep.subr.mxu0 0.0
    %1685 = vmatpush1.msra.mxu0 0.0
    %1686 = vmatprep.subr.mxu0 0.0
    %1687 = vmatpush1.msra.mxu0 0.0
    %1688 = vmatprep.subr.mxu0 0.0
    %1689 = vmatpush1.msra.mxu0 0.0
    %1690 = vmatprep.subr.mxu0 0.0
    %1691 = vmatpush1.msra.mxu0 0.0
    %1692 = vmatprep.subr.mxu0 0.0
    %1693 = vmatpush1.msra.mxu0 0.0
    %1694 = vmatprep.subr.mxu0 0.0
    %1695 = vmatpush1.msra.mxu0 0.0
    %1696 = vmatprep.mubr.f32.mxu0 0.0
    %v1697 = vand.u32 %v1216, 4294901760
    %1698 = vmatmul.mubr.f32.gmra.mrb[0].mxu0 %v1697
    %v1699 = vpop.f32.mrb[0].mxu0
    %v1700 = vadd.f32 %v1625, %v1699
    %v1701 = vpop.f32.mrb[0].mxu0
    %1702 = vdwg.mxu0
    %v1703 = vadd.f32 %v1214, %v1700
    %v1705 = vsel %vm714, %v34, 0
    %1707 = vmatprep.subr.mxu0 0.0
    %v1708 = vand.u32 %v710, 4294901760
    %1709 = vmatpush1.msra.mxu0 %v1708
    %1710 = vmatprep.subr.mxu0 0.0
    %v1711 = vand.u32 %v711, 4294901760
    %1712 = vmatpush1.msra.mxu0 %v1711
    %1713 = vmatprep.subr.mxu0 0.0
    %v1714 = vand.u32 %v712, 4294901760
    %1715 = vmatpush1.msra.mxu0 %v1714
    %1716 = vmatprep.subr.mxu0 0.0
    %v1717 = vand.u32 %v713, 4294901760
    %1718 = vmatpush1.msra.mxu0 %v1717
    %1719 = vmatprep.subr.mxu0 0.0
    %1720 = vmatpush1.msra.mxu0 0.0
    %1721 = vmatprep.subr.mxu0 0.0
    %1722 = vmatpush1.msra.mxu0 0.0
    %1723 = vmatprep.subr.mxu0 0.0
    %1724 = vmatpush1.msra.mxu0 0.0
    %1725 = vmatprep.subr.mxu0 0.0
    %1726 = vmatpush1.msra.mxu0 0.0
    %1727 = vmatprep.subr.mxu0 0.0
    %1728 = vmatpush1.msra.mxu0 0.0
    %1729 = vmatprep.subr.mxu0 0.0
    %1730 = vmatpush1.msra.mxu0 0.0
    %1731 = vmatprep.subr.mxu0 0.0
    %1732 = vmatpush1.msra.mxu0 0.0
    %1733 = vmatprep.subr.mxu0 0.0
    %1734 = vmatpush1.msra.mxu0 0.0
    %1735 = vmatprep.subr.mxu0 0.0
    %1736 = vmatpush1.msra.mxu0 0.0
    %1737 = vmatprep.subr.mxu0 0.0
    %1738 = vmatpush1.msra.mxu0 0.0
    %1739 = vmatprep.subr.mxu0 0.0
    %1740 = vmatpush1.msra.mxu0 0.0
    %1741 = vmatprep.subr.mxu0 0.0
    %1742 = vmatpush1.msra.mxu0 0.0
    %1743 = vmatprep.subr.mxu0 0.0
    %1744 = vmatpush1.msra.mxu0 0.0
    %1745 = vmatprep.subr.mxu0 0.0
    %1746 = vmatpush1.msra.mxu0 0.0
    %1747 = vmatprep.subr.mxu0 0.0
    %1748 = vmatpush1.msra.mxu0 0.0
    %1749 = vmatprep.subr.mxu0 0.0
    %1750 = vmatpush1.msra.mxu0 0.0
    %1751 = vmatprep.subr.mxu0 0.0
    %1752 = vmatpush1.msra.mxu0 0.0
    %1753 = vmatprep.subr.mxu0 0.0
    %1754 = vmatpush1.msra.mxu0 0.0
    %1755 = vmatprep.subr.mxu0 0.0
    %1756 = vmatpush1.msra.mxu0 0.0
    %1757 = vmatprep.subr.mxu0 0.0
    %1758 = vmatpush1.msra.mxu0 0.0
    %1759 = vmatprep.subr.mxu0 0.0
    %1760 = vmatpush1.msra.mxu0 0.0
    %1761 = vmatprep.subr.mxu0 0.0
    %1762 = vmatpush1.msra.mxu0 0.0
    %1763 = vmatprep.subr.mxu0 0.0
    %1764 = vmatpush1.msra.mxu0 0.0
    %1765 = vmatprep.subr.mxu0 0.0
    %1766 = vmatpush1.msra.mxu0 0.0
    %1767 = vmatprep.subr.mxu0 0.0
    %1768 = vmatpush1.msra.mxu0 0.0
    %1769 = vmatprep.subr.mxu0 0.0
    %1770 = vmatpush1.msra.mxu0 0.0
    %1771 = vmatprep.subr.mxu0 0.0
    %1772 = vmatpush1.msra.mxu0 0.0
    %1773 = vmatprep.subr.mxu0 0.0
    %1774 = vmatpush1.msra.mxu0 0.0
    %1775 = vmatprep.mubr.f32.mxu0 0.0
    %v1776 = vand.u32 %v1705, 4294901760
    %v1777 = vsub.f32 %v1705, %v1776
    %v1778 = vand.u32 %v1777, 4294901760
    %v1779 = vsub.f32 %v1777, %v1778
    %v1780 = vand.u32 %v1779, 4294901760
    %1781 = vmatmul.mubr.f32.gmra.mrb[0].mxu0 %v1780
    %v1782 = vpop.f32.mrb[0].mxu0
    %v1783 = vadd.f32 0.0, %v1782
    %v1784 = vpop.f32.mrb[0].mxu0
    %1785 = vdwg.mxu0
    %1786 = vmatprep.subr.mxu0 0.0
    %v1787 = vand.u32 %v710, 4294901760
    %v1788 = vsub.f32 %v710, %v1787
    %v1789 = vand.u32 %v1788, 4294901760
    %v1790 = vsub.f32 %v1788, %v1789
    %v1791 = vand.u32 %v1790, 4294901760
    %1792 = vmatpush1.msra.mxu0 %v1791
    %1793 = vmatprep.subr.mxu0 0.0
    %v1794 = vand.u32 %v711, 4294901760
    %v1795 = vsub.f32 %v711, %v1794
    %v1796 = vand.u32 %v1795, 4294901760
    %v1797 = vsub.f32 %v1795, %v1796
    %v1798 = vand.u32 %v1797, 4294901760
    %1799 = vmatpush1.msra.mxu0 %v1798
    %1800 = vmatprep.subr.mxu0 0.0
    %v1801 = vand.u32 %v712, 4294901760
    %v1802 = vsub.f32 %v712, %v1801
    %v1803 = vand.u32 %v1802, 4294901760
    %v1804 = vsub.f32 %v1802, %v1803
    %v1805 = vand.u32 %v1804, 4294901760
    %1806 = vmatpush1.msra.mxu0 %v1805
    %1807 = vmatprep.subr.mxu0 0.0
    %v1808 = vand.u32 %v713, 4294901760
    %v1809 = vsub.f32 %v713, %v1808
    %v1810 = vand.u32 %v1809, 4294901760
    %v1811 = vsub.f32 %v1809, %v1810
    %v1812 = vand.u32 %v1811, 4294901760
    %1813 = vmatpush1.msra.mxu0 %v1812
    %1814 = vmatprep.subr.mxu0 0.0
    %1815 = vmatpush1.msra.mxu0 0.0
    %1816 = vmatprep.subr.mxu0 0.0
    %1817 = vmatpush1.msra.mxu0 0.0
    %1818 = vmatprep.subr.mxu0 0.0
    %1819 = vmatpush1.msra.mxu0 0.0
    %1820 = vmatprep.subr.mxu0 0.0
    %1821 = vmatpush1.msra.mxu0 0.0
    %1822 = vmatprep.subr.mxu0 0.0
    %1823 = vmatpush1.msra.mxu0 0.0
    %1824 = vmatprep.subr.mxu0 0.0
    %1825 = vmatpush1.msra.mxu0 0.0
    %1826 = vmatprep.subr.mxu0 0.0
    %1827 = vmatpush1.msra.mxu0 0.0
    %1828 = vmatprep.subr.mxu0 0.0
    %1829 = vmatpush1.msra.mxu0 0.0
    %1830 = vmatprep.subr.mxu0 0.0
    %1831 = vmatpush1.msra.mxu0 0.0
    %1832 = vmatprep.subr.mxu0 0.0
    %1833 = vmatpush1.msra.mxu0 0.0
    %1834 = vmatprep.subr.mxu0 0.0
    %1835 = vmatpush1.msra.mxu0 0.0
    %1836 = vmatprep.subr.mxu0 0.0
    %1837 = vmatpush1.msra.mxu0 0.0
    %1838 = vmatprep.subr.mxu0 0.0
    %1839 = vmatpush1.msra.mxu0 0.0
    %1840 = vmatprep.subr.mxu0 0.0
    %1841 = vmatpush1.msra.mxu0 0.0
    %1842 = vmatprep.subr.mxu0 0.0
    %1843 = vmatpush1.msra.mxu0 0.0
    %1844 = vmatprep.subr.mxu0 0.0
    %1845 = vmatpush1.msra.mxu0 0.0
    %1846 = vmatprep.subr.mxu0 0.0
    %1847 = vmatpush1.msra.mxu0 0.0
    %1848 = vmatprep.subr.mxu0 0.0
    %1849 = vmatpush1.msra.mxu0 0.0
    %1850 = vmatprep.subr.mxu0 0.0
    %1851 = vmatpush1.msra.mxu0 0.0
    %1852 = vmatprep.subr.mxu0 0.0
    %1853 = vmatpush1.msra.mxu0 0.0
    %1854 = vmatprep.subr.mxu0 0.0
    %1855 = vmatpush1.msra.mxu0 0.0
    %1856 = vmatprep.subr.mxu0 0.0
    %1857 = vmatpush1.msra.mxu0 0.0
    %1858 = vmatprep.subr.mxu0 0.0
    %1859 = vmatpush1.msra.mxu0 0.0
    %1860 = vmatprep.subr.mxu0 0.0
    %1861 = vmatpush1.msra.mxu0 0.0
    %1862 = vmatprep.subr.mxu0 0.0
    %1863 = vmatpush1.msra.mxu0 0.0
    %1864 = vmatprep.subr.mxu0 0.0
    %1865 = vmatpush1.msra.mxu0 0.0
    %1866 = vmatprep.subr.mxu0 0.0
    %1867 = vmatpush1.msra.mxu0 0.0
    %1868 = vmatprep.subr.mxu0 0.0
    %1869 = vmatpush1.msra.mxu0 0.0
    %1870 = vmatprep.mubr.f32.mxu0 0.0
    %v1871 = vand.u32 %v1705, 4294901760
    %1872 = vmatmul.mubr.f32.gmra.mrb[0].mxu0 %v1871
    %v1873 = vpop.f32.mrb[0].mxu0
    %v1874 = vadd.f32 %v1783, %v1873
    %v1875 = vpop.f32.mrb[0].mxu0
    %1876 = vdwg.mxu0
    %1877 = vmatprep.subr.mxu0 0.0
    %v1878 = vand.u32 %v710, 4294901760
    %v1879 = vsub.f32 %v710, %v1878
    %1880 = vmatpush1.msra.mxu0 %v1879
    %1881 = vmatprep.subr.mxu0 0.0
    %v1882 = vand.u32 %v711, 4294901760
    %v1883 = vsub.f32 %v711, %v1882
    %1884 = vmatpush1.msra.mxu0 %v1883
    %1885 = vmatprep.subr.mxu0 0.0
    %v1886 = vand.u32 %v712, 4294901760
    %v1887 = vsub.f32 %v712, %v1886
    %1888 = vmatpush1.msra.mxu0 %v1887
    %1889 = vmatprep.subr.mxu0 0.0
    %v1890 = vand.u32 %v713, 4294901760
    %v1891 = vsub.f32 %v713, %v1890
    %1892 = vmatpush1.msra.mxu0 %v1891
    %1893 = vmatprep.subr.mxu0 0.0
    %1894 = vmatpush1.msra.mxu0 0.0
    %1895 = vmatprep.subr.mxu0 0.0
    %1896 = vmatpush1.msra.mxu0 0.0
    %1897 = vmatprep.subr.mxu0 0.0
    %1898 = vmatpush1.msra.mxu0 0.0
    %1899 = vmatprep.subr.mxu0 0.0
    %1900 = vmatpush1.msra.mxu0 0.0
    %1901 = vmatprep.subr.mxu0 0.0
    %1902 = vmatpush1.msra.mxu0 0.0
    %1903 = vmatprep.subr.mxu0 0.0
    %1904 = vmatpush1.msra.mxu0 0.0
    %1905 = vmatprep.subr.mxu0 0.0
    %1906 = vmatpush1.msra.mxu0 0.0
    %1907 = vmatprep.subr.mxu0 0.0
    %1908 = vmatpush1.msra.mxu0 0.0
    %1909 = vmatprep.subr.mxu0 0.0
    %1910 = vmatpush1.msra.mxu0 0.0
    %1911 = vmatprep.subr.mxu0 0.0
    %1912 = vmatpush1.msra.mxu0 0.0
    %1913 = vmatprep.subr.mxu0 0.0
    %1914 = vmatpush1.msra.mxu0 0.0
    %1915 = vmatprep.subr.mxu0 0.0
    %1916 = vmatpush1.msra.mxu0 0.0
    %1917 = vmatprep.subr.mxu0 0.0
    %1918 = vmatpush1.msra.mxu0 0.0
    %1919 = vmatprep.subr.mxu0 0.0
    %1920 = vmatpush1.msra.mxu0 0.0
    %1921 = vmatprep.subr.mxu0 0.0
    %1922 = vmatpush1.msra.mxu0 0.0
    %1923 = vmatprep.subr.mxu0 0.0
    %1924 = vmatpush1.msra.mxu0 0.0
    %1925 = vmatprep.subr.mxu0 0.0
    %1926 = vmatpush1.msra.mxu0 0.0
    %1927 = vmatprep.subr.mxu0 0.0
    %1928 = vmatpush1.msra.mxu0 0.0
    %1929 = vmatprep.subr.mxu0 0.0
    %1930 = vmatpush1.msra.mxu0 0.0
    %1931 = vmatprep.subr.mxu0 0.0
    %1932 = vmatpush1.msra.mxu0 0.0
    %1933 = vmatprep.subr.mxu0 0.0
    %1934 = vmatpush1.msra.mxu0 0.0
    %1935 = vmatprep.subr.mxu0 0.0
    %1936 = vmatpush1.msra.mxu0 0.0
    %1937 = vmatprep.subr.mxu0 0.0
    %1938 = vmatpush1.msra.mxu0 0.0
    %1939 = vmatprep.subr.mxu0 0.0
    %1940 = vmatpush1.msra.mxu0 0.0
    %1941 = vmatprep.subr.mxu0 0.0
    %1942 = vmatpush1.msra.mxu0 0.0
    %1943 = vmatprep.subr.mxu0 0.0
    %1944 = vmatpush1.msra.mxu0 0.0
    %1945 = vmatprep.subr.mxu0 0.0
    %1946 = vmatpush1.msra.mxu0 0.0
    %1947 = vmatprep.subr.mxu0 0.0
    %1948 = vmatpush1.msra.mxu0 0.0
    %1949 = vmatprep.mubr.f32.mxu0 0.0
    %v1950 = vand.u32 %v1705, 4294901760
    %v1951 = vsub.f32 %v1705, %v1950
    %1952 = vmatmul.mubr.f32.gmra.mrb[0].mxu0 %v1951
    %v1953 = vpop.f32.mrb[0].mxu0
    %v1954 = vadd.f32 %v1874, %v1953
    %v1955 = vpop.f32.mrb[0].mxu0
    %1956 = vdwg.mxu0
    %1957 = vmatprep.subr.mxu0 0.0
    %v1958 = vand.u32 %v710, 4294901760
    %1959 = vmatpush1.msra.mxu0 %v1958
    %1960 = vmatprep.subr.mxu0 0.0
    %v1961 = vand.u32 %v711, 4294901760
    %1962 = vmatpush1.msra.mxu0 %v1961
    %1963 = vmatprep.subr.mxu0 0.0
    %v1964 = vand.u32 %v712, 4294901760
    %1965 = vmatpush1.msra.mxu0 %v1964
    %1966 = vmatprep.subr.mxu0 0.0
    %v1967 = vand.u32 %v713, 4294901760
    %1968 = vmatpush1.msra.mxu0 %v1967
    %1969 = vmatprep.subr.mxu0 0.0
    %1970 = vmatpush1.msra.mxu0 0.0
    %1971 = vmatprep.subr.mxu0 0.0
    %1972 = vmatpush1.msra.mxu0 0.0
    %1973 = vmatprep.subr.mxu0 0.0
    %1974 = vmatpush1.msra.mxu0 0.0
    %1975 = vmatprep.subr.mxu0 0.0
    %1976 = vmatpush1.msra.mxu0 0.0
    %1977 = vmatprep.subr.mxu0 0.0
    %1978 = vmatpush1.msra.mxu0 0.0
    %1979 = vmatprep.subr.mxu0 0.0
    %1980 = vmatpush1.msra.mxu0 0.0
    %1981 = vmatprep.subr.mxu0 0.0
    %1982 = vmatpush1.msra.mxu0 0.0
    %1983 = vmatprep.subr.mxu0 0.0
    %1984 = vmatpush1.msra.mxu0 0.0
    %1985 = vmatprep.subr.mxu0 0.0
    %1986 = vmatpush1.msra.mxu0 0.0
    %1987 = vmatprep.subr.mxu0 0.0
    %1988 = vmatpush1.msra.mxu0 0.0
    %1989 = vmatprep.subr.mxu0 0.0
    %1990 = vmatpush1.msra.mxu0 0.0
    %1991 = vmatprep.subr.mxu0 0.0
    %1992 = vmatpush1.msra.mxu0 0.0
    %1993 = vmatprep.subr.mxu0 0.0
    %1994 = vmatpush1.msra.mxu0 0.0
    %1995 = vmatprep.subr.mxu0 0.0
    %1996 = vmatpush1.msra.mxu0 0.0
    %1997 = vmatprep.subr.mxu0 0.0
    %1998 = vmatpush1.msra.mxu0 0.0
    %1999 = vmatprep.subr.mxu0 0.0
    %2000 = vmatpush1.msra.mxu0 0.0
    %2001 = vmatprep.subr.mxu0 0.0
    %2002 = vmatpush1.msra.mxu0 0.0
    %2003 = vmatprep.subr.mxu0 0.0
    %2004 = vmatpush1.msra.mxu0 0.0
    %2005 = vmatprep.subr.mxu0 0.0
    %2006 = vmatpush1.msra.mxu0 0.0
    %2007 = vmatprep.subr.mxu0 0.0
    %2008 = vmatpush1.msra.mxu0 0.0
    %2009 = vmatprep.subr.mxu0 0.0
    %2010 = vmatpush1.msra.mxu0 0.0
    %2011 = vmatprep.subr.mxu0 0.0
    %2012 = vmatpush1.msra.mxu0 0.0
    %2013 = vmatprep.subr.mxu0 0.0
    %2014 = vmatpush1.msra.mxu0 0.0
    %2015 = vmatprep.subr.mxu0 0.0
    %2016 = vmatpush1.msra.mxu0 0.0
    %2017 = vmatprep.subr.mxu0 0.0
    %2018 = vmatpush1.msra.mxu0 0.0
    %2019 = vmatprep.subr.mxu0 0.0
    %2020 = vmatpush1.msra.mxu0 0.0
    %2021 = vmatprep.subr.mxu0 0.0
    %2022 = vmatpush1.msra.mxu0 0.0
    %2023 = vmatprep.subr.mxu0 0.0
    %2024 = vmatpush1.msra.mxu0 0.0
    %2025 = vmatprep.mubr.f32.mxu0 0.0
    %v2026 = vand.u32 %v1705, 4294901760
    %v2027 = vsub.f32 %v1705, %v2026
    %v2028 = vand.u32 %v2027, 4294901760
    %2029 = vmatmul.mubr.f32.gmra.mrb[0].mxu0 %v2028
    %v2030 = vpop.f32.mrb[0].mxu0
    %v2031 = vadd.f32 %v1954, %v2030
    %v2032 = vpop.f32.mrb[0].mxu0
    %2033 = vdwg.mxu0
    %2034 = vmatprep.subr.mxu0 0.0
    %v2035 = vand.u32 %v710, 4294901760
    %v2036 = vsub.f32 %v710, %v2035
    %v2037 = vand.u32 %v2036, 4294901760
    %2038 = vmatpush1.msra.mxu0 %v2037
    %2039 = vmatprep.subr.mxu0 0.0
    %v2040 = vand.u32 %v711, 4294901760
    %v2041 = vsub.f32 %v711, %v2040
    %v2042 = vand.u32 %v2041, 4294901760
    %2043 = vmatpush1.msra.mxu0 %v2042
    %2044 = vmatprep.subr.mxu0 0.0
    %v2045 = vand.u32 %v712, 4294901760
    %v2046 = vsub.f32 %v712, %v2045
    %v2047 = vand.u32 %v2046, 4294901760
    %2048 = vmatpush1.msra.mxu0 %v2047
    %2049 = vmatprep.subr.mxu0 0.0
    %v2050 = vand.u32 %v713, 4294901760
    %v2051 = vsub.f32 %v713, %v2050
    %v2052 = vand.u32 %v2051, 4294901760
    %2053 = vmatpush1.msra.mxu0 %v2052
    %2054 = vmatprep.subr.mxu0 0.0
    %2055 = vmatpush1.msra.mxu0 0.0
    %2056 = vmatprep.subr.mxu0 0.0
    %2057 = vmatpush1.msra.mxu0 0.0
    %2058 = vmatprep.subr.mxu0 0.0
    %2059 = vmatpush1.msra.mxu0 0.0
    %2060 = vmatprep.subr.mxu0 0.0
    %2061 = vmatpush1.msra.mxu0 0.0
    %2062 = vmatprep.subr.mxu0 0.0
    %2063 = vmatpush1.msra.mxu0 0.0
    %2064 = vmatprep.subr.mxu0 0.0
    %2065 = vmatpush1.msra.mxu0 0.0
    %2066 = vmatprep.subr.mxu0 0.0
    %2067 = vmatpush1.msra.mxu0 0.0
    %2068 = vmatprep.subr.mxu0 0.0
    %2069 = vmatpush1.msra.mxu0 0.0
    %2070 = vmatprep.subr.mxu0 0.0
    %2071 = vmatpush1.msra.mxu0 0.0
    %2072 = vmatprep.subr.mxu0 0.0
    %2073 = vmatpush1.msra.mxu0 0.0
    %2074 = vmatprep.subr.mxu0 0.0
    %2075 = vmatpush1.msra.mxu0 0.0
    %2076 = vmatprep.subr.mxu0 0.0
    %2077 = vmatpush1.msra.mxu0 0.0
    %2078 = vmatprep.subr.mxu0 0.0
    %2079 = vmatpush1.msra.mxu0 0.0
    %2080 = vmatprep.subr.mxu0 0.0
    %2081 = vmatpush1.msra.mxu0 0.0
    %2082 = vmatprep.subr.mxu0 0.0
    %2083 = vmatpush1.msra.mxu0 0.0
    %2084 = vmatprep.subr.mxu0 0.0
    %2085 = vmatpush1.msra.mxu0 0.0
    %2086 = vmatprep.subr.mxu0 0.0
    %2087 = vmatpush1.msra.mxu0 0.0
    %2088 = vmatprep.subr.mxu0 0.0
    %2089 = vmatpush1.msra.mxu0 0.0
    %2090 = vmatprep.subr.mxu0 0.0
    %2091 = vmatpush1.msra.mxu0 0.0
    %2092 = vmatprep.subr.mxu0 0.0
    %2093 = vmatpush1.msra.mxu0 0.0
    %2094 = vmatprep.subr.mxu0 0.0
    %2095 = vmatpush1.msra.mxu0 0.0
    %2096 = vmatprep.subr.mxu0 0.0
    %2097 = vmatpush1.msra.mxu0 0.0
    %2098 = vmatprep.subr.mxu0 0.0
    %2099 = vmatpush1.msra.mxu0 0.0
    %2100 = vmatprep.subr.mxu0 0.0
    %2101 = vmatpush1.msra.mxu0 0.0
    %2102 = vmatprep.subr.mxu0 0.0
    %2103 = vmatpush1.msra.mxu0 0.0
    %2104 = vmatprep.subr.mxu0 0.0
    %2105 = vmatpush1.msra.mxu0 0.0
    %2106 = vmatprep.subr.mxu0 0.0
    %2107 = vmatpush1.msra.mxu0 0.0
    %2108 = vmatprep.subr.mxu0 0.0
    %2109 = vmatpush1.msra.mxu0 0.0
    %2110 = vmatprep.mubr.f32.mxu0 0.0
    %v2111 = vand.u32 %v1705, 4294901760
    %2112 = vmatmul.mubr.f32.gmra.mrb[0].mxu0 %v2111
    %v2113 = vpop.f32.mrb[0].mxu0
    %v2114 = vadd.f32 %v2031, %v2113
    %v2115 = vpop.f32.mrb[0].mxu0
    %2116 = vdwg.mxu0
    %2117 = vmatprep.subr.mxu0 0.0
    %v2118 = vand.u32 %v710, 4294901760
    %2119 = vmatpush1.msra.mxu0 %v2118
    %2120 = vmatprep.subr.mxu0 0.0
    %v2121 = vand.u32 %v711, 4294901760
    %2122 = vmatpush1.msra.mxu0 %v2121
    %2123 = vmatprep.subr.mxu0 0.0
    %v2124 = vand.u32 %v712, 4294901760
    %2125 = vmatpush1.msra.mxu0 %v2124
    %2126 = vmatprep.subr.mxu0 0.0
    %v2127 = vand.u32 %v713, 4294901760
    %2128 = vmatpush1.msra.mxu0 %v2127
    %2129 = vmatprep.subr.mxu0 0.0
    %2130 = vmatpush1.msra.mxu0 0.0
    %2131 = vmatprep.subr.mxu0 0.0
    %2132 = vmatpush1.msra.mxu0 0.0
    %2133 = vmatprep.subr.mxu0 0.0
    %2134 = vmatpush1.msra.mxu0 0.0
    %2135 = vmatprep.subr.mxu0 0.0
    %2136 = vmatpush1.msra.mxu0 0.0
    %2137 = vmatprep.subr.mxu0 0.0
    %2138 = vmatpush1.msra.mxu0 0.0
    %2139 = vmatprep.subr.mxu0 0.0
    %2140 = vmatpush1.msra.mxu0 0.0
    %2141 = vmatprep.subr.mxu0 0.0
    %2142 = vmatpush1.msra.mxu0 0.0
    %2143 = vmatprep.subr.mxu0 0.0
    %2144 = vmatpush1.msra.mxu0 0.0
    %2145 = vmatprep.subr.mxu0 0.0
    %2146 = vmatpush1.msra.mxu0 0.0
    %2147 = vmatprep.subr.mxu0 0.0
    %2148 = vmatpush1.msra.mxu0 0.0
    %2149 = vmatprep.subr.mxu0 0.0
    %2150 = vmatpush1.msra.mxu0 0.0
    %2151 = vmatprep.subr.mxu0 0.0
    %2152 = vmatpush1.msra.mxu0 0.0
    %2153 = vmatprep.subr.mxu0 0.0
    %2154 = vmatpush1.msra.mxu0 0.0
    %2155 = vmatprep.subr.mxu0 0.0
    %2156 = vmatpush1.msra.mxu0 0.0
    %2157 = vmatprep.subr.mxu0 0.0
    %2158 = vmatpush1.msra.mxu0 0.0
    %2159 = vmatprep.subr.mxu0 0.0
    %2160 = vmatpush1.msra.mxu0 0.0
    %2161 = vmatprep.subr.mxu0 0.0
    %2162 = vmatpush1.msra.mxu0 0.0
    %2163 = vmatprep.subr.mxu0 0.0
    %2164 = vmatpush1.msra.mxu0 0.0
    %2165 = vmatprep.subr.mxu0 0.0
    %2166 = vmatpush1.msra.mxu0 0.0
    %2167 = vmatprep.subr.mxu0 0.0
    %2168 = vmatpush1.msra.mxu0 0.0
    %2169 = vmatprep.subr.mxu0 0.0
    %2170 = vmatpush1.msra.mxu0 0.0
    %2171 = vmatprep.subr.mxu0 0.0
    %2172 = vmatpush1.msra.mxu0 0.0
    %2173 = vmatprep.subr.mxu0 0.0
    %2174 = vmatpush1.msra.mxu0 0.0
    %2175 = vmatprep.subr.mxu0 0.0
    %2176 = vmatpush1.msra.mxu0 0.0
    %2177 = vmatprep.subr.mxu0 0.0
    %2178 = vmatpush1.msra.mxu0 0.0
    %2179 = vmatprep.subr.mxu0 0.0
    %2180 = vmatpush1.msra.mxu0 0.0
    %2181 = vmatprep.subr.mxu0 0.0
    %2182 = vmatpush1.msra.mxu0 0.0
    %2183 = vmatprep.subr.mxu0 0.0
    %2184 = vmatpush1.msra.mxu0 0.0
    %2185 = vmatprep.mubr.f32.mxu0 0.0
    %v2186 = vand.u32 %v1705, 4294901760
    %2187 = vmatmul.mubr.f32.gmra.mrb[0].mxu0 %v2186
    %v2188 = vpop.f32.mrb[0].mxu0
    %v2189 = vadd.f32 %v2114, %v2188
    %v2190 = vpop.f32.mrb[0].mxu0
    %2191 = vdwg.mxu0
    %2192 = vrot.lane.b32.xlu0 %v2189, 16
    %v2193 = vpop.permute.xlu0 %2192
    %v2194 = vsel %vm49, %v2193, %v2189
    %2195 = vrot.lane.b32.xlu0 %v2194, 16
    %v2196 = vpop.permute.xlu0 %2195
    %v2197 = vsel %vm49, %v2196, %v2189
    %2199 = vrot.lane.b32.xlu0 %v2197, 127
    %v2200 = vpop.permute.xlu0 %2199
    %v2202 = vsel %vm72, %v2200, 0.0
    %v2203 = vadd.f32 %v1703, %v2202
    %2205 = vset.pattern.permute.xlu0 0
    %2206 = vperm.xlu0 %2205, %v39
    %v2207 = vpop.permute.xlu0 %2206
    %v2209 = vadd.f32 %v2203, %v2207
    %vm2210 = vcmask 125952
    %2211 = vst.msk [vmem:[#allocation2] sm:$0xf] %vm2210, %v2209
    %s2212 = scalar_lea.vmem %s0, 4
    %v2213 = vld [vmem:[%s2212] sm:$0xf]
    %s2214 = scalar_lea.vmem %s1, 1
    %v2215 = vld [vmem:[%s2214] sm:$0x1]
    %v2217 = vlaneseq
    %v2218 = vshrl.u32 %v2217, 7
    %v2219 = vsub.s32 0, %v2218
    %v2220 = vrot.slane %v2215, %v2219
    %v2222 = vmul.f32 %v2213, %v2220
    %2223 = vrot.lane.b32.xlu0 %v2222, 16
    %v2224 = vpop.permute.xlu0 %2223
    %v2225 = vsel %vm49, %v2224, %v2222
    %2226 = vrot.lane.b32.xlu0 %v2225, 16
    %v2227 = vpop.permute.xlu0 %2226
    %v2228 = vsel %vm49, %v2227, %v2222
    %2230 = vrot.lane.b32.xlu0 %v2228, 113
    %v2231 = vpop.permute.xlu0 %2230
    %v2233 = vsel %vm61, %v2231, 0.0
    %2234 = vrot.lane.b32.xlu0 %v2228, 127
    %v2235 = vpop.permute.xlu0 %2234
    %v2237 = vsel %vm72, %v2235, 0.0
    %v2239 = vrot.slane %v2222, 4
    %v2241 = vsel %vm80, %v2233, %v2239
    %v2243 = vsel %vm80, %v2237, 0
    %2245 = vmatprep.subr.mxu0 0.0
    %v2246 = vand.u32 %v2241, 4294901760
    %2247 = vmatpush1.msra.mxu0 %v2246
    %2248 = vmatprep.subr.mxu0 0.0
    %v2249 = vand.u32 %v2243, 4294901760
    %2250 = vmatpush1.msra.mxu0 %v2249
    %2251 = vmatprep.subr.mxu0 0.0
    %2252 = vmatpush1.msra.mxu0 0.0
    %2253 = vmatprep.subr.mxu0 0.0
    %2254 = vmatpush1.msra.mxu0 0.0
    %2255 = vmatprep.subr.mxu0 0.0
    %2256 = vmatpush1.msra.mxu0 0.0
    %2257 = vmatprep.subr.mxu0 0.0
    %2258 = vmatpush1.msra.mxu0 0.0
    %2259 = vmatprep.subr.mxu0 0.0
    %2260 = vmatpush1.msra.mxu0 0.0
    %2261 = vmatprep.subr.mxu0 0.0
    %2262 = vmatpush1.msra.mxu0 0.0
    %2263 = vmatprep.subr.mxu0 0.0
    %2264 = vmatpush1.msra.mxu0 0.0
    %2265 = vmatprep.subr.mxu0 0.0
    %2266 = vmatpush1.msra.mxu0 0.0
    %2267 = vmatprep.subr.mxu0 0.0
    %2268 = vmatpush1.msra.mxu0 0.0
    %2269 = vmatprep.subr.mxu0 0.0
    %2270 = vmatpush1.msra.mxu0 0.0
    %2271 = vmatprep.subr.mxu0 0.0
    %2272 = vmatpush1.msra.mxu0 0.0
    %2273 = vmatprep.subr.mxu0 0.0
    %2274 = vmatpush1.msra.mxu0 0.0
    %2275 = vmatprep.subr.mxu0 0.0
    %2276 = vmatpush1.msra.mxu0 0.0
    %2277 = vmatprep.subr.mxu0 0.0
    %2278 = vmatpush1.msra.mxu0 0.0
    %2279 = vmatprep.subr.mxu0 0.0
    %2280 = vmatpush1.msra.mxu0 0.0
    %2281 = vmatprep.subr.mxu0 0.0
    %2282 = vmatpush1.msra.mxu0 0.0
    %2283 = vmatprep.subr.mxu0 0.0
    %2284 = vmatpush1.msra.mxu0 0.0
    %2285 = vmatprep.subr.mxu0 0.0
    %2286 = vmatpush1.msra.mxu0 0.0
    %2287 = vmatprep.subr.mxu0 0.0
    %2288 = vmatpush1.msra.mxu0 0.0
    %2289 = vmatprep.subr.mxu0 0.0
    %2290 = vmatpush1.msra.mxu0 0.0
    %2291 = vmatprep.subr.mxu0 0.0
    %2292 = vmatpush1.msra.mxu0 0.0
    %2293 = vmatprep.subr.mxu0 0.0
    %2294 = vmatpush1.msra.mxu0 0.0
    %2295 = vmatprep.subr.mxu0 0.0
    %2296 = vmatpush1.msra.mxu0 0.0
    %2297 = vmatprep.subr.mxu0 0.0
    %2298 = vmatpush1.msra.mxu0 0.0
    %2299 = vmatprep.subr.mxu0 0.0
    %2300 = vmatpush1.msra.mxu0 0.0
    %2301 = vmatprep.subr.mxu0 0.0
    %2302 = vmatpush1.msra.mxu0 0.0
    %2303 = vmatprep.subr.mxu0 0.0
    %2304 = vmatpush1.msra.mxu0 0.0
    %2305 = vmatprep.subr.mxu0 0.0
    %2306 = vmatpush1.msra.mxu0 0.0
    %2307 = vmatprep.subr.mxu0 0.0
    %2308 = vmatpush1.msra.mxu0 0.0
    %2309 = vmatprep.subr.mxu0 0.0
    %2310 = vmatpush1.msra.mxu0 0.0
    %2311 = vmatprep.mubr.f32.mxu0 0.0
    %v2312 = vand.u32 %v104, 4294901760
    %v2313 = vsub.f32 %v104, %v2312
    %v2314 = vand.u32 %v2313, 4294901760
    %v2315 = vsub.f32 %v2313, %v2314
    %v2316 = vand.u32 %v2315, 4294901760
    %2317 = vmatmul.mubr.f32.gmra.mrb[0].mxu0 %v2316
    %v2318 = vpop.f32.mrb[0].mxu0
    %v2319 = vadd.f32 %v85, %v2318
    %v2320 = vpop.f32.mrb[0].mxu0
    %2321 = vmatprep.mubr.f32.mxu0 0.0
    %v2322 = vand.u32 %v107, 4294901760
    %v2323 = vsub.f32 %v107, %v2322
    %v2324 = vand.u32 %v2323, 4294901760
    %v2325 = vsub.f32 %v2323, %v2324
    %v2326 = vand.u32 %v2325, 4294901760
    %2327 = vmatmul.mubr.f32.gmra.mrb[0].mxu0 %v2326
    %v2328 = vpop.f32.mrb[0].mxu0
    %v2329 = vadd.f32 %v90, %v2328
    %v2330 = vpop.f32.mrb[0].mxu0
    %2331 = vmatprep.mubr.f32.mxu0 0.0
    %v2332 = vand.u32 %v110, 4294901760
    %v2333 = vsub.f32 %v110, %v2332
    %v2334 = vand.u32 %v2333, 4294901760
    %v2335 = vsub.f32 %v2333, %v2334
    %v2336 = vand.u32 %v2335, 4294901760
    %2337 = vmatmul.mubr.f32.gmra.mrb[0].mxu0 %v2336
    %v2338 = vpop.f32.mrb[0].mxu0
    %v2339 = vadd.f32 %v95, %v2338
    %v2340 = vpop.f32.mrb[0].mxu0
    %2341 = vmatprep.mubr.f32.mxu0 0.0
    %v2342 = vand.u32 %v113, 4294901760
    %v2343 = vsub.f32 %v113, %v2342
    %v2344 = vand.u32 %v2343, 4294901760
    %v2345 = vsub.f32 %v2343, %v2344
    %v2346 = vand.u32 %v2345, 4294901760
    %2347 = vmatmul.mubr.f32.gmra.mrb[0].mxu0 %v2346
    %v2348 = vpop.f32.mrb[0].mxu0
    %v2349 = vadd.f32 %v100, %v2348
    %v2350 = vpop.f32.mrb[0].mxu0
    %2351 = vdwg.mxu0
    %2352 = vmatprep.subr.mxu0 0.0
    %v2353 = vand.u32 %v2241, 4294901760
    %v2354 = vsub.f32 %v2241, %v2353
    %v2355 = vand.u32 %v2354, 4294901760
    %v2356 = vsub.f32 %v2354, %v2355
    %v2357 = vand.u32 %v2356, 4294901760
    %2358 = vmatpush1.msra.mxu0 %v2357
    %2359 = vmatprep.subr.mxu0 0.0
    %v2360 = vand.u32 %v2243, 4294901760
    %v2361 = vsub.f32 %v2243, %v2360
    %v2362 = vand.u32 %v2361, 4294901760
    %v2363 = vsub.f32 %v2361, %v2362
    %v2364 = vand.u32 %v2363, 4294901760
    %2365 = vmatpush1.msra.mxu0 %v2364
    %2366 = vmatprep.subr.mxu0 0.0
    %2367 = vmatpush1.msra.mxu0 0.0
    %2368 = vmatprep.subr.mxu0 0.0
    %2369 = vmatpush1.msra.mxu0 0.0
    %2370 = vmatprep.subr.mxu0 0.0
    %2371 = vmatpush1.msra.mxu0 0.0
    %2372 = vmatprep.subr.mxu0 0.0
    %2373 = vmatpush1.msra.mxu0 0.0
    %2374 = vmatprep.subr.mxu0 0.0
    %2375 = vmatpush1.msra.mxu0 0.0
    %2376 = vmatprep.subr.mxu0 0.0
    %2377 = vmatpush1.msra.mxu0 0.0
    %2378 = vmatprep.subr.mxu0 0.0
    %2379 = vmatpush1.msra.mxu0 0.0
    %2380 = vmatprep.subr.mxu0 0.0
    %2381 = vmatpush1.msra.mxu0 0.0
    %2382 = vmatprep.subr.mxu0 0.0
    %2383 = vmatpush1.msra.mxu0 0.0
    %2384 = vmatprep.subr.mxu0 0.0
    %2385 = vmatpush1.msra.mxu0 0.0
    %2386 = vmatprep.subr.mxu0 0.0
    %2387 = vmatpush1.msra.mxu0 0.0
    %2388 = vmatprep.subr.mxu0 0.0
    %2389 = vmatpush1.msra.mxu0 0.0
    %2390 = vmatprep.subr.mxu0 0.0
    %2391 = vmatpush1.msra.mxu0 0.0
    %2392 = vmatprep.subr.mxu0 0.0
    %2393 = vmatpush1.msra.mxu0 0.0
    %2394 = vmatprep.subr.mxu0 0.0
    %2395 = vmatpush1.msra.mxu0 0.0
    %2396 = vmatprep.subr.mxu0 0.0
    %2397 = vmatpush1.msra.mxu0 0.0
    %2398 = vmatprep.subr.mxu0 0.0
    %2399 = vmatpush1.msra.mxu0 0.0
    %2400 = vmatprep.subr.mxu0 0.0
    %2401 = vmatpush1.msra.mxu0 0.0
    %2402 = vmatprep.subr.mxu0 0.0
    %2403 = vmatpush1.msra.mxu0 0.0
    %2404 = vmatprep.subr.mxu0 0.0
    %2405 = vmatpush1.msra.mxu0 0.0
    %2406 = vmatprep.subr.mxu0 0.0
    %2407 = vmatpush1.msra.mxu0 0.0
    %2408 = vmatprep.subr.mxu0 0.0
    %2409 = vmatpush1.msra.mxu0 0.0
    %2410 = vmatprep.subr.mxu0 0.0
    %2411 = vmatpush1.msra.mxu0 0.0
    %2412 = vmatprep.subr.mxu0 0.0
    %2413 = vmatpush1.msra.mxu0 0.0
    %2414 = vmatprep.subr.mxu0 0.0
    %2415 = vmatpush1.msra.mxu0 0.0
    %2416 = vmatprep.subr.mxu0 0.0
    %2417 = vmatpush1.msra.mxu0 0.0
    %2418 = vmatprep.subr.mxu0 0.0
    %2419 = vmatpush1.msra.mxu0 0.0
    %2420 = vmatprep.subr.mxu0 0.0
    %2421 = vmatpush1.msra.mxu0 0.0
    %2422 = vmatprep.subr.mxu0 0.0
    %2423 = vmatpush1.msra.mxu0 0.0
    %2424 = vmatprep.subr.mxu0 0.0
    %2425 = vmatpush1.msra.mxu0 0.0
    %2426 = vmatprep.mubr.f32.mxu0 0.0
    %v2427 = vand.u32 %v104, 4294901760
    %2428 = vmatmul.mubr.f32.gmra.mrb[0].mxu0 %v2427
    %v2429 = vpop.f32.mrb[0].mxu0
    %v2430 = vadd.f32 %v2319, %v2429
    %v2431 = vpop.f32.mrb[0].mxu0
    %2432 = vmatprep.mubr.f32.mxu0 0.0
    %v2433 = vand.u32 %v107, 4294901760
    %2434 = vmatmul.mubr.f32.gmra.mrb[0].mxu0 %v2433
    %v2435 = vpop.f32.mrb[0].mxu0
    %v2436 = vadd.f32 %v2329, %v2435
    %v2437 = vpop.f32.mrb[0].mxu0
    %2438 = vmatprep.mubr.f32.mxu0 0.0
    %v2439 = vand.u32 %v110, 4294901760
    %2440 = vmatmul.mubr.f32.gmra.mrb[0].mxu0 %v2439
    %v2441 = vpop.f32.mrb[0].mxu0
    %v2442 = vadd.f32 %v2339, %v2441
    %v2443 = vpop.f32.mrb[0].mxu0
    %2444 = vmatprep.mubr.f32.mxu0 0.0
    %v2445 = vand.u32 %v113, 4294901760
    %2446 = vmatmul.mubr.f32.gmra.mrb[0].mxu0 %v2445
    %v2447 = vpop.f32.mrb[0].mxu0
    %v2448 = vadd.f32 %v2349, %v2447
    %v2449 = vpop.f32.mrb[0].mxu0
    %2450 = vdwg.mxu0
    %2451 = vmatprep.subr.mxu0 0.0
    %v2452 = vand.u32 %v2241, 4294901760
    %v2453 = vsub.f32 %v2241, %v2452
    %2454 = vmatpush1.msra.mxu0 %v2453
    %2455 = vmatprep.subr.mxu0 0.0
    %v2456 = vand.u32 %v2243, 4294901760
    %v2457 = vsub.f32 %v2243, %v2456
    %2458 = vmatpush1.msra.mxu0 %v2457
    %2459 = vmatprep.subr.mxu0 0.0
    %2460 = vmatpush1.msra.mxu0 0.0
    %2461 = vmatprep.subr.mxu0 0.0
    %2462 = vmatpush1.msra.mxu0 0.0
    %2463 = vmatprep.subr.mxu0 0.0
    %2464 = vmatpush1.msra.mxu0 0.0
    %2465 = vmatprep.subr.mxu0 0.0
    %2466 = vmatpush1.msra.mxu0 0.0
    %2467 = vmatprep.subr.mxu0 0.0
    %2468 = vmatpush1.msra.mxu0 0.0
    %2469 = vmatprep.subr.mxu0 0.0
    %2470 = vmatpush1.msra.mxu0 0.0
    %2471 = vmatprep.subr.mxu0 0.0
    %2472 = vmatpush1.msra.mxu0 0.0
    %2473 = vmatprep.subr.mxu0 0.0
    %2474 = vmatpush1.msra.mxu0 0.0
    %2475 = vmatprep.subr.mxu0 0.0
    %2476 = vmatpush1.msra.mxu0 0.0
    %2477 = vmatprep.subr.mxu0 0.0
    %2478 = vmatpush1.msra.mxu0 0.0
    %2479 = vmatprep.subr.mxu0 0.0
    %2480 = vmatpush1.msra.mxu0 0.0
    %2481 = vmatprep.subr.mxu0 0.0
    %2482 = vmatpush1.msra.mxu0 0.0
    %2483 = vmatprep.subr.mxu0 0.0
    %2484 = vmatpush1.msra.mxu0 0.0
    %2485 = vmatprep.subr.mxu0 0.0
    %2486 = vmatpush1.msra.mxu0 0.0
    %2487 = vmatprep.subr.mxu0 0.0
    %2488 = vmatpush1.msra.mxu0 0.0
    %2489 = vmatprep.subr.mxu0 0.0
    %2490 = vmatpush1.msra.mxu0 0.0
    %2491 = vmatprep.subr.mxu0 0.0
    %2492 = vmatpush1.msra.mxu0 0.0
    %2493 = vmatprep.subr.mxu0 0.0
    %2494 = vmatpush1.msra.mxu0 0.0
    %2495 = vmatprep.subr.mxu0 0.0
    %2496 = vmatpush1.msra.mxu0 0.0
    %2497 = vmatprep.subr.mxu0 0.0
    %2498 = vmatpush1.msra.mxu0 0.0
    %2499 = vmatprep.subr.mxu0 0.0
    %2500 = vmatpush1.msra.mxu0 0.0
    %2501 = vmatprep.subr.mxu0 0.0
    %2502 = vmatpush1.msra.mxu0 0.0
    %2503 = vmatprep.subr.mxu0 0.0
    %2504 = vmatpush1.msra.mxu0 0.0
    %2505 = vmatprep.subr.mxu0 0.0
    %2506 = vmatpush1.msra.mxu0 0.0
    %2507 = vmatprep.subr.mxu0 0.0
    %2508 = vmatpush1.msra.mxu0 0.0
    %2509 = vmatprep.subr.mxu0 0.0
    %2510 = vmatpush1.msra.mxu0 0.0
    %2511 = vmatprep.subr.mxu0 0.0
    %2512 = vmatpush1.msra.mxu0 0.0
    %2513 = vmatprep.subr.mxu0 0.0
    %2514 = vmatpush1.msra.mxu0 0.0
    %2515 = vmatprep.subr.mxu0 0.0
    %2516 = vmatpush1.msra.mxu0 0.0
    %2517 = vmatprep.subr.mxu0 0.0
    %2518 = vmatpush1.msra.mxu0 0.0
    %2519 = vmatprep.mubr.f32.mxu0 0.0
    %v2520 = vand.u32 %v104, 4294901760
    %v2521 = vsub.f32 %v104, %v2520
    %2522 = vmatmul.mubr.f32.gmra.mrb[0].mxu0 %v2521
    %v2523 = vpop.f32.mrb[0].mxu0
    %v2524 = vadd.f32 %v2430, %v2523
    %v2525 = vpop.f32.mrb[0].mxu0
    %2526 = vmatprep.mubr.f32.mxu0 0.0
    %v2527 = vand.u32 %v107, 4294901760
    %v2528 = vsub.f32 %v107, %v2527
    %2529 = vmatmul.mubr.f32.gmra.mrb[0].mxu0 %v2528
    %v2530 = vpop.f32.mrb[0].mxu0
    %v2531 = vadd.f32 %v2436, %v2530
    %v2532 = vpop.f32.mrb[0].mxu0
    %2533 = vmatprep.mubr.f32.mxu0 0.0
    %v2534 = vand.u32 %v110, 4294901760
    %v2535 = vsub.f32 %v110, %v2534
    %2536 = vmatmul.mubr.f32.gmra.mrb[0].mxu0 %v2535
    %v2537 = vpop.f32.mrb[0].mxu0
    %v2538 = vadd.f32 %v2442, %v2537
    %v2539 = vpop.f32.mrb[0].mxu0
    %2540 = vmatprep.mubr.f32.mxu0 0.0
    %v2541 = vand.u32 %v113, 4294901760
    %v2542 = vsub.f32 %v113, %v2541
    %2543 = vmatmul.mubr.f32.gmra.mrb[0].mxu0 %v2542
    %v2544 = vpop.f32.mrb[0].mxu0
    %v2545 = vadd.f32 %v2448, %v2544
    %v2546 = vpop.f32.mrb[0].mxu0
    %2547 = vdwg.mxu0
    %2548 = vmatprep.subr.mxu0 0.0
    %v2549 = vand.u32 %v2241, 4294901760
    %2550 = vmatpush1.msra.mxu0 %v2549
    %2551 = vmatprep.subr.mxu0 0.0
    %v2552 = vand.u32 %v2243, 4294901760
    %2553 = vmatpush1.msra.mxu0 %v2552
    %2554 = vmatprep.subr.mxu0 0.0
    %2555 = vmatpush1.msra.mxu0 0.0
    %2556 = vmatprep.subr.mxu0 0.0
    %2557 = vmatpush1.msra.mxu0 0.0
    %2558 = vmatprep.subr.mxu0 0.0
    %2559 = vmatpush1.msra.mxu0 0.0
    %2560 = vmatprep.subr.mxu0 0.0
    %2561 = vmatpush1.msra.mxu0 0.0
    %2562 = vmatprep.subr.mxu0 0.0
    %2563 = vmatpush1.msra.mxu0 0.0
    %2564 = vmatprep.subr.mxu0 0.0
    %2565 = vmatpush1.msra.mxu0 0.0
    %2566 = vmatprep.subr.mxu0 0.0
    %2567 = vmatpush1.msra.mxu0 0.0
    %2568 = vmatprep.subr.mxu0 0.0
    %2569 = vmatpush1.msra.mxu0 0.0
    %2570 = vmatprep.subr.mxu0 0.0
    %2571 = vmatpush1.msra.mxu0 0.0
    %2572 = vmatprep.subr.mxu0 0.0
    %2573 = vmatpush1.msra.mxu0 0.0
    %2574 = vmatprep.subr.mxu0 0.0
    %2575 = vmatpush1.msra.mxu0 0.0
    %2576 = vmatprep.subr.mxu0 0.0
    %2577 = vmatpush1.msra.mxu0 0.0
    %2578 = vmatprep.subr.mxu0 0.0
    %2579 = vmatpush1.msra.mxu0 0.0
    %2580 = vmatprep.subr.mxu0 0.0
    %2581 = vmatpush1.msra.mxu0 0.0
    %2582 = vmatprep.subr.mxu0 0.0
    %2583 = vmatpush1.msra.mxu0 0.0
    %2584 = vmatprep.subr.mxu0 0.0
    %2585 = vmatpush1.msra.mxu0 0.0
    %2586 = vmatprep.subr.mxu0 0.0
    %2587 = vmatpush1.msra.mxu0 0.0
    %2588 = vmatprep.subr.mxu0 0.0
    %2589 = vmatpush1.msra.mxu0 0.0
    %2590 = vmatprep.subr.mxu0 0.0
    %2591 = vmatpush1.msra.mxu0 0.0
    %2592 = vmatprep.subr.mxu0 0.0
    %2593 = vmatpush1.msra.mxu0 0.0
    %2594 = vmatprep.subr.mxu0 0.0
    %2595 = vmatpush1.msra.mxu0 0.0
    %2596 = vmatprep.subr.mxu0 0.0
    %2597 = vmatpush1.msra.mxu0 0.0
    %2598 = vmatprep.subr.mxu0 0.0
    %2599 = vmatpush1.msra.mxu0 0.0
    %2600 = vmatprep.subr.mxu0 0.0
    %2601 = vmatpush1.msra.mxu0 0.0
    %2602 = vmatprep.subr.mxu0 0.0
    %2603 = vmatpush1.msra.mxu0 0.0
    %2604 = vmatprep.subr.mxu0 0.0
    %2605 = vmatpush1.msra.mxu0 0.0
    %2606 = vmatprep.subr.mxu0 0.0
    %2607 = vmatpush1.msra.mxu0 0.0
    %2608 = vmatprep.subr.mxu0 0.0
    %2609 = vmatpush1.msra.mxu0 0.0
    %2610 = vmatprep.subr.mxu0 0.0
    %2611 = vmatpush1.msra.mxu0 0.0
    %2612 = vmatprep.subr.mxu0 0.0
    %2613 = vmatpush1.msra.mxu0 0.0
    %2614 = vmatprep.mubr.f32.mxu0 0.0
    %v2615 = vand.u32 %v104, 4294901760
    %v2616 = vsub.f32 %v104, %v2615
    %v2617 = vand.u32 %v2616, 4294901760
    %2618 = vmatmul.mubr.f32.gmra.mrb[0].mxu0 %v2617
    %v2619 = vpop.f32.mrb[0].mxu0
    %v2620 = vadd.f32 %v2524, %v2619
    %v2621 = vpop.f32.mrb[0].mxu0
    %2622 = vmatprep.mubr.f32.mxu0 0.0
    %v2623 = vand.u32 %v107, 4294901760
    %v2624 = vsub.f32 %v107, %v2623
    %v2625 = vand.u32 %v2624, 4294901760
    %2626 = vmatmul.mubr.f32.gmra.mrb[0].mxu0 %v2625
    %v2627 = vpop.f32.mrb[0].mxu0
    %v2628 = vadd.f32 %v2531, %v2627
    %v2629 = vpop.f32.mrb[0].mxu0
    %2630 = vmatprep.mubr.f32.mxu0 0.0
    %v2631 = vand.u32 %v110, 4294901760
    %v2632 = vsub.f32 %v110, %v2631
    %v2633 = vand.u32 %v2632, 4294901760
    %2634 = vmatmul.mubr.f32.gmra.mrb[0].mxu0 %v2633
    %v2635 = vpop.f32.mrb[0].mxu0
    %v2636 = vadd.f32 %v2538, %v2635
    %v2637 = vpop.f32.mrb[0].mxu0
    %2638 = vmatprep.mubr.f32.mxu0 0.0
    %v2639 = vand.u32 %v113, 4294901760
    %v2640 = vsub.f32 %v113, %v2639
    %v2641 = vand.u32 %v2640, 4294901760
    %2642 = vmatmul.mubr.f32.gmra.mrb[0].mxu0 %v2641
    %v2643 = vpop.f32.mrb[0].mxu0
    %v2644 = vadd.f32 %v2545, %v2643
    %v2645 = vpop.f32.mrb[0].mxu0
    %2646 = vdwg.mxu0
    %2647 = vmatprep.subr.mxu0 0.0
    %v2648 = vand.u32 %v2241, 4294901760
    %v2649 = vsub.f32 %v2241, %v2648
    %v2650 = vand.u32 %v2649, 4294901760
    %2651 = vmatpush1.msra.mxu0 %v2650
    %2652 = vmatprep.subr.mxu0 0.0
    %v2653 = vand.u32 %v2243, 4294901760
    %v2654 = vsub.f32 %v2243, %v2653
    %v2655 = vand.u32 %v2654, 4294901760
    %2656 = vmatpush1.msra.mxu0 %v2655
    %2657 = vmatprep.subr.mxu0 0.0
    %2658 = vmatpush1.msra.mxu0 0.0
    %2659 = vmatprep.subr.mxu0 0.0
    %2660 = vmatpush1.msra.mxu0 0.0
    %2661 = vmatprep.subr.mxu0 0.0
    %2662 = vmatpush1.msra.mxu0 0.0
    %2663 = vmatprep.subr.mxu0 0.0
    %2664 = vmatpush1.msra.mxu0 0.0
    %2665 = vmatprep.subr.mxu0 0.0
    %2666 = vmatpush1.msra.mxu0 0.0
    %2667 = vmatprep.subr.mxu0 0.0
    %2668 = vmatpush1.msra.mxu0 0.0
    %2669 = vmatprep.subr.mxu0 0.0
    %2670 = vmatpush1.msra.mxu0 0.0
    %2671 = vmatprep.subr.mxu0 0.0
    %2672 = vmatpush1.msra.mxu0 0.0
    %2673 = vmatprep.subr.mxu0 0.0
    %2674 = vmatpush1.msra.mxu0 0.0
    %2675 = vmatprep.subr.mxu0 0.0
    %2676 = vmatpush1.msra.mxu0 0.0
    %2677 = vmatprep.subr.mxu0 0.0
    %2678 = vmatpush1.msra.mxu0 0.0
    %2679 = vmatprep.subr.mxu0 0.0
    %2680 = vmatpush1.msra.mxu0 0.0
    %2681 = vmatprep.subr.mxu0 0.0
    %2682 = vmatpush1.msra.mxu0 0.0
    %2683 = vmatprep.subr.mxu0 0.0
    %2684 = vmatpush1.msra.mxu0 0.0
    %2685 = vmatprep.subr.mxu0 0.0
    %2686 = vmatpush1.msra.mxu0 0.0
    %2687 = vmatprep.subr.mxu0 0.0
    %2688 = vmatpush1.msra.mxu0 0.0
    %2689 = vmatprep.subr.mxu0 0.0
    %2690 = vmatpush1.msra.mxu0 0.0
    %2691 = vmatprep.subr.mxu0 0.0
    %2692 = vmatpush1.msra.mxu0 0.0
    %2693 = vmatprep.subr.mxu0 0.0
    %2694 = vmatpush1.msra.mxu0 0.0
    %2695 = vmatprep.subr.mxu0 0.0
    %2696 = vmatpush1.msra.mxu0 0.0
    %2697 = vmatprep.subr.mxu0 0.0
    %2698 = vmatpush1.msra.mxu0 0.0
    %2699 = vmatprep.subr.mxu0 0.0
    %2700 = vmatpush1.msra.mxu0 0.0
    %2701 = vmatprep.subr.mxu0 0.0
    %2702 = vmatpush1.msra.mxu0 0.0
    %2703 = vmatprep.subr.mxu0 0.0
    %2704 = vmatpush1.msra.mxu0 0.0
    %2705 = vmatprep.subr.mxu0 0.0
    %2706 = vmatpush1.msra.mxu0 0.0
    %2707 = vmatprep.subr.mxu0 0.0
    %2708 = vmatpush1.msra.mxu0 0.0
    %2709 = vmatprep.subr.mxu0 0.0
    %2710 = vmatpush1.msra.mxu0 0.0
    %2711 = vmatprep.subr.mxu0 0.0
    %2712 = vmatpush1.msra.mxu0 0.0
    %2713 = vmatprep.subr.mxu0 0.0
    %2714 = vmatpush1.msra.mxu0 0.0
    %2715 = vmatprep.subr.mxu0 0.0
    %2716 = vmatpush1.msra.mxu0 0.0
    %2717 = vmatprep.mubr.f32.mxu0 0.0
    %v2718 = vand.u32 %v104, 4294901760
    %2719 = vmatmul.mubr.f32.gmra.mrb[0].mxu0 %v2718
    %v2720 = vpop.f32.mrb[0].mxu0
    %v2721 = vadd.f32 %v2620, %v2720
    %v2722 = vpop.f32.mrb[0].mxu0
    %2723 = vmatprep.mubr.f32.mxu0 0.0
    %v2724 = vand.u32 %v107, 4294901760
    %2725 = vmatmul.mubr.f32.gmra.mrb[0].mxu0 %v2724
    %v2726 = vpop.f32.mrb[0].mxu0
    %v2727 = vadd.f32 %v2628, %v2726
    %v2728 = vpop.f32.mrb[0].mxu0
    %2729 = vmatprep.mubr.f32.mxu0 0.0
    %v2730 = vand.u32 %v110, 4294901760
    %2731 = vmatmul.mubr.f32.gmra.mrb[0].mxu0 %v2730
    %v2732 = vpop.f32.mrb[0].mxu0
    %v2733 = vadd.f32 %v2636, %v2732
    %v2734 = vpop.f32.mrb[0].mxu0
    %2735 = vmatprep.mubr.f32.mxu0 0.0
    %v2736 = vand.u32 %v113, 4294901760
    %2737 = vmatmul.mubr.f32.gmra.mrb[0].mxu0 %v2736
    %v2738 = vpop.f32.mrb[0].mxu0
    %v2739 = vadd.f32 %v2644, %v2738
    %v2740 = vpop.f32.mrb[0].mxu0
    %2741 = vdwg.mxu0
    %2742 = vmatprep.subr.mxu0 0.0
    %v2743 = vand.u32 %v2241, 4294901760
    %2744 = vmatpush1.msra.mxu0 %v2743
    %2745 = vmatprep.subr.mxu0 0.0
    %v2746 = vand.u32 %v2243, 4294901760
    %2747 = vmatpush1.msra.mxu0 %v2746
    %2748 = vmatprep.subr.mxu0 0.0
    %2749 = vmatpush1.msra.mxu0 0.0
    %2750 = vmatprep.subr.mxu0 0.0
    %2751 = vmatpush1.msra.mxu0 0.0
    %2752 = vmatprep.subr.mxu0 0.0
    %2753 = vmatpush1.msra.mxu0 0.0
    %2754 = vmatprep.subr.mxu0 0.0
    %2755 = vmatpush1.msra.mxu0 0.0
    %2756 = vmatprep.subr.mxu0 0.0
    %2757 = vmatpush1.msra.mxu0 0.0
    %2758 = vmatprep.subr.mxu0 0.0
    %2759 = vmatpush1.msra.mxu0 0.0
    %2760 = vmatprep.subr.mxu0 0.0
    %2761 = vmatpush1.msra.mxu0 0.0
    %2762 = vmatprep.subr.mxu0 0.0
    %2763 = vmatpush1.msra.mxu0 0.0
    %2764 = vmatprep.subr.mxu0 0.0
    %2765 = vmatpush1.msra.mxu0 0.0
    %2766 = vmatprep.subr.mxu0 0.0
    %2767 = vmatpush1.msra.mxu0 0.0
    %2768 = vmatprep.subr.mxu0 0.0
    %2769 = vmatpush1.msra.mxu0 0.0
    %2770 = vmatprep.subr.mxu0 0.0
    %2771 = vmatpush1.msra.mxu0 0.0
    %2772 = vmatprep.subr.mxu0 0.0
    %2773 = vmatpush1.msra.mxu0 0.0
    %2774 = vmatprep.subr.mxu0 0.0
    %2775 = vmatpush1.msra.mxu0 0.0
    %2776 = vmatprep.subr.mxu0 0.0
    %2777 = vmatpush1.msra.mxu0 0.0
    %2778 = vmatprep.subr.mxu0 0.0
    %2779 = vmatpush1.msra.mxu0 0.0
    %2780 = vmatprep.subr.mxu0 0.0
    %2781 = vmatpush1.msra.mxu0 0.0
    %2782 = vmatprep.subr.mxu0 0.0
    %2783 = vmatpush1.msra.mxu0 0.0
    %2784 = vmatprep.subr.mxu0 0.0
    %2785 = vmatpush1.msra.mxu0 0.0
    %2786 = vmatprep.subr.mxu0 0.0
    %2787 = vmatpush1.msra.mxu0 0.0
    %2788 = vmatprep.subr.mxu0 0.0
    %2789 = vmatpush1.msra.mxu0 0.0
    %2790 = vmatprep.subr.mxu0 0.0
    %2791 = vmatpush1.msra.mxu0 0.0
    %2792 = vmatprep.subr.mxu0 0.0
    %2793 = vmatpush1.msra.mxu0 0.0
    %2794 = vmatprep.subr.mxu0 0.0
    %2795 = vmatpush1.msra.mxu0 0.0
    %2796 = vmatprep.subr.mxu0 0.0
    %2797 = vmatpush1.msra.mxu0 0.0
    %2798 = vmatprep.subr.mxu0 0.0
    %2799 = vmatpush1.msra.mxu0 0.0
    %2800 = vmatprep.subr.mxu0 0.0
    %2801 = vmatpush1.msra.mxu0 0.0
    %2802 = vmatprep.subr.mxu0 0.0
    %2803 = vmatpush1.msra.mxu0 0.0
    %2804 = vmatprep.subr.mxu0 0.0
    %2805 = vmatpush1.msra.mxu0 0.0
    %2806 = vmatprep.subr.mxu0 0.0
    %2807 = vmatpush1.msra.mxu0 0.0
    %2808 = vmatprep.mubr.f32.mxu0 0.0
    %v2809 = vand.u32 %v104, 4294901760
    %2810 = vmatmul.mubr.f32.gmra.mrb[0].mxu0 %v2809
    %v2811 = vpop.f32.mrb[0].mxu0
    %v2812 = vadd.f32 %v2721, %v2811
    %v2813 = vpop.f32.mrb[0].mxu0
    %2814 = vmatprep.mubr.f32.mxu0 0.0
    %v2815 = vand.u32 %v107, 4294901760
    %2816 = vmatmul.mubr.f32.gmra.mrb[0].mxu0 %v2815
    %v2817 = vpop.f32.mrb[0].mxu0
    %v2818 = vadd.f32 %v2727, %v2817
    %v2819 = vpop.f32.mrb[0].mxu0
    %2820 = vmatprep.mubr.f32.mxu0 0.0
    %v2821 = vand.u32 %v110, 4294901760
    %2822 = vmatmul.mubr.f32.gmra.mrb[0].mxu0 %v2821
    %v2823 = vpop.f32.mrb[0].mxu0
    %v2824 = vadd.f32 %v2733, %v2823
    %v2825 = vpop.f32.mrb[0].mxu0
    %2826 = vmatprep.mubr.f32.mxu0 0.0
    %v2827 = vand.u32 %v113, 4294901760
    %2828 = vmatmul.mubr.f32.gmra.mrb[0].mxu0 %v2827
    %v2829 = vpop.f32.mrb[0].mxu0
    %v2830 = vadd.f32 %v2739, %v2829
    %v2831 = vpop.f32.mrb[0].mxu0
    %2832 = vdwg.mxu0
    %v2833 = vmax.f32 %v2812, 0.0
    %v2834 = vmax.f32 %v2818, 0.0
    %v2835 = vmax.f32 %v2824, 0.0
    %v2836 = vmax.f32 %v2830, 0.0
    %v2837 = vmul.f32 %v2833, %v2220
    %v2838 = vmul.f32 %v2834, %v2220
    %v2839 = vmul.f32 %v2835, %v2220
    %v2840 = vmul.f32 %v2836, %v2220
    %2841 = vmatprep.subr.mxu0 0.0
    %v2842 = vand.u32 %v2837, 4294901760
    %2843 = vmatpush1.msra.mxu0 %v2842
    %2844 = vmatprep.subr.mxu0 0.0
    %v2845 = vand.u32 %v2838, 4294901760
    %2846 = vmatpush1.msra.mxu0 %v2845
    %2847 = vmatprep.subr.mxu0 0.0
    %v2848 = vand.u32 %v2839, 4294901760
    %2849 = vmatpush1.msra.mxu0 %v2848
    %2850 = vmatprep.subr.mxu0 0.0
    %v2851 = vand.u32 %v2840, 4294901760
    %2852 = vmatpush1.msra.mxu0 %v2851
    %2853 = vmatprep.subr.mxu0 0.0
    %2854 = vmatpush1.msra.mxu0 0.0
    %2855 = vmatprep.subr.mxu0 0.0
    %2856 = vmatpush1.msra.mxu0 0.0
    %2857 = vmatprep.subr.mxu0 0.0
    %2858 = vmatpush1.msra.mxu0 0.0
    %2859 = vmatprep.subr.mxu0 0.0
    %2860 = vmatpush1.msra.mxu0 0.0
    %2861 = vmatprep.subr.mxu0 0.0
    %2862 = vmatpush1.msra.mxu0 0.0
    %2863 = vmatprep.subr.mxu0 0.0
    %2864 = vmatpush1.msra.mxu0 0.0
    %2865 = vmatprep.subr.mxu0 0.0
    %2866 = vmatpush1.msra.mxu0 0.0
    %2867 = vmatprep.subr.mxu0 0.0
    %2868 = vmatpush1.msra.mxu0 0.0
    %2869 = vmatprep.subr.mxu0 0.0
    %2870 = vmatpush1.msra.mxu0 0.0
    %2871 = vmatprep.subr.mxu0 0.0
    %2872 = vmatpush1.msra.mxu0 0.0
    %2873 = vmatprep.subr.mxu0 0.0
    %2874 = vmatpush1.msra.mxu0 0.0
    %2875 = vmatprep.subr.mxu0 0.0
    %2876 = vmatpush1.msra.mxu0 0.0
    %2877 = vmatprep.subr.mxu0 0.0
    %2878 = vmatpush1.msra.mxu0 0.0
    %2879 = vmatprep.subr.mxu0 0.0
    %2880 = vmatpush1.msra.mxu0 0.0
    %2881 = vmatprep.subr.mxu0 0.0
    %2882 = vmatpush1.msra.mxu0 0.0
    %2883 = vmatprep.subr.mxu0 0.0
    %2884 = vmatpush1.msra.mxu0 0.0
    %2885 = vmatprep.subr.mxu0 0.0
    %2886 = vmatpush1.msra.mxu0 0.0
    %2887 = vmatprep.subr.mxu0 0.0
    %2888 = vmatpush1.msra.mxu0 0.0
    %2889 = vmatprep.subr.mxu0 0.0
    %2890 = vmatpush1.msra.mxu0 0.0
    %2891 = vmatprep.subr.mxu0 0.0
    %2892 = vmatpush1.msra.mxu0 0.0
    %2893 = vmatprep.subr.mxu0 0.0
    %2894 = vmatpush1.msra.mxu0 0.0
    %2895 = vmatprep.subr.mxu0 0.0
    %2896 = vmatpush1.msra.mxu0 0.0
    %2897 = vmatprep.subr.mxu0 0.0
    %2898 = vmatpush1.msra.mxu0 0.0
    %2899 = vmatprep.subr.mxu0 0.0
    %2900 = vmatpush1.msra.mxu0 0.0
    %2901 = vmatprep.subr.mxu0 0.0
    %2902 = vmatpush1.msra.mxu0 0.0
    %2903 = vmatprep.subr.mxu0 0.0
    %2904 = vmatpush1.msra.mxu0 0.0
    %2905 = vmatprep.subr.mxu0 0.0
    %2906 = vmatpush1.msra.mxu0 0.0
    %2907 = vmatprep.subr.mxu0 0.0
    %2908 = vmatpush1.msra.mxu0 0.0
    %2909 = vmatprep.mubr.f32.mxu0 0.0
    %v2910 = vand.u32 %v716, 4294901760
    %v2911 = vsub.f32 %v716, %v2910
    %v2912 = vand.u32 %v2911, 4294901760
    %v2913 = vsub.f32 %v2911, %v2912
    %v2914 = vand.u32 %v2913, 4294901760
    %2915 = vmatmul.mubr.f32.gmra.mrb[0].mxu0 %v2914
    %v2916 = vpop.f32.mrb[0].mxu0
    %v2917 = vadd.f32 0.0, %v2916
    %v2918 = vpop.f32.mrb[0].mxu0
    %2919 = vdwg.mxu0
    %2920 = vmatprep.subr.mxu0 0.0
    %v2921 = vand.u32 %v2837, 4294901760
    %v2922 = vsub.f32 %v2837, %v2921
    %v2923 = vand.u32 %v2922, 4294901760
    %v2924 = vsub.f32 %v2922, %v2923
    %v2925 = vand.u32 %v2924, 4294901760
    %2926 = vmatpush1.msra.mxu0 %v2925
    %2927 = vmatprep.subr.mxu0 0.0
    %v2928 = vand.u32 %v2838, 4294901760
    %v2929 = vsub.f32 %v2838, %v2928
    %v2930 = vand.u32 %v2929, 4294901760
    %v2931 = vsub.f32 %v2929, %v2930
    %v2932 = vand.u32 %v2931, 4294901760
    %2933 = vmatpush1.msra.mxu0 %v2932
    %2934 = vmatprep.subr.mxu0 0.0
    %v2935 = vand.u32 %v2839, 4294901760
    %v2936 = vsub.f32 %v2839, %v2935
    %v2937 = vand.u32 %v2936, 4294901760
    %v2938 = vsub.f32 %v2936, %v2937
    %v2939 = vand.u32 %v2938, 4294901760
    %2940 = vmatpush1.msra.mxu0 %v2939
    %2941 = vmatprep.subr.mxu0 0.0
    %v2942 = vand.u32 %v2840, 4294901760
    %v2943 = vsub.f32 %v2840, %v2942
    %v2944 = vand.u32 %v2943, 4294901760
    %v2945 = vsub.f32 %v2943, %v2944
    %v2946 = vand.u32 %v2945, 4294901760
    %2947 = vmatpush1.msra.mxu0 %v2946
    %2948 = vmatprep.subr.mxu0 0.0
    %2949 = vmatpush1.msra.mxu0 0.0
    %2950 = vmatprep.subr.mxu0 0.0
    %2951 = vmatpush1.msra.mxu0 0.0
    %2952 = vmatprep.subr.mxu0 0.0
    %2953 = vmatpush1.msra.mxu0 0.0
    %2954 = vmatprep.subr.mxu0 0.0
    %2955 = vmatpush1.msra.mxu0 0.0
    %2956 = vmatprep.subr.mxu0 0.0
    %2957 = vmatpush1.msra.mxu0 0.0
    %2958 = vmatprep.subr.mxu0 0.0
    %2959 = vmatpush1.msra.mxu0 0.0
    %2960 = vmatprep.subr.mxu0 0.0
    %2961 = vmatpush1.msra.mxu0 0.0
    %2962 = vmatprep.subr.mxu0 0.0
    %2963 = vmatpush1.msra.mxu0 0.0
    %2964 = vmatprep.subr.mxu0 0.0
    %2965 = vmatpush1.msra.mxu0 0.0
    %2966 = vmatprep.subr.mxu0 0.0
    %2967 = vmatpush1.msra.mxu0 0.0
    %2968 = vmatprep.subr.mxu0 0.0
    %2969 = vmatpush1.msra.mxu0 0.0
    %2970 = vmatprep.subr.mxu0 0.0
    %2971 = vmatpush1.msra.mxu0 0.0
    %2972 = vmatprep.subr.mxu0 0.0
    %2973 = vmatpush1.msra.mxu0 0.0
    %2974 = vmatprep.subr.mxu0 0.0
    %2975 = vmatpush1.msra.mxu0 0.0
    %2976 = vmatprep.subr.mxu0 0.0
    %2977 = vmatpush1.msra.mxu0 0.0
    %2978 = vmatprep.subr.mxu0 0.0
    %2979 = vmatpush1.msra.mxu0 0.0
    %2980 = vmatprep.subr.mxu0 0.0
    %2981 = vmatpush1.msra.mxu0 0.0
    %2982 = vmatprep.subr.mxu0 0.0
    %2983 = vmatpush1.msra.mxu0 0.0
    %2984 = vmatprep.subr.mxu0 0.0
    %2985 = vmatpush1.msra.mxu0 0.0
    %2986 = vmatprep.subr.mxu0 0.0
    %2987 = vmatpush1.msra.mxu0 0.0
    %2988 = vmatprep.subr.mxu0 0.0
    %2989 = vmatpush1.msra.mxu0 0.0
    %2990 = vmatprep.subr.mxu0 0.0
    %2991 = vmatpush1.msra.mxu0 0.0
    %2992 = vmatprep.subr.mxu0 0.0
    %2993 = vmatpush1.msra.mxu0 0.0
    %2994 = vmatprep.subr.mxu0 0.0
    %2995 = vmatpush1.msra.mxu0 0.0
    %2996 = vmatprep.subr.mxu0 0.0
    %2997 = vmatpush1.msra.mxu0 0.0
    %2998 = vmatprep.subr.mxu0 0.0
    %2999 = vmatpush1.msra.mxu0 0.0
    %3000 = vmatprep.subr.mxu0 0.0
    %3001 = vmatpush1.msra.mxu0 0.0
    %3002 = vmatprep.subr.mxu0 0.0
    %3003 = vmatpush1.msra.mxu0 0.0
    %3004 = vmatprep.mubr.f32.mxu0 0.0
    %v3005 = vand.u32 %v716, 4294901760
    %3006 = vmatmul.mubr.f32.gmra.mrb[0].mxu0 %v3005
    %v3007 = vpop.f32.mrb[0].mxu0
    %v3008 = vadd.f32 %v2917, %v3007
    %v3009 = vpop.f32.mrb[0].mxu0
    %3010 = vdwg.mxu0
    %3011 = vmatprep.subr.mxu0 0.0
    %v3012 = vand.u32 %v2837, 4294901760
    %v3013 = vsub.f32 %v2837, %v3012
    %3014 = vmatpush1.msra.mxu0 %v3013
    %3015 = vmatprep.subr.mxu0 0.0
    %v3016 = vand.u32 %v2838, 4294901760
    %v3017 = vsub.f32 %v2838, %v3016
    %3018 = vmatpush1.msra.mxu0 %v3017
    %3019 = vmatprep.subr.mxu0 0.0
    %v3020 = vand.u32 %v2839, 4294901760
    %v3021 = vsub.f32 %v2839, %v3020
    %3022 = vmatpush1.msra.mxu0 %v3021
    %3023 = vmatprep.subr.mxu0 0.0
    %v3024 = vand.u32 %v2840, 4294901760
    %v3025 = vsub.f32 %v2840, %v3024
    %3026 = vmatpush1.msra.mxu0 %v3025
    %3027 = vmatprep.subr.mxu0 0.0
    %3028 = vmatpush1.msra.mxu0 0.0
    %3029 = vmatprep.subr.mxu0 0.0
    %3030 = vmatpush1.msra.mxu0 0.0
    %3031 = vmatprep.subr.mxu0 0.0
    %3032 = vmatpush1.msra.mxu0 0.0
    %3033 = vmatprep.subr.mxu0 0.0
    %3034 = vmatpush1.msra.mxu0 0.0
    %3035 = vmatprep.subr.mxu0 0.0
    %3036 = vmatpush1.msra.mxu0 0.0
    %3037 = vmatprep.subr.mxu0 0.0
    %3038 = vmatpush1.msra.mxu0 0.0
    %3039 = vmatprep.subr.mxu0 0.0
    %3040 = vmatpush1.msra.mxu0 0.0
    %3041 = vmatprep.subr.mxu0 0.0
    %3042 = vmatpush1.msra.mxu0 0.0
    %3043 = vmatprep.subr.mxu0 0.0
    %3044 = vmatpush1.msra.mxu0 0.0
    %3045 = vmatprep.subr.mxu0 0.0
    %3046 = vmatpush1.msra.mxu0 0.0
    %3047 = vmatprep.subr.mxu0 0.0
    %3048 = vmatpush1.msra.mxu0 0.0
    %3049 = vmatprep.subr.mxu0 0.0
    %3050 = vmatpush1.msra.mxu0 0.0
    %3051 = vmatprep.subr.mxu0 0.0
    %3052 = vmatpush1.msra.mxu0 0.0
    %3053 = vmatprep.subr.mxu0 0.0
    %3054 = vmatpush1.msra.mxu0 0.0
    %3055 = vmatprep.subr.mxu0 0.0
    %3056 = vmatpush1.msra.mxu0 0.0
    %3057 = vmatprep.subr.mxu0 0.0
    %3058 = vmatpush1.msra.mxu0 0.0
    %3059 = vmatprep.subr.mxu0 0.0
    %3060 = vmatpush1.msra.mxu0 0.0
    %3061 = vmatprep.subr.mxu0 0.0
    %3062 = vmatpush1.msra.mxu0 0.0
    %3063 = vmatprep.subr.mxu0 0.0
    %3064 = vmatpush1.msra.mxu0 0.0
    %3065 = vmatprep.subr.mxu0 0.0
    %3066 = vmatpush1.msra.mxu0 0.0
    %3067 = vmatprep.subr.mxu0 0.0
    %3068 = vmatpush1.msra.mxu0 0.0
    %3069 = vmatprep.subr.mxu0 0.0
    %3070 = vmatpush1.msra.mxu0 0.0
    %3071 = vmatprep.subr.mxu0 0.0
    %3072 = vmatpush1.msra.mxu0 0.0
    %3073 = vmatprep.subr.mxu0 0.0
    %3074 = vmatpush1.msra.mxu0 0.0
    %3075 = vmatprep.subr.mxu0 0.0
    %3076 = vmatpush1.msra.mxu0 0.0
    %3077 = vmatprep.subr.mxu0 0.0
    %3078 = vmatpush1.msra.mxu0 0.0
    %3079 = vmatprep.subr.mxu0 0.0
    %3080 = vmatpush1.msra.mxu0 0.0
    %3081 = vmatprep.subr.mxu0 0.0
    %3082 = vmatpush1.msra.mxu0 0.0
    %3083 = vmatprep.mubr.f32.mxu0 0.0
    %v3084 = vand.u32 %v716, 4294901760
    %v3085 = vsub.f32 %v716, %v3084
    %3086 = vmatmul.mubr.f32.gmra.mrb[0].mxu0 %v3085
    %v3087 = vpop.f32.mrb[0].mxu0
    %v3088 = vadd.f32 %v3008, %v3087
    %v3089 = vpop.f32.mrb[0].mxu0
    %3090 = vdwg.mxu0
    %3091 = vmatprep.subr.mxu0 0.0
    %v3092 = vand.u32 %v2837, 4294901760
    %3093 = vmatpush1.msra.mxu0 %v3092
    %3094 = vmatprep.subr.mxu0 0.0
    %v3095 = vand.u32 %v2838, 4294901760
    %3096 = vmatpush1.msra.mxu0 %v3095
    %3097 = vmatprep.subr.mxu0 0.0
    %v3098 = vand.u32 %v2839, 4294901760
    %3099 = vmatpush1.msra.mxu0 %v3098
    %3100 = vmatprep.subr.mxu0 0.0
    %v3101 = vand.u32 %v2840, 4294901760
    %3102 = vmatpush1.msra.mxu0 %v3101
    %3103 = vmatprep.subr.mxu0 0.0
    %3104 = vmatpush1.msra.mxu0 0.0
    %3105 = vmatprep.subr.mxu0 0.0
    %3106 = vmatpush1.msra.mxu0 0.0
    %3107 = vmatprep.subr.mxu0 0.0
    %3108 = vmatpush1.msra.mxu0 0.0
    %3109 = vmatprep.subr.mxu0 0.0
    %3110 = vmatpush1.msra.mxu0 0.0
    %3111 = vmatprep.subr.mxu0 0.0
    %3112 = vmatpush1.msra.mxu0 0.0
    %3113 = vmatprep.subr.mxu0 0.0
    %3114 = vmatpush1.msra.mxu0 0.0
    %3115 = vmatprep.subr.mxu0 0.0
    %3116 = vmatpush1.msra.mxu0 0.0
    %3117 = vmatprep.subr.mxu0 0.0
    %3118 = vmatpush1.msra.mxu0 0.0
    %3119 = vmatprep.subr.mxu0 0.0
    %3120 = vmatpush1.msra.mxu0 0.0
    %3121 = vmatprep.subr.mxu0 0.0
    %3122 = vmatpush1.msra.mxu0 0.0
    %3123 = vmatprep.subr.mxu0 0.0
    %3124 = vmatpush1.msra.mxu0 0.0
    %3125 = vmatprep.subr.mxu0 0.0
    %3126 = vmatpush1.msra.mxu0 0.0
    %3127 = vmatprep.subr.mxu0 0.0
    %3128 = vmatpush1.msra.mxu0 0.0
    %3129 = vmatprep.subr.mxu0 0.0
    %3130 = vmatpush1.msra.mxu0 0.0
    %3131 = vmatprep.subr.mxu0 0.0
    %3132 = vmatpush1.msra.mxu0 0.0
    %3133 = vmatprep.subr.mxu0 0.0
    %3134 = vmatpush1.msra.mxu0 0.0
    %3135 = vmatprep.subr.mxu0 0.0
    %3136 = vmatpush1.msra.mxu0 0.0
    %3137 = vmatprep.subr.mxu0 0.0
    %3138 = vmatpush1.msra.mxu0 0.0
    %3139 = vmatprep.subr.mxu0 0.0
    %3140 = vmatpush1.msra.mxu0 0.0
    %3141 = vmatprep.subr.mxu0 0.0
    %3142 = vmatpush1.msra.mxu0 0.0
    %3143 = vmatprep.subr.mxu0 0.0
    %3144 = vmatpush1.msra.mxu0 0.0
    %3145 = vmatprep.subr.mxu0 0.0
    %3146 = vmatpush1.msra.mxu0 0.0
    %3147 = vmatprep.subr.mxu0 0.0
    %3148 = vmatpush1.msra.mxu0 0.0
    %3149 = vmatprep.subr.mxu0 0.0
    %3150 = vmatpush1.msra.mxu0 0.0
    %3151 = vmatprep.subr.mxu0 0.0
    %3152 = vmatpush1.msra.mxu0 0.0
    %3153 = vmatprep.subr.mxu0 0.0
    %3154 = vmatpush1.msra.mxu0 0.0
    %3155 = vmatprep.subr.mxu0 0.0
    %3156 = vmatpush1.msra.mxu0 0.0
    %3157 = vmatprep.subr.mxu0 0.0
    %3158 = vmatpush1.msra.mxu0 0.0
    %3159 = vmatprep.mubr.f32.mxu0 0.0
    %v3160 = vand.u32 %v716, 4294901760
    %v3161 = vsub.f32 %v716, %v3160
    %v3162 = vand.u32 %v3161, 4294901760
    %3163 = vmatmul.mubr.f32.gmra.mrb[0].mxu0 %v3162
    %v3164 = vpop.f32.mrb[0].mxu0
    %v3165 = vadd.f32 %v3088, %v3164
    %v3166 = vpop.f32.mrb[0].mxu0
    %3167 = vdwg.mxu0
    %3168 = vmatprep.subr.mxu0 0.0
    %v3169 = vand.u32 %v2837, 4294901760
    %v3170 = vsub.f32 %v2837, %v3169
    %v3171 = vand.u32 %v3170, 4294901760
    %3172 = vmatpush1.msra.mxu0 %v3171
    %3173 = vmatprep.subr.mxu0 0.0
    %v3174 = vand.u32 %v2838, 4294901760
    %v3175 = vsub.f32 %v2838, %v3174
    %v3176 = vand.u32 %v3175, 4294901760
    %3177 = vmatpush1.msra.mxu0 %v3176
    %3178 = vmatprep.subr.mxu0 0.0
    %v3179 = vand.u32 %v2839, 4294901760
    %v3180 = vsub.f32 %v2839, %v3179
    %v3181 = vand.u32 %v3180, 4294901760
    %3182 = vmatpush1.msra.mxu0 %v3181
    %3183 = vmatprep.subr.mxu0 0.0
    %v3184 = vand.u32 %v2840, 4294901760
    %v3185 = vsub.f32 %v2840, %v3184
    %v3186 = vand.u32 %v3185, 4294901760
    %3187 = vmatpush1.msra.mxu0 %v3186
    %3188 = vmatprep.subr.mxu0 0.0
    %3189 = vmatpush1.msra.mxu0 0.0
    %3190 = vmatprep.subr.mxu0 0.0
    %3191 = vmatpush1.msra.mxu0 0.0
    %3192 = vmatprep.subr.mxu0 0.0
    %3193 = vmatpush1.msra.mxu0 0.0
    %3194 = vmatprep.subr.mxu0 0.0
    %3195 = vmatpush1.msra.mxu0 0.0
    %3196 = vmatprep.subr.mxu0 0.0
    %3197 = vmatpush1.msra.mxu0 0.0
    %3198 = vmatprep.subr.mxu0 0.0
    %3199 = vmatpush1.msra.mxu0 0.0
    %3200 = vmatprep.subr.mxu0 0.0
    %3201 = vmatpush1.msra.mxu0 0.0
    %3202 = vmatprep.subr.mxu0 0.0
    %3203 = vmatpush1.msra.mxu0 0.0
    %3204 = vmatprep.subr.mxu0 0.0
    %3205 = vmatpush1.msra.mxu0 0.0
    %3206 = vmatprep.subr.mxu0 0.0
    %3207 = vmatpush1.msra.mxu0 0.0
    %3208 = vmatprep.subr.mxu0 0.0
    %3209 = vmatpush1.msra.mxu0 0.0
    %3210 = vmatprep.subr.mxu0 0.0
    %3211 = vmatpush1.msra.mxu0 0.0
    %3212 = vmatprep.subr.mxu0 0.0
    %3213 = vmatpush1.msra.mxu0 0.0
    %3214 = vmatprep.subr.mxu0 0.0
    %3215 = vmatpush1.msra.mxu0 0.0
    %3216 = vmatprep.subr.mxu0 0.0
    %3217 = vmatpush1.msra.mxu0 0.0
    %3218 = vmatprep.subr.mxu0 0.0
    %3219 = vmatpush1.msra.mxu0 0.0
    %3220 = vmatprep.subr.mxu0 0.0
    %3221 = vmatpush1.msra.mxu0 0.0
    %3222 = vmatprep.subr.mxu0 0.0
    %3223 = vmatpush1.msra.mxu0 0.0
    %3224 = vmatprep.subr.mxu0 0.0
    %3225 = vmatpush1.msra.mxu0 0.0
    %3226 = vmatprep.subr.mxu0 0.0
    %3227 = vmatpush1.msra.mxu0 0.0
    %3228 = vmatprep.subr.mxu0 0.0
    %3229 = vmatpush1.msra.mxu0 0.0
    %3230 = vmatprep.subr.mxu0 0.0
    %3231 = vmatpush1.msra.mxu0 0.0
    %3232 = vmatprep.subr.mxu0 0.0
    %3233 = vmatpush1.msra.mxu0 0.0
    %3234 = vmatprep.subr.mxu0 0.0
    %3235 = vmatpush1.msra.mxu0 0.0
    %3236 = vmatprep.subr.mxu0 0.0
    %3237 = vmatpush1.msra.mxu0 0.0
    %3238 = vmatprep.subr.mxu0 0.0
    %3239 = vmatpush1.msra.mxu0 0.0
    %3240 = vmatprep.subr.mxu0 0.0
    %3241 = vmatpush1.msra.mxu0 0.0
    %3242 = vmatprep.subr.mxu0 0.0
    %3243 = vmatpush1.msra.mxu0 0.0
    %3244 = vmatprep.mubr.f32.mxu0 0.0
    %v3245 = vand.u32 %v716, 4294901760
    %3246 = vmatmul.mubr.f32.gmra.mrb[0].mxu0 %v3245
    %v3247 = vpop.f32.mrb[0].mxu0
    %v3248 = vadd.f32 %v3165, %v3247
    %v3249 = vpop.f32.mrb[0].mxu0
    %3250 = vdwg.mxu0
    %3251 = vmatprep.subr.mxu0 0.0
    %v3252 = vand.u32 %v2837, 4294901760
    %3253 = vmatpush1.msra.mxu0 %v3252
    %3254 = vmatprep.subr.mxu0 0.0
    %v3255 = vand.u32 %v2838, 4294901760
    %3256 = vmatpush1.msra.mxu0 %v3255
    %3257 = vmatprep.subr.mxu0 0.0
    %v3258 = vand.u32 %v2839, 4294901760
    %3259 = vmatpush1.msra.mxu0 %v3258
    %3260 = vmatprep.subr.mxu0 0.0
    %v3261 = vand.u32 %v2840, 4294901760
    %3262 = vmatpush1.msra.mxu0 %v3261
    %3263 = vmatprep.subr.mxu0 0.0
    %3264 = vmatpush1.msra.mxu0 0.0
    %3265 = vmatprep.subr.mxu0 0.0
    %3266 = vmatpush1.msra.mxu0 0.0
    %3267 = vmatprep.subr.mxu0 0.0
    %3268 = vmatpush1.msra.mxu0 0.0
    %3269 = vmatprep.subr.mxu0 0.0
    %3270 = vmatpush1.msra.mxu0 0.0
    %3271 = vmatprep.subr.mxu0 0.0
    %3272 = vmatpush1.msra.mxu0 0.0
    %3273 = vmatprep.subr.mxu0 0.0
    %3274 = vmatpush1.msra.mxu0 0.0
    %3275 = vmatprep.subr.mxu0 0.0
    %3276 = vmatpush1.msra.mxu0 0.0
    %3277 = vmatprep.subr.mxu0 0.0
    %3278 = vmatpush1.msra.mxu0 0.0
    %3279 = vmatprep.subr.mxu0 0.0
    %3280 = vmatpush1.msra.mxu0 0.0
    %3281 = vmatprep.subr.mxu0 0.0
    %3282 = vmatpush1.msra.mxu0 0.0
    %3283 = vmatprep.subr.mxu0 0.0
    %3284 = vmatpush1.msra.mxu0 0.0
    %3285 = vmatprep.subr.mxu0 0.0
    %3286 = vmatpush1.msra.mxu0 0.0
    %3287 = vmatprep.subr.mxu0 0.0
    %3288 = vmatpush1.msra.mxu0 0.0
    %3289 = vmatprep.subr.mxu0 0.0
    %3290 = vmatpush1.msra.mxu0 0.0
    %3291 = vmatprep.subr.mxu0 0.0
    %3292 = vmatpush1.msra.mxu0 0.0
    %3293 = vmatprep.subr.mxu0 0.0
    %3294 = vmatpush1.msra.mxu0 0.0
    %3295 = vmatprep.subr.mxu0 0.0
    %3296 = vmatpush1.msra.mxu0 0.0
    %3297 = vmatprep.subr.mxu0 0.0
    %3298 = vmatpush1.msra.mxu0 0.0
    %3299 = vmatprep.subr.mxu0 0.0
    %3300 = vmatpush1.msra.mxu0 0.0
    %3301 = vmatprep.subr.mxu0 0.0
    %3302 = vmatpush1.msra.mxu0 0.0
    %3303 = vmatprep.subr.mxu0 0.0
    %3304 = vmatpush1.msra.mxu0 0.0
    %3305 = vmatprep.subr.mxu0 0.0
    %3306 = vmatpush1.msra.mxu0 0.0
    %3307 = vmatprep.subr.mxu0 0.0
    %3308 = vmatpush1.msra.mxu0 0.0
    %3309 = vmatprep.subr.mxu0 0.0
    %3310 = vmatpush1.msra.mxu0 0.0
    %3311 = vmatprep.subr.mxu0 0.0
    %3312 = vmatpush1.msra.mxu0 0.0
    %3313 = vmatprep.subr.mxu0 0.0
    %3314 = vmatpush1.msra.mxu0 0.0
    %3315 = vmatprep.subr.mxu0 0.0
    %3316 = vmatpush1.msra.mxu0 0.0
    %3317 = vmatprep.subr.mxu0 0.0
    %3318 = vmatpush1.msra.mxu0 0.0
    %3319 = vmatprep.mubr.f32.mxu0 0.0
    %v3320 = vand.u32 %v716, 4294901760
    %3321 = vmatmul.mubr.f32.gmra.mrb[0].mxu0 %v3320
    %v3322 = vpop.f32.mrb[0].mxu0
    %v3323 = vadd.f32 %v3248, %v3322
    %v3324 = vpop.f32.mrb[0].mxu0
    %3325 = vdwg.mxu0
    %3326 = vrot.lane.b32.xlu0 %v3323, 16
    %v3327 = vpop.permute.xlu0 %3326
    %v3328 = vsel %vm49, %v3327, %v3323
    %3329 = vrot.lane.b32.xlu0 %v3328, 16
    %v3330 = vpop.permute.xlu0 %3329
    %v3331 = vsel %vm49, %v3330, %v3323
    %3333 = vrot.lane.b32.xlu0 %v3331, 113
    %v3334 = vpop.permute.xlu0 %3333
    %v3336 = vsel %vm61, %v3334, 0.0
    %v3337 = vadd.f32 %v3336, 0.0
    %3338 = vmatprep.subr.mxu0 0.0
    %v3339 = vand.u32 %v2837, 4294901760
    %3340 = vmatpush1.msra.mxu0 %v3339
    %3341 = vmatprep.subr.mxu0 0.0
    %v3342 = vand.u32 %v2838, 4294901760
    %3343 = vmatpush1.msra.mxu0 %v3342
    %3344 = vmatprep.subr.mxu0 0.0
    %v3345 = vand.u32 %v2839, 4294901760
    %3346 = vmatpush1.msra.mxu0 %v3345
    %3347 = vmatprep.subr.mxu0 0.0
    %v3348 = vand.u32 %v2840, 4294901760
    %3349 = vmatpush1.msra.mxu0 %v3348
    %3350 = vmatprep.subr.mxu0 0.0
    %3351 = vmatpush1.msra.mxu0 0.0
    %3352 = vmatprep.subr.mxu0 0.0
    %3353 = vmatpush1.msra.mxu0 0.0
    %3354 = vmatprep.subr.mxu0 0.0
    %3355 = vmatpush1.msra.mxu0 0.0
    %3356 = vmatprep.subr.mxu0 0.0
    %3357 = vmatpush1.msra.mxu0 0.0
    %3358 = vmatprep.subr.mxu0 0.0
    %3359 = vmatpush1.msra.mxu0 0.0
    %3360 = vmatprep.subr.mxu0 0.0
    %3361 = vmatpush1.msra.mxu0 0.0
    %3362 = vmatprep.subr.mxu0 0.0
    %3363 = vmatpush1.msra.mxu0 0.0
    %3364 = vmatprep.subr.mxu0 0.0
    %3365 = vmatpush1.msra.mxu0 0.0
    %3366 = vmatprep.subr.mxu0 0.0
    %3367 = vmatpush1.msra.mxu0 0.0
    %3368 = vmatprep.subr.mxu0 0.0
    %3369 = vmatpush1.msra.mxu0 0.0
    %3370 = vmatprep.subr.mxu0 0.0
    %3371 = vmatpush1.msra.mxu0 0.0
    %3372 = vmatprep.subr.mxu0 0.0
    %3373 = vmatpush1.msra.mxu0 0.0
    %3374 = vmatprep.subr.mxu0 0.0
    %3375 = vmatpush1.msra.mxu0 0.0
    %3376 = vmatprep.subr.mxu0 0.0
    %3377 = vmatpush1.msra.mxu0 0.0
    %3378 = vmatprep.subr.mxu0 0.0
    %3379 = vmatpush1.msra.mxu0 0.0
    %3380 = vmatprep.subr.mxu0 0.0
    %3381 = vmatpush1.msra.mxu0 0.0
    %3382 = vmatprep.subr.mxu0 0.0
    %3383 = vmatpush1.msra.mxu0 0.0
    %3384 = vmatprep.subr.mxu0 0.0
    %3385 = vmatpush1.msra.mxu0 0.0
    %3386 = vmatprep.subr.mxu0 0.0
    %3387 = vmatpush1.msra.mxu0 0.0
    %3388 = vmatprep.subr.mxu0 0.0
    %3389 = vmatpush1.msra.mxu0 0.0
    %3390 = vmatprep.subr.mxu0 0.0
    %3391 = vmatpush1.msra.mxu0 0.0
    %3392 = vmatprep.subr.mxu0 0.0
    %3393 = vmatpush1.msra.mxu0 0.0
    %3394 = vmatprep.subr.mxu0 0.0
    %3395 = vmatpush1.msra.mxu0 0.0
    %3396 = vmatprep.subr.mxu0 0.0
    %3397 = vmatpush1.msra.mxu0 0.0
    %3398 = vmatprep.subr.mxu0 0.0
    %3399 = vmatpush1.msra.mxu0 0.0
    %3400 = vmatprep.subr.mxu0 0.0
    %3401 = vmatpush1.msra.mxu0 0.0
    %3402 = vmatprep.subr.mxu0 0.0
    %3403 = vmatpush1.msra.mxu0 0.0
    %3404 = vmatprep.subr.mxu0 0.0
    %3405 = vmatpush1.msra.mxu0 0.0
    %3406 = vmatprep.mubr.f32.mxu0 0.0
    %v3407 = vand.u32 %v1216, 4294901760
    %v3408 = vsub.f32 %v1216, %v3407
    %v3409 = vand.u32 %v3408, 4294901760
    %v3410 = vsub.f32 %v3408, %v3409
    %v3411 = vand.u32 %v3410, 4294901760
    %3412 = vmatmul.mubr.f32.gmra.mrb[0].mxu0 %v3411
    %v3413 = vpop.f32.mrb[0].mxu0
    %v3414 = vadd.f32 0.0, %v3413
    %v3415 = vpop.f32.mrb[0].mxu0
    %3416 = vdwg.mxu0
    %3417 = vmatprep.subr.mxu0 0.0
    %v3418 = vand.u32 %v2837, 4294901760
    %v3419 = vsub.f32 %v2837, %v3418
    %v3420 = vand.u32 %v3419, 4294901760
    %v3421 = vsub.f32 %v3419, %v3420
    %v3422 = vand.u32 %v3421, 4294901760
    %3423 = vmatpush1.msra.mxu0 %v3422
    %3424 = vmatprep.subr.mxu0 0.0
    %v3425 = vand.u32 %v2838, 4294901760
    %v3426 = vsub.f32 %v2838, %v3425
    %v3427 = vand.u32 %v3426, 4294901760
    %v3428 = vsub.f32 %v3426, %v3427
    %v3429 = vand.u32 %v3428, 4294901760
    %3430 = vmatpush1.msra.mxu0 %v3429
    %3431 = vmatprep.subr.mxu0 0.0
    %v3432 = vand.u32 %v2839, 4294901760
    %v3433 = vsub.f32 %v2839, %v3432
    %v3434 = vand.u32 %v3433, 4294901760
    %v3435 = vsub.f32 %v3433, %v3434
    %v3436 = vand.u32 %v3435, 4294901760
    %3437 = vmatpush1.msra.mxu0 %v3436
    %3438 = vmatprep.subr.mxu0 0.0
    %v3439 = vand.u32 %v2840, 4294901760
    %v3440 = vsub.f32 %v2840, %v3439
    %v3441 = vand.u32 %v3440, 4294901760
    %v3442 = vsub.f32 %v3440, %v3441
    %v3443 = vand.u32 %v3442, 4294901760
    %3444 = vmatpush1.msra.mxu0 %v3443
    %3445 = vmatprep.subr.mxu0 0.0
    %3446 = vmatpush1.msra.mxu0 0.0
    %3447 = vmatprep.subr.mxu0 0.0
    %3448 = vmatpush1.msra.mxu0 0.0
    %3449 = vmatprep.subr.mxu0 0.0
    %3450 = vmatpush1.msra.mxu0 0.0
    %3451 = vmatprep.subr.mxu0 0.0
    %3452 = vmatpush1.msra.mxu0 0.0
    %3453 = vmatprep.subr.mxu0 0.0
    %3454 = vmatpush1.msra.mxu0 0.0
    %3455 = vmatprep.subr.mxu0 0.0
    %3456 = vmatpush1.msra.mxu0 0.0
    %3457 = vmatprep.subr.mxu0 0.0
    %3458 = vmatpush1.msra.mxu0 0.0
    %3459 = vmatprep.subr.mxu0 0.0
    %3460 = vmatpush1.msra.mxu0 0.0
    %3461 = vmatprep.subr.mxu0 0.0
    %3462 = vmatpush1.msra.mxu0 0.0
    %3463 = vmatprep.subr.mxu0 0.0
    %3464 = vmatpush1.msra.mxu0 0.0
    %3465 = vmatprep.subr.mxu0 0.0
    %3466 = vmatpush1.msra.mxu0 0.0
    %3467 = vmatprep.subr.mxu0 0.0
    %3468 = vmatpush1.msra.mxu0 0.0
    %3469 = vmatprep.subr.mxu0 0.0
    %3470 = vmatpush1.msra.mxu0 0.0
    %3471 = vmatprep.subr.mxu0 0.0
    %3472 = vmatpush1.msra.mxu0 0.0
    %3473 = vmatprep.subr.mxu0 0.0
    %3474 = vmatpush1.msra.mxu0 0.0
    %3475 = vmatprep.subr.mxu0 0.0
    %3476 = vmatpush1.msra.mxu0 0.0
    %3477 = vmatprep.subr.mxu0 0.0
    %3478 = vmatpush1.msra.mxu0 0.0
    %3479 = vmatprep.subr.mxu0 0.0
    %3480 = vmatpush1.msra.mxu0 0.0
    %3481 = vmatprep.subr.mxu0 0.0
    %3482 = vmatpush1.msra.mxu0 0.0
    %3483 = vmatprep.subr.mxu0 0.0
    %3484 = vmatpush1.msra.mxu0 0.0
    %3485 = vmatprep.subr.mxu0 0.0
    %3486 = vmatpush1.msra.mxu0 0.0
    %3487 = vmatprep.subr.mxu0 0.0
    %3488 = vmatpush1.msra.mxu0 0.0
    %3489 = vmatprep.subr.mxu0 0.0
    %3490 = vmatpush1.msra.mxu0 0.0
    %3491 = vmatprep.subr.mxu0 0.0
    %3492 = vmatpush1.msra.mxu0 0.0
    %3493 = vmatprep.subr.mxu0 0.0
    %3494 = vmatpush1.msra.mxu0 0.0
    %3495 = vmatprep.subr.mxu0 0.0
    %3496 = vmatpush1.msra.mxu0 0.0
    %3497 = vmatprep.subr.mxu0 0.0
    %3498 = vmatpush1.msra.mxu0 0.0
    %3499 = vmatprep.subr.mxu0 0.0
    %3500 = vmatpush1.msra.mxu0 0.0
    %3501 = vmatprep.mubr.f32.mxu0 0.0
    %v3502 = vand.u32 %v1216, 4294901760
    %3503 = vmatmul.mubr.f32.gmra.mrb[0].mxu0 %v3502
    %v3504 = vpop.f32.mrb[0].mxu0
    %v3505 = vadd.f32 %v3414, %v3504
    %v3506 = vpop.f32.mrb[0].mxu0
    %3507 = vdwg.mxu0
    %3508 = vmatprep.subr.mxu0 0.0
    %v3509 = vand.u32 %v2837, 4294901760
    %v3510 = vsub.f32 %v2837, %v3509
    %3511 = vmatpush1.msra.mxu0 %v3510
    %3512 = vmatprep.subr.mxu0 0.0
    %v3513 = vand.u32 %v2838, 4294901760
    %v3514 = vsub.f32 %v2838, %v3513
    %3515 = vmatpush1.msra.mxu0 %v3514
    %3516 = vmatprep.subr.mxu0 0.0
    %v3517 = vand.u32 %v2839, 4294901760
    %v3518 = vsub.f32 %v2839, %v3517
    %3519 = vmatpush1.msra.mxu0 %v3518
    %3520 = vmatprep.subr.mxu0 0.0
    %v3521 = vand.u32 %v2840, 4294901760
    %v3522 = vsub.f32 %v2840, %v3521
    %3523 = vmatpush1.msra.mxu0 %v3522
    %3524 = vmatprep.subr.mxu0 0.0
    %3525 = vmatpush1.msra.mxu0 0.0
    %3526 = vmatprep.subr.mxu0 0.0
    %3527 = vmatpush1.msra.mxu0 0.0
    %3528 = vmatprep.subr.mxu0 0.0
    %3529 = vmatpush1.msra.mxu0 0.0
    %3530 = vmatprep.subr.mxu0 0.0
    %3531 = vmatpush1.msra.mxu0 0.0
    %3532 = vmatprep.subr.mxu0 0.0
    %3533 = vmatpush1.msra.mxu0 0.0
    %3534 = vmatprep.subr.mxu0 0.0
    %3535 = vmatpush1.msra.mxu0 0.0
    %3536 = vmatprep.subr.mxu0 0.0
    %3537 = vmatpush1.msra.mxu0 0.0
    %3538 = vmatprep.subr.mxu0 0.0
    %3539 = vmatpush1.msra.mxu0 0.0
    %3540 = vmatprep.subr.mxu0 0.0
    %3541 = vmatpush1.msra.mxu0 0.0
    %3542 = vmatprep.subr.mxu0 0.0
    %3543 = vmatpush1.msra.mxu0 0.0
    %3544 = vmatprep.subr.mxu0 0.0
    %3545 = vmatpush1.msra.mxu0 0.0
    %3546 = vmatprep.subr.mxu0 0.0
    %3547 = vmatpush1.msra.mxu0 0.0
    %3548 = vmatprep.subr.mxu0 0.0
    %3549 = vmatpush1.msra.mxu0 0.0
    %3550 = vmatprep.subr.mxu0 0.0
    %3551 = vmatpush1.msra.mxu0 0.0
    %3552 = vmatprep.subr.mxu0 0.0
    %3553 = vmatpush1.msra.mxu0 0.0
    %3554 = vmatprep.subr.mxu0 0.0
    %3555 = vmatpush1.msra.mxu0 0.0
    %3556 = vmatprep.subr.mxu0 0.0
    %3557 = vmatpush1.msra.mxu0 0.0
    %3558 = vmatprep.subr.mxu0 0.0
    %3559 = vmatpush1.msra.mxu0 0.0
    %3560 = vmatprep.subr.mxu0 0.0
    %3561 = vmatpush1.msra.mxu0 0.0
    %3562 = vmatprep.subr.mxu0 0.0
    %3563 = vmatpush1.msra.mxu0 0.0
    %3564 = vmatprep.subr.mxu0 0.0
    %3565 = vmatpush1.msra.mxu0 0.0
    %3566 = vmatprep.subr.mxu0 0.0
    %3567 = vmatpush1.msra.mxu0 0.0
    %3568 = vmatprep.subr.mxu0 0.0
    %3569 = vmatpush1.msra.mxu0 0.0
    %3570 = vmatprep.subr.mxu0 0.0
    %3571 = vmatpush1.msra.mxu0 0.0
    %3572 = vmatprep.subr.mxu0 0.0
    %3573 = vmatpush1.msra.mxu0 0.0
    %3574 = vmatprep.subr.mxu0 0.0
    %3575 = vmatpush1.msra.mxu0 0.0
    %3576 = vmatprep.subr.mxu0 0.0
    %3577 = vmatpush1.msra.mxu0 0.0
    %3578 = vmatprep.subr.mxu0 0.0
    %3579 = vmatpush1.msra.mxu0 0.0
    %3580 = vmatprep.mubr.f32.mxu0 0.0
    %v3581 = vand.u32 %v1216, 4294901760
    %v3582 = vsub.f32 %v1216, %v3581
    %3583 = vmatmul.mubr.f32.gmra.mrb[0].mxu0 %v3582
    %v3584 = vpop.f32.mrb[0].mxu0
    %v3585 = vadd.f32 %v3505, %v3584
    %v3586 = vpop.f32.mrb[0].mxu0
    %3587 = vdwg.mxu0
    %3588 = vmatprep.subr.mxu0 0.0
    %v3589 = vand.u32 %v2837, 4294901760
    %3590 = vmatpush1.msra.mxu0 %v3589
    %3591 = vmatprep.subr.mxu0 0.0
    %v3592 = vand.u32 %v2838, 4294901760
    %3593 = vmatpush1.msra.mxu0 %v3592
    %3594 = vmatprep.subr.mxu0 0.0
    %v3595 = vand.u32 %v2839, 4294901760
    %3596 = vmatpush1.msra.mxu0 %v3595
    %3597 = vmatprep.subr.mxu0 0.0
    %v3598 = vand.u32 %v2840, 4294901760
    %3599 = vmatpush1.msra.mxu0 %v3598
    %3600 = vmatprep.subr.mxu0 0.0
    %3601 = vmatpush1.msra.mxu0 0.0
    %3602 = vmatprep.subr.mxu0 0.0
    %3603 = vmatpush1.msra.mxu0 0.0
    %3604 = vmatprep.subr.mxu0 0.0
    %3605 = vmatpush1.msra.mxu0 0.0
    %3606 = vmatprep.subr.mxu0 0.0
    %3607 = vmatpush1.msra.mxu0 0.0
    %3608 = vmatprep.subr.mxu0 0.0
    %3609 = vmatpush1.msra.mxu0 0.0
    %3610 = vmatprep.subr.mxu0 0.0
    %3611 = vmatpush1.msra.mxu0 0.0
    %3612 = vmatprep.subr.mxu0 0.0
    %3613 = vmatpush1.msra.mxu0 0.0
    %3614 = vmatprep.subr.mxu0 0.0
    %3615 = vmatpush1.msra.mxu0 0.0
    %3616 = vmatprep.subr.mxu0 0.0
    %3617 = vmatpush1.msra.mxu0 0.0
    %3618 = vmatprep.subr.mxu0 0.0
    %3619 = vmatpush1.msra.mxu0 0.0
    %3620 = vmatprep.subr.mxu0 0.0
    %3621 = vmatpush1.msra.mxu0 0.0
    %3622 = vmatprep.subr.mxu0 0.0
    %3623 = vmatpush1.msra.mxu0 0.0
    %3624 = vmatprep.subr.mxu0 0.0
    %3625 = vmatpush1.msra.mxu0 0.0
    %3626 = vmatprep.subr.mxu0 0.0
    %3627 = vmatpush1.msra.mxu0 0.0
    %3628 = vmatprep.subr.mxu0 0.0
    %3629 = vmatpush1.msra.mxu0 0.0
    %3630 = vmatprep.subr.mxu0 0.0
    %3631 = vmatpush1.msra.mxu0 0.0
    %3632 = vmatprep.subr.mxu0 0.0
    %3633 = vmatpush1.msra.mxu0 0.0
    %3634 = vmatprep.subr.mxu0 0.0
    %3635 = vmatpush1.msra.mxu0 0.0
    %3636 = vmatprep.subr.mxu0 0.0
    %3637 = vmatpush1.msra.mxu0 0.0
    %3638 = vmatprep.subr.mxu0 0.0
    %3639 = vmatpush1.msra.mxu0 0.0
    %3640 = vmatprep.subr.mxu0 0.0
    %3641 = vmatpush1.msra.mxu0 0.0
    %3642 = vmatprep.subr.mxu0 0.0
    %3643 = vmatpush1.msra.mxu0 0.0
    %3644 = vmatprep.subr.mxu0 0.0
    %3645 = vmatpush1.msra.mxu0 0.0
    %3646 = vmatprep.subr.mxu0 0.0
    %3647 = vmatpush1.msra.mxu0 0.0
    %3648 = vmatprep.subr.mxu0 0.0
    %3649 = vmatpush1.msra.mxu0 0.0
    %3650 = vmatprep.subr.mxu0 0.0
    %3651 = vmatpush1.msra.mxu0 0.0
    %3652 = vmatprep.subr.mxu0 0.0
    %3653 = vmatpush1.msra.mxu0 0.0
    %3654 = vmatprep.subr.mxu0 0.0
    %3655 = vmatpush1.msra.mxu0 0.0
    %3656 = vmatprep.mubr.f32.mxu0 0.0
    %v3657 = vand.u32 %v1216, 4294901760
    %v3658 = vsub.f32 %v1216, %v3657
    %v3659 = vand.u32 %v3658, 4294901760
    %3660 = vmatmul.mubr.f32.gmra.mrb[0].mxu0 %v3659
    %v3661 = vpop.f32.mrb[0].mxu0
    %v3662 = vadd.f32 %v3585, %v3661
    %v3663 = vpop.f32.mrb[0].mxu0
    %3664 = vdwg.mxu0
    %3665 = vmatprep.subr.mxu0 0.0
    %v3666 = vand.u32 %v2837, 4294901760
    %v3667 = vsub.f32 %v2837, %v3666
    %v3668 = vand.u32 %v3667, 4294901760
    %3669 = vmatpush1.msra.mxu0 %v3668
    %3670 = vmatprep.subr.mxu0 0.0
    %v3671 = vand.u32 %v2838, 4294901760
    %v3672 = vsub.f32 %v2838, %v3671
    %v3673 = vand.u32 %v3672, 4294901760
    %3674 = vmatpush1.msra.mxu0 %v3673
    %3675 = vmatprep.subr.mxu0 0.0
    %v3676 = vand.u32 %v2839, 4294901760
    %v3677 = vsub.f32 %v2839, %v3676
    %v3678 = vand.u32 %v3677, 4294901760
    %3679 = vmatpush1.msra.mxu0 %v3678
    %3680 = vmatprep.subr.mxu0 0.0
    %v3681 = vand.u32 %v2840, 4294901760
    %v3682 = vsub.f32 %v2840, %v3681
    %v3683 = vand.u32 %v3682, 4294901760
    %3684 = vmatpush1.msra.mxu0 %v3683
    %3685 = vmatprep.subr.mxu0 0.0
    %3686 = vmatpush1.msra.mxu0 0.0
    %3687 = vmatprep.subr.mxu0 0.0
    %3688 = vmatpush1.msra.mxu0 0.0
    %3689 = vmatprep.subr.mxu0 0.0
    %3690 = vmatpush1.msra.mxu0 0.0
    %3691 = vmatprep.subr.mxu0 0.0
    %3692 = vmatpush1.msra.mxu0 0.0
    %3693 = vmatprep.subr.mxu0 0.0
    %3694 = vmatpush1.msra.mxu0 0.0
    %3695 = vmatprep.subr.mxu0 0.0
    %3696 = vmatpush1.msra.mxu0 0.0
    %3697 = vmatprep.subr.mxu0 0.0
    %3698 = vmatpush1.msra.mxu0 0.0
    %3699 = vmatprep.subr.mxu0 0.0
    %3700 = vmatpush1.msra.mxu0 0.0
    %3701 = vmatprep.subr.mxu0 0.0
    %3702 = vmatpush1.msra.mxu0 0.0
    %3703 = vmatprep.subr.mxu0 0.0
    %3704 = vmatpush1.msra.mxu0 0.0
    %3705 = vmatprep.subr.mxu0 0.0
    %3706 = vmatpush1.msra.mxu0 0.0
    %3707 = vmatprep.subr.mxu0 0.0
    %3708 = vmatpush1.msra.mxu0 0.0
    %3709 = vmatprep.subr.mxu0 0.0
    %3710 = vmatpush1.msra.mxu0 0.0
    %3711 = vmatprep.subr.mxu0 0.0
    %3712 = vmatpush1.msra.mxu0 0.0
    %3713 = vmatprep.subr.mxu0 0.0
    %3714 = vmatpush1.msra.mxu0 0.0
    %3715 = vmatprep.subr.mxu0 0.0
    %3716 = vmatpush1.msra.mxu0 0.0
    %3717 = vmatprep.subr.mxu0 0.0
    %3718 = vmatpush1.msra.mxu0 0.0
    %3719 = vmatprep.subr.mxu0 0.0
    %3720 = vmatpush1.msra.mxu0 0.0
    %3721 = vmatprep.subr.mxu0 0.0
    %3722 = vmatpush1.msra.mxu0 0.0
    %3723 = vmatprep.subr.mxu0 0.0
    %3724 = vmatpush1.msra.mxu0 0.0
    %3725 = vmatprep.subr.mxu0 0.0
    %3726 = vmatpush1.msra.mxu0 0.0
    %3727 = vmatprep.subr.mxu0 0.0
    %3728 = vmatpush1.msra.mxu0 0.0
    %3729 = vmatprep.subr.mxu0 0.0
    %3730 = vmatpush1.msra.mxu0 0.0
    %3731 = vmatprep.subr.mxu0 0.0
    %3732 = vmatpush1.msra.mxu0 0.0
    %3733 = vmatprep.subr.mxu0 0.0
    %3734 = vmatpush1.msra.mxu0 0.0
    %3735 = vmatprep.subr.mxu0 0.0
    %3736 = vmatpush1.msra.mxu0 0.0
    %3737 = vmatprep.subr.mxu0 0.0
    %3738 = vmatpush1.msra.mxu0 0.0
    %3739 = vmatprep.subr.mxu0 0.0
    %3740 = vmatpush1.msra.mxu0 0.0
    %3741 = vmatprep.mubr.f32.mxu0 0.0
    %v3742 = vand.u32 %v1216, 4294901760
    %3743 = vmatmul.mubr.f32.gmra.mrb[0].mxu0 %v3742
    %v3744 = vpop.f32.mrb[0].mxu0
    %v3745 = vadd.f32 %v3662, %v3744
    %v3746 = vpop.f32.mrb[0].mxu0
    %3747 = vdwg.mxu0
    %3748 = vmatprep.subr.mxu0 0.0
    %v3749 = vand.u32 %v2837, 4294901760
    %3750 = vmatpush1.msra.mxu0 %v3749
    %3751 = vmatprep.subr.mxu0 0.0
    %v3752 = vand.u32 %v2838, 4294901760
    %3753 = vmatpush1.msra.mxu0 %v3752
    %3754 = vmatprep.subr.mxu0 0.0
    %v3755 = vand.u32 %v2839, 4294901760
    %3756 = vmatpush1.msra.mxu0 %v3755
    %3757 = vmatprep.subr.mxu0 0.0
    %v3758 = vand.u32 %v2840, 4294901760
    %3759 = vmatpush1.msra.mxu0 %v3758
    %3760 = vmatprep.subr.mxu0 0.0
    %3761 = vmatpush1.msra.mxu0 0.0
    %3762 = vmatprep.subr.mxu0 0.0
    %3763 = vmatpush1.msra.mxu0 0.0
    %3764 = vmatprep.subr.mxu0 0.0
    %3765 = vmatpush1.msra.mxu0 0.0
    %3766 = vmatprep.subr.mxu0 0.0
    %3767 = vmatpush1.msra.mxu0 0.0
    %3768 = vmatprep.subr.mxu0 0.0
    %3769 = vmatpush1.msra.mxu0 0.0
    %3770 = vmatprep.subr.mxu0 0.0
    %3771 = vmatpush1.msra.mxu0 0.0
    %3772 = vmatprep.subr.mxu0 0.0
    %3773 = vmatpush1.msra.mxu0 0.0
    %3774 = vmatprep.subr.mxu0 0.0
    %3775 = vmatpush1.msra.mxu0 0.0
    %3776 = vmatprep.subr.mxu0 0.0
    %3777 = vmatpush1.msra.mxu0 0.0
    %3778 = vmatprep.subr.mxu0 0.0
    %3779 = vmatpush1.msra.mxu0 0.0
    %3780 = vmatprep.subr.mxu0 0.0
    %3781 = vmatpush1.msra.mxu0 0.0
    %3782 = vmatprep.subr.mxu0 0.0
    %3783 = vmatpush1.msra.mxu0 0.0
    %3784 = vmatprep.subr.mxu0 0.0
    %3785 = vmatpush1.msra.mxu0 0.0
    %3786 = vmatprep.subr.mxu0 0.0
    %3787 = vmatpush1.msra.mxu0 0.0
    %3788 = vmatprep.subr.mxu0 0.0
    %3789 = vmatpush1.msra.mxu0 0.0
    %3790 = vmatprep.subr.mxu0 0.0
    %3791 = vmatpush1.msra.mxu0 0.0
    %3792 = vmatprep.subr.mxu0 0.0
    %3793 = vmatpush1.msra.mxu0 0.0
    %3794 = vmatprep.subr.mxu0 0.0
    %3795 = vmatpush1.msra.mxu0 0.0
    %3796 = vmatprep.subr.mxu0 0.0
    %3797 = vmatpush1.msra.mxu0 0.0
    %3798 = vmatprep.subr.mxu0 0.0
    %3799 = vmatpush1.msra.mxu0 0.0
    %3800 = vmatprep.subr.mxu0 0.0
    %3801 = vmatpush1.msra.mxu0 0.0
    %3802 = vmatprep.subr.mxu0 0.0
    %3803 = vmatpush1.msra.mxu0 0.0
    %3804 = vmatprep.subr.mxu0 0.0
    %3805 = vmatpush1.msra.mxu0 0.0
    %3806 = vmatprep.subr.mxu0 0.0
    %3807 = vmatpush1.msra.mxu0 0.0
    %3808 = vmatprep.subr.mxu0 0.0
    %3809 = vmatpush1.msra.mxu0 0.0
    %3810 = vmatprep.subr.mxu0 0.0
    %3811 = vmatpush1.msra.mxu0 0.0
    %3812 = vmatprep.subr.mxu0 0.0
    %3813 = vmatpush1.msra.mxu0 0.0
    %3814 = vmatprep.subr.mxu0 0.0
    %3815 = vmatpush1.msra.mxu0 0.0
    %3816 = vmatprep.mubr.f32.mxu0 0.0
    %v3817 = vand.u32 %v1216, 4294901760
    %3818 = vmatmul.mubr.f32.gmra.mrb[0].mxu0 %v3817
    %v3819 = vpop.f32.mrb[0].mxu0
    %v3820 = vadd.f32 %v3745, %v3819
    %v3821 = vpop.f32.mrb[0].mxu0
    %3822 = vdwg.mxu0
    %v3823 = vadd.f32 %v3337, %v3820
    %3824 = vmatprep.subr.mxu0 0.0
    %v3825 = vand.u32 %v2837, 4294901760
    %3826 = vmatpush1.msra.mxu0 %v3825
    %3827 = vmatprep.subr.mxu0 0.0
    %v3828 = vand.u32 %v2838, 4294901760
    %3829 = vmatpush1.msra.mxu0 %v3828
    %3830 = vmatprep.subr.mxu0 0.0
    %v3831 = vand.u32 %v2839, 4294901760
    %3832 = vmatpush1.msra.mxu0 %v3831
    %3833 = vmatprep.subr.mxu0 0.0
    %v3834 = vand.u32 %v2840, 4294901760
    %3835 = vmatpush1.msra.mxu0 %v3834
    %3836 = vmatprep.subr.mxu0 0.0
    %3837 = vmatpush1.msra.mxu0 0.0
    %3838 = vmatprep.subr.mxu0 0.0
    %3839 = vmatpush1.msra.mxu0 0.0
    %3840 = vmatprep.subr.mxu0 0.0
    %3841 = vmatpush1.msra.mxu0 0.0
    %3842 = vmatprep.subr.mxu0 0.0
    %3843 = vmatpush1.msra.mxu0 0.0
    %3844 = vmatprep.subr.mxu0 0.0
    %3845 = vmatpush1.msra.mxu0 0.0
    %3846 = vmatprep.subr.mxu0 0.0
    %3847 = vmatpush1.msra.mxu0 0.0
    %3848 = vmatprep.subr.mxu0 0.0
    %3849 = vmatpush1.msra.mxu0 0.0
    %3850 = vmatprep.subr.mxu0 0.0
    %3851 = vmatpush1.msra.mxu0 0.0
    %3852 = vmatprep.subr.mxu0 0.0
    %3853 = vmatpush1.msra.mxu0 0.0
    %3854 = vmatprep.subr.mxu0 0.0
    %3855 = vmatpush1.msra.mxu0 0.0
    %3856 = vmatprep.subr.mxu0 0.0
    %3857 = vmatpush1.msra.mxu0 0.0
    %3858 = vmatprep.subr.mxu0 0.0
    %3859 = vmatpush1.msra.mxu0 0.0
    %3860 = vmatprep.subr.mxu0 0.0
    %3861 = vmatpush1.msra.mxu0 0.0
    %3862 = vmatprep.subr.mxu0 0.0
    %3863 = vmatpush1.msra.mxu0 0.0
    %3864 = vmatprep.subr.mxu0 0.0
    %3865 = vmatpush1.msra.mxu0 0.0
    %3866 = vmatprep.subr.mxu0 0.0
    %3867 = vmatpush1.msra.mxu0 0.0
    %3868 = vmatprep.subr.mxu0 0.0
    %3869 = vmatpush1.msra.mxu0 0.0
    %3870 = vmatprep.subr.mxu0 0.0
    %3871 = vmatpush1.msra.mxu0 0.0
    %3872 = vmatprep.subr.mxu0 0.0
    %3873 = vmatpush1.msra.mxu0 0.0
    %3874 = vmatprep.subr.mxu0 0.0
    %3875 = vmatpush1.msra.mxu0 0.0
    %3876 = vmatprep.subr.mxu0 0.0
    %3877 = vmatpush1.msra.mxu0 0.0
    %3878 = vmatprep.subr.mxu0 0.0
    %3879 = vmatpush1.msra.mxu0 0.0
    %3880 = vmatprep.subr.mxu0 0.0
    %3881 = vmatpush1.msra.mxu0 0.0
    %3882 = vmatprep.subr.mxu0 0.0
    %3883 = vmatpush1.msra.mxu0 0.0
    %3884 = vmatprep.subr.mxu0 0.0
    %3885 = vmatpush1.msra.mxu0 0.0
    %3886 = vmatprep.subr.mxu0 0.0
    %3887 = vmatpush1.msra.mxu0 0.0
    %3888 = vmatprep.subr.mxu0 0.0
    %3889 = vmatpush1.msra.mxu0 0.0
    %3890 = vmatprep.subr.mxu0 0.0
    %3891 = vmatpush1.msra.mxu0 0.0
    %3892 = vmatprep.mubr.f32.mxu0 0.0
    %v3893 = vand.u32 %v1705, 4294901760
    %v3894 = vsub.f32 %v1705, %v3893
    %v3895 = vand.u32 %v3894, 4294901760
    %v3896 = vsub.f32 %v3894, %v3895
    %v3897 = vand.u32 %v3896, 4294901760
    %3898 = vmatmul.mubr.f32.gmra.mrb[0].mxu0 %v3897
    %v3899 = vpop.f32.mrb[0].mxu0
    %v3900 = vadd.f32 0.0, %v3899
    %v3901 = vpop.f32.mrb[0].mxu0
    %3902 = vdwg.mxu0
    %3903 = vmatprep.subr.mxu0 0.0
    %v3904 = vand.u32 %v2837, 4294901760
    %v3905 = vsub.f32 %v2837, %v3904
    %v3906 = vand.u32 %v3905, 4294901760
    %v3907 = vsub.f32 %v3905, %v3906
    %v3908 = vand.u32 %v3907, 4294901760
    %3909 = vmatpush1.msra.mxu0 %v3908
    %3910 = vmatprep.subr.mxu0 0.0
    %v3911 = vand.u32 %v2838, 4294901760
    %v3912 = vsub.f32 %v2838, %v3911
    %v3913 = vand.u32 %v3912, 4294901760
    %v3914 = vsub.f32 %v3912, %v3913
    %v3915 = vand.u32 %v3914, 4294901760
    %3916 = vmatpush1.msra.mxu0 %v3915
    %3917 = vmatprep.subr.mxu0 0.0
    %v3918 = vand.u32 %v2839, 4294901760
    %v3919 = vsub.f32 %v2839, %v3918
    %v3920 = vand.u32 %v3919, 4294901760
    %v3921 = vsub.f32 %v3919, %v3920
    %v3922 = vand.u32 %v3921, 4294901760
    %3923 = vmatpush1.msra.mxu0 %v3922
    %3924 = vmatprep.subr.mxu0 0.0
    %v3925 = vand.u32 %v2840, 4294901760
    %v3926 = vsub.f32 %v2840, %v3925
    %v3927 = vand.u32 %v3926, 4294901760
    %v3928 = vsub.f32 %v3926, %v3927
    %v3929 = vand.u32 %v3928, 4294901760
    %3930 = vmatpush1.msra.mxu0 %v3929
    %3931 = vmatprep.subr.mxu0 0.0
    %3932 = vmatpush1.msra.mxu0 0.0
    %3933 = vmatprep.subr.mxu0 0.0
    %3934 = vmatpush1.msra.mxu0 0.0
    %3935 = vmatprep.subr.mxu0 0.0
    %3936 = vmatpush1.msra.mxu0 0.0
    %3937 = vmatprep.subr.mxu0 0.0
    %3938 = vmatpush1.msra.mxu0 0.0
    %3939 = vmatprep.subr.mxu0 0.0
    %3940 = vmatpush1.msra.mxu0 0.0
    %3941 = vmatprep.subr.mxu0 0.0
    %3942 = vmatpush1.msra.mxu0 0.0
    %3943 = vmatprep.subr.mxu0 0.0
    %3944 = vmatpush1.msra.mxu0 0.0
    %3945 = vmatprep.subr.mxu0 0.0
    %3946 = vmatpush1.msra.mxu0 0.0
    %3947 = vmatprep.subr.mxu0 0.0
    %3948 = vmatpush1.msra.mxu0 0.0
    %3949 = vmatprep.subr.mxu0 0.0
    %3950 = vmatpush1.msra.mxu0 0.0
    %3951 = vmatprep.subr.mxu0 0.0
    %3952 = vmatpush1.msra.mxu0 0.0
    %3953 = vmatprep.subr.mxu0 0.0
    %3954 = vmatpush1.msra.mxu0 0.0
    %3955 = vmatprep.subr.mxu0 0.0
    %3956 = vmatpush1.msra.mxu0 0.0
    %3957 = vmatprep.subr.mxu0 0.0
    %3958 = vmatpush1.msra.mxu0 0.0
    %3959 = vmatprep.subr.mxu0 0.0
    %3960 = vmatpush1.msra.mxu0 0.0
    %3961 = vmatprep.subr.mxu0 0.0
    %3962 = vmatpush1.msra.mxu0 0.0
    %3963 = vmatprep.subr.mxu0 0.0
    %3964 = vmatpush1.msra.mxu0 0.0
    %3965 = vmatprep.subr.mxu0 0.0
    %3966 = vmatpush1.msra.mxu0 0.0
    %3967 = vmatprep.subr.mxu0 0.0
    %3968 = vmatpush1.msra.mxu0 0.0
    %3969 = vmatprep.subr.mxu0 0.0
    %3970 = vmatpush1.msra.mxu0 0.0
    %3971 = vmatprep.subr.mxu0 0.0
    %3972 = vmatpush1.msra.mxu0 0.0
    %3973 = vmatprep.subr.mxu0 0.0
    %3974 = vmatpush1.msra.mxu0 0.0
    %3975 = vmatprep.subr.mxu0 0.0
    %3976 = vmatpush1.msra.mxu0 0.0
    %3977 = vmatprep.subr.mxu0 0.0
    %3978 = vmatpush1.msra.mxu0 0.0
    %3979 = vmatprep.subr.mxu0 0.0
    %3980 = vmatpush1.msra.mxu0 0.0
    %3981 = vmatprep.subr.mxu0 0.0
    %3982 = vmatpush1.msra.mxu0 0.0
    %3983 = vmatprep.subr.mxu0 0.0
    %3984 = vmatpush1.msra.mxu0 0.0
    %3985 = vmatprep.subr.mxu0 0.0
    %3986 = vmatpush1.msra.mxu0 0.0
    %3987 = vmatprep.mubr.f32.mxu0 0.0
    %v3988 = vand.u32 %v1705, 4294901760
    %3989 = vmatmul.mubr.f32.gmra.mrb[0].mxu0 %v3988
    %v3990 = vpop.f32.mrb[0].mxu0
    %v3991 = vadd.f32 %v3900, %v3990
    %v3992 = vpop.f32.mrb[0].mxu0
    %3993 = vdwg.mxu0
    %3994 = vmatprep.subr.mxu0 0.0
    %v3995 = vand.u32 %v2837, 4294901760
    %v3996 = vsub.f32 %v2837, %v3995
    %3997 = vmatpush1.msra.mxu0 %v3996
    %3998 = vmatprep.subr.mxu0 0.0
    %v3999 = vand.u32 %v2838, 4294901760
    %v4000 = vsub.f32 %v2838, %v3999
    %4001 = vmatpush1.msra.mxu0 %v4000
    %4002 = vmatprep.subr.mxu0 0.0
    %v4003 = vand.u32 %v2839, 4294901760
    %v4004 = vsub.f32 %v2839, %v4003
    %4005 = vmatpush1.msra.mxu0 %v4004
    %4006 = vmatprep.subr.mxu0 0.0
    %v4007 = vand.u32 %v2840, 4294901760
    %v4008 = vsub.f32 %v2840, %v4007
    %4009 = vmatpush1.msra.mxu0 %v4008
    %4010 = vmatprep.subr.mxu0 0.0
    %4011 = vmatpush1.msra.mxu0 0.0
    %4012 = vmatprep.subr.mxu0 0.0
    %4013 = vmatpush1.msra.mxu0 0.0
    %4014 = vmatprep.subr.mxu0 0.0
    %4015 = vmatpush1.msra.mxu0 0.0
    %4016 = vmatprep.subr.mxu0 0.0
    %4017 = vmatpush1.msra.mxu0 0.0
    %4018 = vmatprep.subr.mxu0 0.0
    %4019 = vmatpush1.msra.mxu0 0.0
    %4020 = vmatprep.subr.mxu0 0.0
    %4021 = vmatpush1.msra.mxu0 0.0
    %4022 = vmatprep.subr.mxu0 0.0
    %4023 = vmatpush1.msra.mxu0 0.0
    %4024 = vmatprep.subr.mxu0 0.0
    %4025 = vmatpush1.msra.mxu0 0.0
    %4026 = vmatprep.subr.mxu0 0.0
    %4027 = vmatpush1.msra.mxu0 0.0
    %4028 = vmatprep.subr.mxu0 0.0
    %4029 = vmatpush1.msra.mxu0 0.0
    %4030 = vmatprep.subr.mxu0 0.0
    %4031 = vmatpush1.msra.mxu0 0.0
    %4032 = vmatprep.subr.mxu0 0.0
    %4033 = vmatpush1.msra.mxu0 0.0
    %4034 = vmatprep.subr.mxu0 0.0
    %4035 = vmatpush1.msra.mxu0 0.0
    %4036 = vmatprep.subr.mxu0 0.0
    %4037 = vmatpush1.msra.mxu0 0.0
    %4038 = vmatprep.subr.mxu0 0.0
    %4039 = vmatpush1.msra.mxu0 0.0
    %4040 = vmatprep.subr.mxu0 0.0
    %4041 = vmatpush1.msra.mxu0 0.0
    %4042 = vmatprep.subr.mxu0 0.0
    %4043 = vmatpush1.msra.mxu0 0.0
    %4044 = vmatprep.subr.mxu0 0.0
    %4045 = vmatpush1.msra.mxu0 0.0
    %4046 = vmatprep.subr.mxu0 0.0
    %4047 = vmatpush1.msra.mxu0 0.0
    %4048 = vmatprep.subr.mxu0 0.0
    %4049 = vmatpush1.msra.mxu0 0.0
    %4050 = vmatprep.subr.mxu0 0.0
    %4051 = vmatpush1.msra.mxu0 0.0
    %4052 = vmatprep.subr.mxu0 0.0
    %4053 = vmatpush1.msra.mxu0 0.0
    %4054 = vmatprep.subr.mxu0 0.0
    %4055 = vmatpush1.msra.mxu0 0.0
    %4056 = vmatprep.subr.mxu0 0.0
    %4057 = vmatpush1.msra.mxu0 0.0
    %4058 = vmatprep.subr.mxu0 0.0
    %4059 = vmatpush1.msra.mxu0 0.0
    %4060 = vmatprep.subr.mxu0 0.0
    %4061 = vmatpush1.msra.mxu0 0.0
    %4062 = vmatprep.subr.mxu0 0.0
    %4063 = vmatpush1.msra.mxu0 0.0
    %4064 = vmatprep.subr.mxu0 0.0
    %4065 = vmatpush1.msra.mxu0 0.0
    %4066 = vmatprep.mubr.f32.mxu0 0.0
    %v4067 = vand.u32 %v1705, 4294901760
    %v4068 = vsub.f32 %v1705, %v4067
    %4069 = vmatmul.mubr.f32.gmra.mrb[0].mxu0 %v4068
    %v4070 = vpop.f32.mrb[0].mxu0
    %v4071 = vadd.f32 %v3991, %v4070
    %v4072 = vpop.f32.mrb[0].mxu0
    %4073 = vdwg.mxu0
    %4074 = vmatprep.subr.mxu0 0.0
    %v4075 = vand.u32 %v2837, 4294901760
    %4076 = vmatpush1.msra.mxu0 %v4075
    %4077 = vmatprep.subr.mxu0 0.0
    %v4078 = vand.u32 %v2838, 4294901760
    %4079 = vmatpush1.msra.mxu0 %v4078
    %4080 = vmatprep.subr.mxu0 0.0
    %v4081 = vand.u32 %v2839, 4294901760
    %4082 = vmatpush1.msra.mxu0 %v4081
    %4083 = vmatprep.subr.mxu0 0.0
    %v4084 = vand.u32 %v2840, 4294901760
    %4085 = vmatpush1.msra.mxu0 %v4084
    %4086 = vmatprep.subr.mxu0 0.0
    %4087 = vmatpush1.msra.mxu0 0.0
    %4088 = vmatprep.subr.mxu0 0.0
    %4089 = vmatpush1.msra.mxu0 0.0
    %4090 = vmatprep.subr.mxu0 0.0
    %4091 = vmatpush1.msra.mxu0 0.0
    %4092 = vmatprep.subr.mxu0 0.0
    %4093 = vmatpush1.msra.mxu0 0.0
    %4094 = vmatprep.subr.mxu0 0.0
    %4095 = vmatpush1.msra.mxu0 0.0
    %4096 = vmatprep.subr.mxu0 0.0
    %4097 = vmatpush1.msra.mxu0 0.0
    %4098 = vmatprep.subr.mxu0 0.0
    %4099 = vmatpush1.msra.mxu0 0.0
    %4100 = vmatprep.subr.mxu0 0.0
    %4101 = vmatpush1.msra.mxu0 0.0
    %4102 = vmatprep.subr.mxu0 0.0
    %4103 = vmatpush1.msra.mxu0 0.0
    %4104 = vmatprep.subr.mxu0 0.0
    %4105 = vmatpush1.msra.mxu0 0.0
    %4106 = vmatprep.subr.mxu0 0.0
    %4107 = vmatpush1.msra.mxu0 0.0
    %4108 = vmatprep.subr.mxu0 0.0
    %4109 = vmatpush1.msra.mxu0 0.0
    %4110 = vmatprep.subr.mxu0 0.0
    %4111 = vmatpush1.msra.mxu0 0.0
    %4112 = vmatprep.subr.mxu0 0.0
    %4113 = vmatpush1.msra.mxu0 0.0
    %4114 = vmatprep.subr.mxu0 0.0
    %4115 = vmatpush1.msra.mxu0 0.0
    %4116 = vmatprep.subr.mxu0 0.0
    %4117 = vmatpush1.msra.mxu0 0.0
    %4118 = vmatprep.subr.mxu0 0.0
    %4119 = vmatpush1.msra.mxu0 0.0
    %4120 = vmatprep.subr.mxu0 0.0
    %4121 = vmatpush1.msra.mxu0 0.0
    %4122 = vmatprep.subr.mxu0 0.0
    %4123 = vmatpush1.msra.mxu0 0.0
    %4124 = vmatprep.subr.mxu0 0.0
    %4125 = vmatpush1.msra.mxu0 0.0
    %4126 = vmatprep.subr.mxu0 0.0
    %4127 = vmatpush1.msra.mxu0 0.0
    %4128 = vmatprep.subr.mxu0 0.0
    %4129 = vmatpush1.msra.mxu0 0.0
    %4130 = vmatprep.subr.mxu0 0.0
    %4131 = vmatpush1.msra.mxu0 0.0
    %4132 = vmatprep.subr.mxu0 0.0
    %4133 = vmatpush1.msra.mxu0 0.0
    %4134 = vmatprep.subr.mxu0 0.0
    %4135 = vmatpush1.msra.mxu0 0.0
    %4136 = vmatprep.subr.mxu0 0.0
    %4137 = vmatpush1.msra.mxu0 0.0
    %4138 = vmatprep.subr.mxu0 0.0
    %4139 = vmatpush1.msra.mxu0 0.0
    %4140 = vmatprep.subr.mxu0 0.0
    %4141 = vmatpush1.msra.mxu0 0.0
    %4142 = vmatprep.mubr.f32.mxu0 0.0
    %v4143 = vand.u32 %v1705, 4294901760
    %v4144 = vsub.f32 %v1705, %v4143
    %v4145 = vand.u32 %v4144, 4294901760
    %4146 = vmatmul.mubr.f32.gmra.mrb[0].mxu0 %v4145
    %v4147 = vpop.f32.mrb[0].mxu0
    %v4148 = vadd.f32 %v4071, %v4147
    %v4149 = vpop.f32.mrb[0].mxu0
    %4150 = vdwg.mxu0
    %4151 = vmatprep.subr.mxu0 0.0
    %v4152 = vand.u32 %v2837, 4294901760
    %v4153 = vsub.f32 %v2837, %v4152
    %v4154 = vand.u32 %v4153, 4294901760
    %4155 = vmatpush1.msra.mxu0 %v4154
    %4156 = vmatprep.subr.mxu0 0.0
    %v4157 = vand.u32 %v2838, 4294901760
    %v4158 = vsub.f32 %v2838, %v4157
    %v4159 = vand.u32 %v4158, 4294901760
    %4160 = vmatpush1.msra.mxu0 %v4159
    %4161 = vmatprep.subr.mxu0 0.0
    %v4162 = vand.u32 %v2839, 4294901760
    %v4163 = vsub.f32 %v2839, %v4162
    %v4164 = vand.u32 %v4163, 4294901760
    %4165 = vmatpush1.msra.mxu0 %v4164
    %4166 = vmatprep.subr.mxu0 0.0
    %v4167 = vand.u32 %v2840, 4294901760
    %v4168 = vsub.f32 %v2840, %v4167
    %v4169 = vand.u32 %v4168, 4294901760
    %4170 = vmatpush1.msra.mxu0 %v4169
    %4171 = vmatprep.subr.mxu0 0.0
    %4172 = vmatpush1.msra.mxu0 0.0
    %4173 = vmatprep.subr.mxu0 0.0
    %4174 = vmatpush1.msra.mxu0 0.0
    %4175 = vmatprep.subr.mxu0 0.0
    %4176 = vmatpush1.msra.mxu0 0.0
    %4177 = vmatprep.subr.mxu0 0.0
    %4178 = vmatpush1.msra.mxu0 0.0
    %4179 = vmatprep.subr.mxu0 0.0
    %4180 = vmatpush1.msra.mxu0 0.0
    %4181 = vmatprep.subr.mxu0 0.0
    %4182 = vmatpush1.msra.mxu0 0.0
    %4183 = vmatprep.subr.mxu0 0.0
    %4184 = vmatpush1.msra.mxu0 0.0
    %4185 = vmatprep.subr.mxu0 0.0
    %4186 = vmatpush1.msra.mxu0 0.0
    %4187 = vmatprep.subr.mxu0 0.0
    %4188 = vmatpush1.msra.mxu0 0.0
    %4189 = vmatprep.subr.mxu0 0.0
    %4190 = vmatpush1.msra.mxu0 0.0
    %4191 = vmatprep.subr.mxu0 0.0
    %4192 = vmatpush1.msra.mxu0 0.0
    %4193 = vmatprep.subr.mxu0 0.0
    %4194 = vmatpush1.msra.mxu0 0.0
    %4195 = vmatprep.subr.mxu0 0.0
    %4196 = vmatpush1.msra.mxu0 0.0
    %4197 = vmatprep.subr.mxu0 0.0
    %4198 = vmatpush1.msra.mxu0 0.0
    %4199 = vmatprep.subr.mxu0 0.0
    %4200 = vmatpush1.msra.mxu0 0.0
    %4201 = vmatprep.subr.mxu0 0.0
    %4202 = vmatpush1.msra.mxu0 0.0
    %4203 = vmatprep.subr.mxu0 0.0
    %4204 = vmatpush1.msra.mxu0 0.0
    %4205 = vmatprep.subr.mxu0 0.0
    %4206 = vmatpush1.msra.mxu0 0.0
    %4207 = vmatprep.subr.mxu0 0.0
    %4208 = vmatpush1.msra.mxu0 0.0
    %4209 = vmatprep.subr.mxu0 0.0
    %4210 = vmatpush1.msra.mxu0 0.0
    %4211 = vmatprep.subr.mxu0 0.0
    %4212 = vmatpush1.msra.mxu0 0.0
    %4213 = vmatprep.subr.mxu0 0.0
    %4214 = vmatpush1.msra.mxu0 0.0
    %4215 = vmatprep.subr.mxu0 0.0
    %4216 = vmatpush1.msra.mxu0 0.0
    %4217 = vmatprep.subr.mxu0 0.0
    %4218 = vmatpush1.msra.mxu0 0.0
    %4219 = vmatprep.subr.mxu0 0.0
    %4220 = vmatpush1.msra.mxu0 0.0
    %4221 = vmatprep.subr.mxu0 0.0
    %4222 = vmatpush1.msra.mxu0 0.0
    %4223 = vmatprep.subr.mxu0 0.0
    %4224 = vmatpush1.msra.mxu0 0.0
    %4225 = vmatprep.subr.mxu0 0.0
    %4226 = vmatpush1.msra.mxu0 0.0
    %4227 = vmatprep.mubr.f32.mxu0 0.0
    %v4228 = vand.u32 %v1705, 4294901760
    %4229 = vmatmul.mubr.f32.gmra.mrb[0].mxu0 %v4228
    %v4230 = vpop.f32.mrb[0].mxu0
    %v4231 = vadd.f32 %v4148, %v4230
    %v4232 = vpop.f32.mrb[0].mxu0
    %4233 = vdwg.mxu0
    %4234 = vmatprep.subr.mxu0 0.0
    %v4235 = vand.u32 %v2837, 4294901760
    %4236 = vmatpush1.msra.mxu0 %v4235
    %4237 = vmatprep.subr.mxu0 0.0
    %v4238 = vand.u32 %v2838, 4294901760
    %4239 = vmatpush1.msra.mxu0 %v4238
    %4240 = vmatprep.subr.mxu0 0.0
    %v4241 = vand.u32 %v2839, 4294901760
    %4242 = vmatpush1.msra.mxu0 %v4241
    %4243 = vmatprep.subr.mxu0 0.0
    %v4244 = vand.u32 %v2840, 4294901760
    %4245 = vmatpush1.msra.mxu0 %v4244
    %4246 = vmatprep.subr.mxu0 0.0
    %4247 = vmatpush1.msra.mxu0 0.0
    %4248 = vmatprep.subr.mxu0 0.0
    %4249 = vmatpush1.msra.mxu0 0.0
    %4250 = vmatprep.subr.mxu0 0.0
    %4251 = vmatpush1.msra.mxu0 0.0
    %4252 = vmatprep.subr.mxu0 0.0
    %4253 = vmatpush1.msra.mxu0 0.0
    %4254 = vmatprep.subr.mxu0 0.0
    %4255 = vmatpush1.msra.mxu0 0.0
    %4256 = vmatprep.subr.mxu0 0.0
    %4257 = vmatpush1.msra.mxu0 0.0
    %4258 = vmatprep.subr.mxu0 0.0
    %4259 = vmatpush1.msra.mxu0 0.0
    %4260 = vmatprep.subr.mxu0 0.0
    %4261 = vmatpush1.msra.mxu0 0.0
    %4262 = vmatprep.subr.mxu0 0.0
    %4263 = vmatpush1.msra.mxu0 0.0
    %4264 = vmatprep.subr.mxu0 0.0
    %4265 = vmatpush1.msra.mxu0 0.0
    %4266 = vmatprep.subr.mxu0 0.0
    %4267 = vmatpush1.msra.mxu0 0.0
    %4268 = vmatprep.subr.mxu0 0.0
    %4269 = vmatpush1.msra.mxu0 0.0
    %4270 = vmatprep.subr.mxu0 0.0
    %4271 = vmatpush1.msra.mxu0 0.0
    %4272 = vmatprep.subr.mxu0 0.0
    %4273 = vmatpush1.msra.mxu0 0.0
    %4274 = vmatprep.subr.mxu0 0.0
    %4275 = vmatpush1.msra.mxu0 0.0
    %4276 = vmatprep.subr.mxu0 0.0
    %4277 = vmatpush1.msra.mxu0 0.0
    %4278 = vmatprep.subr.mxu0 0.0
    %4279 = vmatpush1.msra.mxu0 0.0
    %4280 = vmatprep.subr.mxu0 0.0
    %4281 = vmatpush1.msra.mxu0 0.0
    %4282 = vmatprep.subr.mxu0 0.0
    %4283 = vmatpush1.msra.mxu0 0.0
    %4284 = vmatprep.subr.mxu0 0.0
    %4285 = vmatpush1.msra.mxu0 0.0
    %4286 = vmatprep.subr.mxu0 0.0
    %4287 = vmatpush1.msra.mxu0 0.0
    %4288 = vmatprep.subr.mxu0 0.0
    %4289 = vmatpush1.msra.mxu0 0.0
    %4290 = vmatprep.subr.mxu0 0.0
    %4291 = vmatpush1.msra.mxu0 0.0
    %4292 = vmatprep.subr.mxu0 0.0
    %4293 = vmatpush1.msra.mxu0 0.0
    %4294 = vmatprep.subr.mxu0 0.0
    %4295 = vmatpush1.msra.mxu0 0.0
    %4296 = vmatprep.subr.mxu0 0.0
    %4297 = vmatpush1.msra.mxu0 0.0
    %4298 = vmatprep.subr.mxu0 0.0
    %4299 = vmatpush1.msra.mxu0 0.0
    %4300 = vmatprep.subr.mxu0 0.0
    %4301 = vmatpush1.msra.mxu0 0.0
    %4302 = vmatprep.mubr.f32.mxu0 0.0
    %v4303 = vand.u32 %v1705, 4294901760
    %4304 = vmatmul.mubr.f32.gmra.mrb[0].mxu0 %v4303
    %v4305 = vpop.f32.mrb[0].mxu0
    %v4306 = vadd.f32 %v4231, %v4305
    %v4307 = vpop.f32.mrb[0].mxu0
    %4308 = vdwg.mxu0
    %4309 = vrot.lane.b32.xlu0 %v4306, 16
    %v4310 = vpop.permute.xlu0 %4309
    %v4311 = vsel %vm49, %v4310, %v4306
    %4312 = vrot.lane.b32.xlu0 %v4311, 16
    %v4313 = vpop.permute.xlu0 %4312
    %v4314 = vsel %vm49, %v4313, %v4306
    %4316 = vrot.lane.b32.xlu0 %v4314, 127
    %v4317 = vpop.permute.xlu0 %4316
    %v4319 = vsel %vm72, %v4317, 0.0
    %v4320 = vadd.f32 %v3823, %v4319
    %v4321 = vadd.f32 %v4320, %v2207
    %s4322 = scalar_lea.vmem [#allocation2], 4
    %4323 = vst.msk [vmem:[%s4322] sm:$0xf] %vm2210, %v4321
    // Predicated region
    $region26: #{tpu_custom_call.1} parent=1 // pred_check
      _
    $region27: #{tpu_custom_call.1} parent=1 // pred_check_branch
      %4325 = sbr.rel (0) target = $region29
    $region28: #{tpu_custom_call.1} parent=1 // pred_region
      %s4327 = ssub.s32 128, 128
      %4328 = vsyncadd [#allocation3], %s4327
      %s4329 = sshll.u32 [#allocation2], 4
      %s4330 = int_to_ptr.vmem [resolvable:$true] %s4329
      %4335 = dma.vmem_to_hbm [thread:$0]  %s4330, 128, %s6, [#allocation3], 64, 64, 4
    $region29: #{tpu_custom_call.1} parent=1 // pred_fallthru
      _
    // Predicated region
    $region30: #{tpu_custom_call.1} parent=1 // pred_check
      _
    $region31: #{tpu_custom_call.1} parent=1 // pred_check_branch
      %4337 = sbr.rel (0) target = $region33
    $region32: #{tpu_custom_call.1} parent=1 // pred_region
      %4338 = dma.done [#allocation3], 128
    $region33: #{tpu_custom_call.1} parent=1 // pred_fallthru
      _
    %4339 = vsyncpa [#allocation3], 1

</llo_original>
